<compile_context>
chip_gen: v7x
topology: tpu7x:2x2x1
jax: 0.10.0
libtpu: 0.0.40
codegen_flags: <defaults>
</compile_context>

<pallas_src>
import jax
import jax.numpy as jnp
import numpy as np
from jax import lax
from jax.experimental import pallas as pl
from jax.experimental.pallas import tpu as pltpu


def _round_up(n, m):
    return ((n + m - 1) // m) * m


def _make_kernel(T, t_tile, halo, pad, K, D, fuse_conv1, vpu_dtype):
    W = t_tile + halo

    def kernel(xm_ref, xh_ref, w1_ref, w2_ref, bias_ref, pvec_ref, o_ref):
        # xm_ref  : (1, t_tile, D)  main rows of the padded input (compute dtype)
        # xh_ref  : (1, halo, D)    right-halo rows (compute dtype)
        # w1_ref  : (D, 2D)         pointwise_conv1 weight [value | gate]
        # w2_ref  : (D, D)          pointwise_conv2 weight
        # bias_ref: (8, D) f32      row0=b1 value, row1=b1 gate, row2=b2
        # pvec_ref: (Kp, D) vpu     rows 0..K-1 = taps*bn_scale, row K = bn shift
        # o_ref   : (1, t_tile, D)
        j = pl.program_id(1)

        # Assemble the haloed window (W, D) from the two blocked DMAs.
        xw = jnp.concatenate([xm_ref[0], xh_ref[0]], axis=0)          # (W, D)

        b1a = bias_ref[0:1, :]
        b1b = bias_ref[1:2, :]
        b2 = bias_ref[2:3, :]

        # pointwise_conv1 on the MXU with f32 accumulation.
        if fuse_conv1:
            # One (W,D)@(D,2D) matmul; slice at column D (128-lane aligned).
            y = jnp.dot(xw, w1_ref[...], preferred_element_type=jnp.float32)
            a = y[:, :D] + b1a
            g = y[:, D:] + b1b
        else:
            # Two (D,D) matmuls (right shape for v5e's 128-wide MXU).
            a = jnp.dot(xw, w1_ref[:, :D], preferred_element_type=jnp.float32) + b1a
            g = jnp.dot(xw, w1_ref[:, D:], preferred_element_type=jnp.float32) + b1b

        glu = a * jax.nn.sigmoid(g)                                   # (W, D) f32

        # The torch module zero-pads the *GLU output* (depthwise padding), so
        # window rows outside the real sequence must be zeroed (GLU(conv1(0))
        # != 0).  Mask built on (W, 1); the where broadcasts over lanes.
        row = lax.broadcasted_iota(jnp.int32, (W, 1), 0) + j * t_tile
        keep = (row >= pad) & (row < pad + T)
        glu = jnp.where(keep, glu, 0.0).astype(vpu_dtype)

        # Depthwise conv along time: K static in-register/VMEM shifts + MACs.
        # BN scale is already folded into the taps.
        taps = pvec_ref[...]                                          # (Kp, D)
        acc = glu[0:t_tile, :] * taps[0:1, :]
        for k in range(1, K):                                         # unrolled
            acc = acc + glu[k:k + t_tile, :] * taps[k:k + 1, :]

        # BatchNorm shift (depthwise bias folded in) + ReLU.
        h = jnp.maximum(acc + taps[K:K + 1, :], 0.0)

        # pointwise_conv2 on the MXU, f32 accumulation.
        out = jnp.dot(h.astype(w2_ref.dtype), w2_ref[...],
                      preferred_element_type=jnp.float32) + b2
        o_ref[0] = out.astype(o_ref.dtype)                            # dropout = identity

    return kernel


def convolution_module(x, params, kernel_size, *, t_tile=None,
                       compute_dtype=jnp.float32, vpu_dtype=None,
                       fuse_conv1=None, out_dtype=None):
    """Conformer ConvolutionModule forward. x: (B, T, D) -> (B, T, D).

    compute_dtype: MXU operand dtype (bf16 recommended on all gens).
    vpu_dtype:     dtype of the depthwise/BN/ReLU section (bf16 on v6e/v7x,
                   f32 on v5e which has no bf16 VALU).
    fuse_conv1:    single (D,2D) conv1 matmul (v6e/v7x, D==128) vs two (D,D)
                   matmuls (v5e).  Default: D == 128.
    """
    B, T, D = x.shape
    K = kernel_size
    assert K % 2 == 1, "kernel_size must be odd (torch padding=K//2 is 'same' only for odd K)"
    pad = K // 2
    if vpu_dtype is None:
        vpu_dtype = jnp.float32
    if out_dtype is None:
        out_dtype = x.dtype
    if fuse_conv1 is None:
        fuse_conv1 = (D == 128)

    (w1, b1, wdw, bdw, gamma, beta, rmean, rvar, w2, b2) = params
    eps = 1e-5

    # Fold BatchNorm (eval) into the depthwise taps + a per-channel shift;
    # the depthwise bias is folded into the shift.  Exact fold in f32.
    bn_scale = gamma / jnp.sqrt(rvar + eps)                  # (D,)
    bn_shift = beta + (bdw - rmean) * bn_scale               # (D,)
    taps_folded = wdw * bn_scale[None, :]                    # (K, D)

    # Time tiling.  halo >= 2*pad, multiple of 32 so the halo block of tile j
    # starts exactly at block index (j+1)*t_tile/halo; t_tile is a multiple of
    # halo.  Default 512 rows amortizes per-step overhead and halo recompute.
    halo = _round_up(max(2 * pad, 1), 32)
    if t_tile is None:
        t_tile = 512
    t_tile = _round_up(max(int(t_tile), 8), halo)
    t_tile = min(t_tile, _round_up(T, halo))
    if B == 1:                                               # keep both v7x TCs busy
        t_tile = min(t_tile, _round_up(-(-T // 2), halo))
    nT = -(-T // t_tile)
    T_up = nT * t_tile
    W = t_tile + halo

    # Zero-pad time: `pad` rows in front (depthwise left halo) and enough at
    # the back so every main/halo block is in range.  No windowed duplication.
    xc = x.astype(compute_dtype)
    xp = jnp.pad(xc, ((0, 0), (pad, T_up + halo - pad - T), (0, 0)))

    w1c = w1.astype(compute_dtype)                           # (D, 2D)
    w2c = w2.astype(compute_dtype)                           # (D, D)

    # Pack the per-channel vectors: biases (f32, added to f32 MXU accumulators)
    # and taps+BN-shift (vpu dtype, used by the VPU section).
    bias_pack = jnp.zeros((8, D), jnp.float32)
    bias_pack = bias_pack.at[0].set(b1[:D]).at[1].set(b1[D:]).at[2].set(b2)
    Kp = _round_up(K + 1, 8)
    pvec = jnp.zeros((Kp, D), jnp.float32)
    pvec = pvec.at[:K].set(taps_folded).at[K].set(bn_shift)
    pvec = pvec.astype(vpu_dtype)

    kernel = _make_kernel(T, t_tile, halo, pad, K, D, fuse_conv1, vpu_dtype)

    c_item = jnp.dtype(compute_dtype).itemsize
    v_item = jnp.dtype(vpu_dtype).itemsize
    o_item = jnp.dtype(out_dtype).itemsize

    # Explicit scoped-VMEM limit sized from the actual buffers (generous 2x).
    inter = 4 * W * D * 4 + W * D * (c_item + v_item) + 6 * t_tile * D * 4
    est = (2 * (t_tile + halo) * D * c_item                  # x main+halo, 2-deep
           + 2 * (3 * D * D * c_item + 8 * D * 4 + Kp * D * v_item)
           + 2 * t_tile * D * o_item + inter)
    vmem_limit = int(min(max(2 * est, 32 << 20), 64 << 20))

    cost = pl.CostEstimate(
        flops=int(2 * B * nT * (W * D * 2 * D + t_tile * D * D + t_tile * D * K)),
        transcendentals=int(B * nT * W * D),
        bytes_accessed=int((B * (T_up + halo) * D + B * nT * halo * D) * c_item
                           + B * T_up * D * o_item
                           + 3 * D * D * c_item + (8 + Kp) * D * 4),
    )

    def _run(single_buffer_consts):
        def const_spec(shape):
            idx = lambda b, j: (0,) * len(shape)
            if single_buffer_consts:
                # Constant weights are DMA'd once; one VMEM buffer is enough
                # (saves ~3*D*D*itemsize of VMEM — matters on v7x's 64 MiB).
                return pl.BlockSpec(shape, idx, pipeline_mode=pl.Buffered(1))
            return pl.BlockSpec(shape, idx)

        grid_spec = pltpu.PrefetchScalarGridSpec(
            num_scalar_prefetch=0,
            grid=(B, nT),
            in_specs=[
                pl.BlockSpec((1, t_tile, D), lambda b, j: (b, j, 0)),       # main rows
                pl.BlockSpec((1, halo, D),                                  # right halo
                             lambda b, j: (b, (j + 1) * (t_tile // halo), 0)),
                const_spec((D, 2 * D)),                                     # w1
                const_spec((D, D)),                                         # w2
                const_spec((8, D)),                                         # bias pack
                const_spec((Kp, D)),                                        # taps + shift
            ],
            out_specs=pl.BlockSpec((1, t_tile, D), lambda b, j: (b, j, 0)),
        )
        return pl.pallas_call(
            kernel,
            out_shape=jax.ShapeDtypeStruct((B, T_up, D), out_dtype),
            grid_spec=grid_spec,
            compiler_params=pltpu.CompilerParams(
                dimension_semantics=("parallel", "parallel"),
                vmem_limit_bytes=vmem_limit),
            cost_estimate=cost,
        )(xp, xp, w1c, w2c, bias_pack, pvec)

    try:
        out = _run(True)
    except Exception:
        # Fallback if this JAX/Mosaic build rejects pl.Buffered(1); the math
        # is identical, the constant weights just get a second buffer.
        out = _run(False)

    return out[:, :T, :]


def reference(x, params, kernel_size):
    """Pure-JAX reference mirroring the PyTorch forward (eval mode)."""
    B, T, D = x.shape
    K = kernel_size
    pad = K // 2
    (w1, b1, wdw, bdw, gamma, beta, rmean, rvar, w2, b2) = params
    eps = 1e-5

    y = jnp.einsum('btd,de->bte', x, w1) + b1                      # pointwise_conv1
    a, g = y[..., :D], y[..., D:]
    glu = a * jax.nn.sigmoid(g)                                    # GLU(dim=channel)
    padded = jnp.pad(glu, ((0, 0), (pad, pad), (0, 0)))
    dw = sum(padded[:, k:k + T, :] * wdw[k] for k in range(K)) + bdw
    h = (dw - rmean) / jnp.sqrt(rvar + eps) * gamma + beta         # BatchNorm (eval)
    h = jnp.maximum(h, 0.0)                                        # ReLU
    out = jnp.einsum('btd,de->bte', h, w2) + b2                    # pointwise_conv2
    return out                                                     # dropout = identity


if __name__ == "__main__":
    B, T, D = 2, 64, 128        # D multiple of 128 keeps everything lane-dense
    K = 31                      # module default kernel_size

    key = jax.random.PRNGKey(0)
    ks = jax.random.split(key, 11)

    x = jax.random.normal(ks[0], (B, T, D), jnp.float32)

    # Deterministic synthetic parameters (shapes from the module __init__).
    w1 = jax.random.normal(ks[1], (D, 2 * D), jnp.float32) * 0.1   # pointwise_conv1.weight^T
    b1 = jax.random.normal(ks[2], (2 * D,), jnp.float32) * 0.1     # pointwise_conv1.bias
    wdw = jax.random.normal(ks[3], (K, D), jnp.float32) * 0.1      # depthwise taps (per channel)
    bdw = jax.random.normal(ks[4], (D,), jnp.float32) * 0.1        # depthwise_conv.bias
    gamma = 1.0 + 0.1 * jax.random.normal(ks[5], (D,), jnp.float32)    # batch_norm.weight
    beta = 0.1 * jax.random.normal(ks[6], (D,), jnp.float32)           # batch_norm.bias
    rmean = 0.1 * jax.random.normal(ks[7], (D,), jnp.float32)          # running_mean
    rvar = 0.5 + jnp.abs(jax.random.normal(ks[8], (D,), jnp.float32))  # running_var
    w2 = jax.random.normal(ks[9], (D, D), jnp.float32) * 0.1       # pointwise_conv2.weight^T
    b2 = jax.random.normal(ks[10], (D,), jnp.float32) * 0.1        # pointwise_conv2.bias

    params = (w1, b1, wdw, bdw, gamma, beta, rmean, rvar, w2, b2)

    ref = reference(x, params, K)

    # Exact path (f32 MXU + f32 VPU, split conv1): matches the torch module.
    out_f32 = jax.block_until_ready(convolution_module(
        x, params, K, t_tile=32, compute_dtype=jnp.float32,
        vpu_dtype=jnp.float32, fuse_conv1=False))
    np.testing.assert_allclose(np.asarray(out_f32), np.asarray(ref), rtol=5e-4, atol=5e-4)

    # v5e perf config: bf16 MXU operands (f32 accumulation), f32 VPU, split conv1.
    out_v5e = jax.block_until_ready(convolution_module(
        x, params, K, t_tile=32, compute_dtype=jnp.bfloat16,
        vpu_dtype=jnp.float32, fuse_conv1=False))
    np.testing.assert_allclose(np.asarray(out_v5e), np.asarray(ref), rtol=2e-2, atol=2e-2)

    # v6e/v7x perf config: bf16 MXU + bf16 VPU section, fused conv1 (D == 128).
    out_v6e = jax.block_until_ready(convolution_module(
        x, params, K, compute_dtype=jnp.bfloat16,
        vpu_dtype=jnp.bfloat16, fuse_conv1=True))
    np.testing.assert_allclose(np.asarray(out_v6e), np.asarray(ref), rtol=5e-2, atol=5e-2)

    print("KERNEL_OK")
</pallas_src>

<mosaic_0001>
module attributes {stable_mosaic.version = 11 : i64} {
  func.func @kernel(%arg0: i32, %arg1: i32, %arg2: memref<1x32x128xf32, #tpu.memory_space<vmem>>, %arg3: memref<1x32x128xf32, #tpu.memory_space<vmem>>, %arg4: memref<128x256xf32, #tpu.memory_space<vmem>>, %arg5: memref<128x128xf32, #tpu.memory_space<vmem>>, %arg6: memref<8x128xf32, #tpu.memory_space<vmem>>, %arg7: memref<32x128xf32, #tpu.memory_space<vmem>>, %arg8: memref<1x32x128xf32, #tpu.memory_space<vmem>>) attributes {dimension_semantics = [#tpu.dimension_semantics<parallel>, #tpu.dimension_semantics<parallel>], iteration_bounds = array<i64: 2, 2>, scalar_prefetch = 0 : i64, scratch_operands = 0 : i64, tpu.core_type = #tpu.core_type<tc>, window_params = [{transform_indices = @transform_0, window_bounds = array<i64: 1, 32, 128>}, {transform_indices = @transform_1, window_bounds = array<i64: 1, 32, 128>}, {pipeline_mode = #tpu.pipeline_mode<synchronous>, transform_indices = @transform_2, window_bounds = array<i64: 128, 256>}, {pipeline_mode = #tpu.pipeline_mode<synchronous>, transform_indices = @transform_3, window_bounds = array<i64: 128, 128>}, {pipeline_mode = #tpu.pipeline_mode<synchronous>, transform_indices = @transform_4, window_bounds = array<i64: 8, 128>}, {pipeline_mode = #tpu.pipeline_mode<synchronous>, transform_indices = @transform_5, window_bounds = array<i64: 32, 128>}, {transform_indices = @transform_6, window_bounds = array<i64: 1, 32, 128>}]} {
    %c0 = arith.constant 0 : index
    %c0_0 = arith.constant 0 : index
    %c0_1 = arith.constant 0 : index
    %0 = vector.load %arg2[%c0, %c0_0, %c0_1] : memref<1x32x128xf32, #tpu.memory_space<vmem>>, vector<1x32x128xf32>
    %1 = vector.shape_cast %0 : vector<1x32x128xf32> to vector<32x128xf32>
    %c0_2 = arith.constant 0 : index
    %c0_3 = arith.constant 0 : index
    %c0_4 = arith.constant 0 : index
    %2 = vector.load %arg3[%c0_2, %c0_3, %c0_4] : memref<1x32x128xf32, #tpu.memory_space<vmem>>, vector<1x32x128xf32>
    %3 = vector.shape_cast %2 : vector<1x32x128xf32> to vector<32x128xf32>
    %4 = tpu.concatenate %1, %3 in 0 : vector<32x128xf32>, vector<32x128xf32> -> vector<64x128xf32>
    %c0_5 = arith.constant 0 : index
    %c0_6 = arith.constant 0 : index
    %5 = vector.load %arg6[%c0_5, %c0_6] : memref<8x128xf32, #tpu.memory_space<vmem>>, vector<1x128xf32>
    %c1 = arith.constant 1 : index
    %c0_7 = arith.constant 0 : index
    %6 = vector.load %arg6[%c1, %c0_7] : memref<8x128xf32, #tpu.memory_space<vmem>>, vector<1x128xf32>
    %c2 = arith.constant 2 : index
    %c0_8 = arith.constant 0 : index
    %7 = vector.load %arg6[%c2, %c0_8] : memref<8x128xf32, #tpu.memory_space<vmem>>, vector<1x128xf32>
    %c0_9 = arith.constant 0 : index
    %c0_10 = arith.constant 0 : index
    %8 = vector.load %arg4[%c0_9, %c0_10] : memref<128x256xf32, #tpu.memory_space<vmem>>, vector<128x128xf32>
    %cst = arith.constant dense<0.000000e+00> : vector<64x128xf32>
    %9 = tpu.matmul %4, %8, %cst {dimension_numbers = #tpu.dot_dimension_numbers<[1], [0], [0], [1], [0, 0, 1, 1], [], []>} : vector<64x128xf32>, vector<128x128xf32>, vector<64x128xf32> -> vector<64x128xf32>
    %10 = vector.broadcast %5 : vector<1x128xf32> to vector<64x128xf32>
    %11 = arith.addf %9, %10 : vector<64x128xf32>
    %c0_11 = arith.constant 0 : index
    %c128 = arith.constant 128 : index
    %12 = vector.load %arg4[%c0_11, %c128] : memref<128x256xf32, #tpu.memory_space<vmem>>, vector<128x128xf32>
    %cst_12 = arith.constant dense<0.000000e+00> : vector<64x128xf32>
    %13 = tpu.matmul %4, %12, %cst_12 {dimension_numbers = #tpu.dot_dimension_numbers<[1], [0], [0], [1], [0, 0, 1, 1], [], []>} : vector<64x128xf32>, vector<128x128xf32>, vector<64x128xf32> -> vector<64x128xf32>
    %14 = vector.broadcast %6 : vector<1x128xf32> to vector<64x128xf32>
    %15 = arith.addf %13, %14 : vector<64x128xf32>
    %16 = arith.negf %15 : vector<64x128xf32>
    %17 = math.exp %16 : vector<64x128xf32>
    %cst_13 = arith.constant 1.000000e+00 : f32
    %18 = vector.broadcast %cst_13 : f32 to vector<64x128xf32>
    %19 = arith.addf %18, %17 : vector<64x128xf32>
    %20 = arith.divf %18, %19 : vector<64x128xf32>
    %21 = arith.mulf %11, %20 : vector<64x128xf32>
    %22 = tpu.iota {dimensions = array<i32: 0>} : vector<64x1xi32>
    %c32_i32 = arith.constant 32 : i32
    %23 = arith.muli %arg1, %c32_i32 : i32
    %24 = vector.broadcast %23 : i32 to vector<64x1xi32>
    %25 = arith.addi %22, %24 : vector<64x1xi32>
    %c15_i32 = arith.constant 15 : i32
    %26 = vector.broadcast %c15_i32 : i32 to vector<64x1xi32>
    %27 = arith.cmpi sge, %25, %26 : vector<64x1xi32>
    %c79_i32 = arith.constant 79 : i32
    %28 = vector.broadcast %c79_i32 : i32 to vector<64x1xi32>
    %29 = arith.cmpi slt, %25, %28 : vector<64x1xi32>
    %30 = arith.andi %27, %29 : vector<64x1xi1>
    %cst_14 = arith.constant 0.000000e+00 : f32
    %31 = vector.shape_cast %30 : vector<64x1xi1> to vector<64x1xi1>
    %32 = vector.broadcast %31 : vector<64x1xi1> to vector<64x128xi1>
    %33 = vector.broadcast %cst_14 : f32 to vector<64x128xf32>
    %34 = arith.select %32, %21, %33 : vector<64x128xi1>, vector<64x128xf32>
    %c0_15 = arith.constant 0 : index
    %c0_16 = arith.constant 0 : index
    %35 = vector.load %arg7[%c0_15, %c0_16] : memref<32x128xf32, #tpu.memory_space<vmem>>, vector<32x128xf32>
    %36 = vector.extract_strided_slice %34 {offsets = [0, 0], sizes = [32, 128], strides = [1, 1]} : vector<64x128xf32> to vector<32x128xf32>
    %37 = vector.extract_strided_slice %35 {offsets = [0, 0], sizes = [1, 128], strides = [1, 1]} : vector<32x128xf32> to vector<1x128xf32>
    %38 = vector.broadcast %37 : vector<1x128xf32> to vector<32x128xf32>
    %39 = arith.mulf %36, %38 : vector<32x128xf32>
    %40 = vector.extract_strided_slice %34 {offsets = [1, 0], sizes = [32, 128], strides = [1, 1]} : vector<64x128xf32> to vector<32x128xf32>
    %41 = vector.extract_strided_slice %35 {offsets = [1, 0], sizes = [1, 128], strides = [1, 1]} : vector<32x128xf32> to vector<1x128xf32>
    %42 = vector.broadcast %41 : vector<1x128xf32> to vector<32x128xf32>
    %43 = arith.mulf %40, %42 : vector<32x128xf32>
    %44 = arith.addf %39, %43 : vector<32x128xf32>
    %45 = vector.extract_strided_slice %34 {offsets = [2, 0], sizes = [32, 128], strides = [1, 1]} : vector<64x128xf32> to vector<32x128xf32>
    %46 = vector.extract_strided_slice %35 {offsets = [2, 0], sizes = [1, 128], strides = [1, 1]} : vector<32x128xf32> to vector<1x128xf32>
    %47 = vector.broadcast %46 : vector<1x128xf32> to vector<32x128xf32>
    %48 = arith.mulf %45, %47 : vector<32x128xf32>
    %49 = arith.addf %44, %48 : vector<32x128xf32>
    %50 = vector.extract_strided_slice %34 {offsets = [3, 0], sizes = [32, 128], strides = [1, 1]} : vector<64x128xf32> to vector<32x128xf32>
    %51 = vector.extract_strided_slice %35 {offsets = [3, 0], sizes = [1, 128], strides = [1, 1]} : vector<32x128xf32> to vector<1x128xf32>
    %52 = vector.broadcast %51 : vector<1x128xf32> to vector<32x128xf32>
    %53 = arith.mulf %50, %52 : vector<32x128xf32>
    %54 = arith.addf %49, %53 : vector<32x128xf32>
    %55 = vector.extract_strided_slice %34 {offsets = [4, 0], sizes = [32, 128], strides = [1, 1]} : vector<64x128xf32> to vector<32x128xf32>
    %56 = vector.extract_strided_slice %35 {offsets = [4, 0], sizes = [1, 128], strides = [1, 1]} : vector<32x128xf32> to vector<1x128xf32>
    %57 = vector.broadcast %56 : vector<1x128xf32> to vector<32x128xf32>
    %58 = arith.mulf %55, %57 : vector<32x128xf32>
    %59 = arith.addf %54, %58 : vector<32x128xf32>
    %60 = vector.extract_strided_slice %34 {offsets = [5, 0], sizes = [32, 128], strides = [1, 1]} : vector<64x128xf32> to vector<32x128xf32>
    %61 = vector.extract_strided_slice %35 {offsets = [5, 0], sizes = [1, 128], strides = [1, 1]} : vector<32x128xf32> to vector<1x128xf32>
    %62 = vector.broadcast %61 : vector<1x128xf32> to vector<32x128xf32>
    %63 = arith.mulf %60, %62 : vector<32x128xf32>
    %64 = arith.addf %59, %63 : vector<32x128xf32>
    %65 = vector.extract_strided_slice %34 {offsets = [6, 0], sizes = [32, 128], strides = [1, 1]} : vector<64x128xf32> to vector<32x128xf32>
    %66 = vector.extract_strided_slice %35 {offsets = [6, 0], sizes = [1, 128], strides = [1, 1]} : vector<32x128xf32> to vector<1x128xf32>
    %67 = vector.broadcast %66 : vector<1x128xf32> to vector<32x128xf32>
    %68 = arith.mulf %65, %67 : vector<32x128xf32>
    %69 = arith.addf %64, %68 : vector<32x128xf32>
    %70 = vector.extract_strided_slice %34 {offsets = [7, 0], sizes = [32, 128], strides = [1, 1]} : vector<64x128xf32> to vector<32x128xf32>
    %71 = vector.extract_strided_slice %35 {offsets = [7, 0], sizes = [1, 128], strides = [1, 1]} : vector<32x128xf32> to vector<1x128xf32>
    %72 = vector.broadcast %71 : vector<1x128xf32> to vector<32x128xf32>
    %73 = arith.mulf %70, %72 : vector<32x128xf32>
    %74 = arith.addf %69, %73 : vector<32x128xf32>
    %75 = vector.extract_strided_slice %34 {offsets = [8, 0], sizes = [32, 128], strides = [1, 1]} : vector<64x128xf32> to vector<32x128xf32>
    %76 = vector.extract_strided_slice %35 {offsets = [8, 0], sizes = [1, 128], strides = [1, 1]} : vector<32x128xf32> to vector<1x128xf32>
    %77 = vector.broadcast %76 : vector<1x128xf32> to vector<32x128xf32>
    %78 = arith.mulf %75, %77 : vector<32x128xf32>
    %79 = arith.addf %74, %78 : vector<32x128xf32>
    %80 = vector.extract_strided_slice %34 {offsets = [9, 0], sizes = [32, 128], strides = [1, 1]} : vector<64x128xf32> to vector<32x128xf32>
    %81 = vector.extract_strided_slice %35 {offsets = [9, 0], sizes = [1, 128], strides = [1, 1]} : vector<32x128xf32> to vector<1x128xf32>
    %82 = vector.broadcast %81 : vector<1x128xf32> to vector<32x128xf32>
    %83 = arith.mulf %80, %82 : vector<32x128xf32>
    %84 = arith.addf %79, %83 : vector<32x128xf32>
    %85 = vector.extract_strided_slice %34 {offsets = [10, 0], sizes = [32, 128], strides = [1, 1]} : vector<64x128xf32> to vector<32x128xf32>
    %86 = vector.extract_strided_slice %35 {offsets = [10, 0], sizes = [1, 128], strides = [1, 1]} : vector<32x128xf32> to vector<1x128xf32>
    %87 = vector.broadcast %86 : vector<1x128xf32> to vector<32x128xf32>
    %88 = arith.mulf %85, %87 : vector<32x128xf32>
    %89 = arith.addf %84, %88 : vector<32x128xf32>
    %90 = vector.extract_strided_slice %34 {offsets = [11, 0], sizes = [32, 128], strides = [1, 1]} : vector<64x128xf32> to vector<32x128xf32>
    %91 = vector.extract_strided_slice %35 {offsets = [11, 0], sizes = [1, 128], strides = [1, 1]} : vector<32x128xf32> to vector<1x128xf32>
    %92 = vector.broadcast %91 : vector<1x128xf32> to vector<32x128xf32>
    %93 = arith.mulf %90, %92 : vector<32x128xf32>
    %94 = arith.addf %89, %93 : vector<32x128xf32>
    %95 = vector.extract_strided_slice %34 {offsets = [12, 0], sizes = [32, 128], strides = [1, 1]} : vector<64x128xf32> to vector<32x128xf32>
    %96 = vector.extract_strided_slice %35 {offsets = [12, 0], sizes = [1, 128], strides = [1, 1]} : vector<32x128xf32> to vector<1x128xf32>
    %97 = vector.broadcast %96 : vector<1x128xf32> to vector<32x128xf32>
    %98 = arith.mulf %95, %97 : vector<32x128xf32>
    %99 = arith.addf %94, %98 : vector<32x128xf32>
    %100 = vector.extract_strided_slice %34 {offsets = [13, 0], sizes = [32, 128], strides = [1, 1]} : vector<64x128xf32> to vector<32x128xf32>
    %101 = vector.extract_strided_slice %35 {offsets = [13, 0], sizes = [1, 128], strides = [1, 1]} : vector<32x128xf32> to vector<1x128xf32>
    %102 = vector.broadcast %101 : vector<1x128xf32> to vector<32x128xf32>
    %103 = arith.mulf %100, %102 : vector<32x128xf32>
    %104 = arith.addf %99, %103 : vector<32x128xf32>
    %105 = vector.extract_strided_slice %34 {offsets = [14, 0], sizes = [32, 128], strides = [1, 1]} : vector<64x128xf32> to vector<32x128xf32>
    %106 = vector.extract_strided_slice %35 {offsets = [14, 0], sizes = [1, 128], strides = [1, 1]} : vector<32x128xf32> to vector<1x128xf32>
    %107 = vector.broadcast %106 : vector<1x128xf32> to vector<32x128xf32>
    %108 = arith.mulf %105, %107 : vector<32x128xf32>
    %109 = arith.addf %104, %108 : vector<32x128xf32>
    %110 = vector.extract_strided_slice %34 {offsets = [15, 0], sizes = [32, 128], strides = [1, 1]} : vector<64x128xf32> to vector<32x128xf32>
    %111 = vector.extract_strided_slice %35 {offsets = [15, 0], sizes = [1, 128], strides = [1, 1]} : vector<32x128xf32> to vector<1x128xf32>
    %112 = vector.broadcast %111 : vector<1x128xf32> to vector<32x128xf32>
    %113 = arith.mulf %110, %112 : vector<32x128xf32>
    %114 = arith.addf %109, %113 : vector<32x128xf32>
    %115 = vector.extract_strided_slice %34 {offsets = [16, 0], sizes = [32, 128], strides = [1, 1]} : vector<64x128xf32> to vector<32x128xf32>
    %116 = vector.extract_strided_slice %35 {offsets = [16, 0], sizes = [1, 128], strides = [1, 1]} : vector<32x128xf32> to vector<1x128xf32>
    %117 = vector.broadcast %116 : vector<1x128xf32> to vector<32x128xf32>
    %118 = arith.mulf %115, %117 : vector<32x128xf32>
    %119 = arith.addf %114, %118 : vector<32x128xf32>
    %120 = vector.extract_strided_slice %34 {offsets = [17, 0], sizes = [32, 128], strides = [1, 1]} : vector<64x128xf32> to vector<32x128xf32>
    %121 = vector.extract_strided_slice %35 {offsets = [17, 0], sizes = [1, 128], strides = [1, 1]} : vector<32x128xf32> to vector<1x128xf32>
    %122 = vector.broadcast %121 : vector<1x128xf32> to vector<32x128xf32>
    %123 = arith.mulf %120, %122 : vector<32x128xf32>
    %124 = arith.addf %119, %123 : vector<32x128xf32>
    %125 = vector.extract_strided_slice %34 {offsets = [18, 0], sizes = [32, 128], strides = [1, 1]} : vector<64x128xf32> to vector<32x128xf32>
    %126 = vector.extract_strided_slice %35 {offsets = [18, 0], sizes = [1, 128], strides = [1, 1]} : vector<32x128xf32> to vector<1x128xf32>
    %127 = vector.broadcast %126 : vector<1x128xf32> to vector<32x128xf32>
    %128 = arith.mulf %125, %127 : vector<32x128xf32>
    %129 = arith.addf %124, %128 : vector<32x128xf32>
    %130 = vector.extract_strided_slice %34 {offsets = [19, 0], sizes = [32, 128], strides = [1, 1]} : vector<64x128xf32> to vector<32x128xf32>
    %131 = vector.extract_strided_slice %35 {offsets = [19, 0], sizes = [1, 128], strides = [1, 1]} : vector<32x128xf32> to vector<1x128xf32>
    %132 = vector.broadcast %131 : vector<1x128xf32> to vector<32x128xf32>
    %133 = arith.mulf %130, %132 : vector<32x128xf32>
    %134 = arith.addf %129, %133 : vector<32x128xf32>
    %135 = vector.extract_strided_slice %34 {offsets = [20, 0], sizes = [32, 128], strides = [1, 1]} : vector<64x128xf32> to vector<32x128xf32>
    %136 = vector.extract_strided_slice %35 {offsets = [20, 0], sizes = [1, 128], strides = [1, 1]} : vector<32x128xf32> to vector<1x128xf32>
    %137 = vector.broadcast %136 : vector<1x128xf32> to vector<32x128xf32>
    %138 = arith.mulf %135, %137 : vector<32x128xf32>
    %139 = arith.addf %134, %138 : vector<32x128xf32>
    %140 = vector.extract_strided_slice %34 {offsets = [21, 0], sizes = [32, 128], strides = [1, 1]} : vector<64x128xf32> to vector<32x128xf32>
    %141 = vector.extract_strided_slice %35 {offsets = [21, 0], sizes = [1, 128], strides = [1, 1]} : vector<32x128xf32> to vector<1x128xf32>
    %142 = vector.broadcast %141 : vector<1x128xf32> to vector<32x128xf32>
    %143 = arith.mulf %140, %142 : vector<32x128xf32>
    %144 = arith.addf %139, %143 : vector<32x128xf32>
    %145 = vector.extract_strided_slice %34 {offsets = [22, 0], sizes = [32, 128], strides = [1, 1]} : vector<64x128xf32> to vector<32x128xf32>
    %146 = vector.extract_strided_slice %35 {offsets = [22, 0], sizes = [1, 128], strides = [1, 1]} : vector<32x128xf32> to vector<1x128xf32>
    %147 = vector.broadcast %146 : vector<1x128xf32> to vector<32x128xf32>
    %148 = arith.mulf %145, %147 : vector<32x128xf32>
    %149 = arith.addf %144, %148 : vector<32x128xf32>
    %150 = vector.extract_strided_slice %34 {offsets = [23, 0], sizes = [32, 128], strides = [1, 1]} : vector<64x128xf32> to vector<32x128xf32>
    %151 = vector.extract_strided_slice %35 {offsets = [23, 0], sizes = [1, 128], strides = [1, 1]} : vector<32x128xf32> to vector<1x128xf32>
    %152 = vector.broadcast %151 : vector<1x128xf32> to vector<32x128xf32>
    %153 = arith.mulf %150, %152 : vector<32x128xf32>
    %154 = arith.addf %149, %153 : vector<32x128xf32>
    %155 = vector.extract_strided_slice %34 {offsets = [24, 0], sizes = [32, 128], strides = [1, 1]} : vector<64x128xf32> to vector<32x128xf32>
    %156 = vector.extract_strided_slice %35 {offsets = [24, 0], sizes = [1, 128], strides = [1, 1]} : vector<32x128xf32> to vector<1x128xf32>
    %157 = vector.broadcast %156 : vector<1x128xf32> to vector<32x128xf32>
    %158 = arith.mulf %155, %157 : vector<32x128xf32>
    %159 = arith.addf %154, %158 : vector<32x128xf32>
    %160 = vector.extract_strided_slice %34 {offsets = [25, 0], sizes = [32, 128], strides = [1, 1]} : vector<64x128xf32> to vector<32x128xf32>
    %161 = vector.extract_strided_slice %35 {offsets = [25, 0], sizes = [1, 128], strides = [1, 1]} : vector<32x128xf32> to vector<1x128xf32>
    %162 = vector.broadcast %161 : vector<1x128xf32> to vector<32x128xf32>
    %163 = arith.mulf %160, %162 : vector<32x128xf32>
    %164 = arith.addf %159, %163 : vector<32x128xf32>
    %165 = vector.extract_strided_slice %34 {offsets = [26, 0], sizes = [32, 128], strides = [1, 1]} : vector<64x128xf32> to vector<32x128xf32>
    %166 = vector.extract_strided_slice %35 {offsets = [26, 0], sizes = [1, 128], strides = [1, 1]} : vector<32x128xf32> to vector<1x128xf32>
    %167 = vector.broadcast %166 : vector<1x128xf32> to vector<32x128xf32>
    %168 = arith.mulf %165, %167 : vector<32x128xf32>
    %169 = arith.addf %164, %168 : vector<32x128xf32>
    %170 = vector.extract_strided_slice %34 {offsets = [27, 0], sizes = [32, 128], strides = [1, 1]} : vector<64x128xf32> to vector<32x128xf32>
    %171 = vector.extract_strided_slice %35 {offsets = [27, 0], sizes = [1, 128], strides = [1, 1]} : vector<32x128xf32> to vector<1x128xf32>
    %172 = vector.broadcast %171 : vector<1x128xf32> to vector<32x128xf32>
    %173 = arith.mulf %170, %172 : vector<32x128xf32>
    %174 = arith.addf %169, %173 : vector<32x128xf32>
    %175 = vector.extract_strided_slice %34 {offsets = [28, 0], sizes = [32, 128], strides = [1, 1]} : vector<64x128xf32> to vector<32x128xf32>
    %176 = vector.extract_strided_slice %35 {offsets = [28, 0], sizes = [1, 128], strides = [1, 1]} : vector<32x128xf32> to vector<1x128xf32>
    %177 = vector.broadcast %176 : vector<1x128xf32> to vector<32x128xf32>
    %178 = arith.mulf %175, %177 : vector<32x128xf32>
    %179 = arith.addf %174, %178 : vector<32x128xf32>
    %180 = vector.extract_strided_slice %34 {offsets = [29, 0], sizes = [32, 128], strides = [1, 1]} : vector<64x128xf32> to vector<32x128xf32>
    %181 = vector.extract_strided_slice %35 {offsets = [29, 0], sizes = [1, 128], strides = [1, 1]} : vector<32x128xf32> to vector<1x128xf32>
    %182 = vector.broadcast %181 : vector<1x128xf32> to vector<32x128xf32>
    %183 = arith.mulf %180, %182 : vector<32x128xf32>
    %184 = arith.addf %179, %183 : vector<32x128xf32>
    %185 = vector.extract_strided_slice %34 {offsets = [30, 0], sizes = [32, 128], strides = [1, 1]} : vector<64x128xf32> to vector<32x128xf32>
    %186 = vector.extract_strided_slice %35 {offsets = [30, 0], sizes = [1, 128], strides = [1, 1]} : vector<32x128xf32> to vector<1x128xf32>
    %187 = vector.broadcast %186 : vector<1x128xf32> to vector<32x128xf32>
    %188 = arith.mulf %185, %187 : vector<32x128xf32>
    %189 = arith.addf %184, %188 : vector<32x128xf32>
    %190 = vector.extract_strided_slice %35 {offsets = [31, 0], sizes = [1, 128], strides = [1, 1]} : vector<32x128xf32> to vector<1x128xf32>
    %191 = vector.broadcast %190 : vector<1x128xf32> to vector<32x128xf32>
    %192 = arith.addf %189, %191 : vector<32x128xf32>
    %cst_17 = arith.constant 0.000000e+00 : f32
    %193 = vector.broadcast %cst_17 : f32 to vector<32x128xf32>
    %194 = arith.maximumf %192, %193 : vector<32x128xf32>
    %c0_18 = arith.constant 0 : index
    %c0_19 = arith.constant 0 : index
    %195 = vector.load %arg5[%c0_18, %c0_19] : memref<128x128xf32, #tpu.memory_space<vmem>>, vector<128x128xf32>
    %cst_20 = arith.constant dense<0.000000e+00> : vector<32x128xf32>
    %196 = tpu.matmul %194, %195, %cst_20 {dimension_numbers = #tpu.dot_dimension_numbers<[1], [0], [0], [1], [0, 0, 1, 1], [], []>} : vector<32x128xf32>, vector<128x128xf32>, vector<32x128xf32> -> vector<32x128xf32>
    %197 = vector.broadcast %7 : vector<1x128xf32> to vector<32x128xf32>
    %198 = arith.addf %196, %197 : vector<32x128xf32>
    %c0_21 = arith.constant 0 : index
    %c0_22 = arith.constant 0 : index
    %c0_23 = arith.constant 0 : index
    %199 = vector.load %arg8[%c0_21, %c0_22, %c0_23] : memref<1x32x128xf32, #tpu.memory_space<vmem>>, vector<1x32x128xf32>
    %200 = vector.shape_cast %199 : vector<1x32x128xf32> to vector<32x128xf32>
    %201 = vector.shape_cast %198 : vector<32x128xf32> to vector<1x32x128xf32>
    tpu.vector_store %arg8[%c0_21, %c0_22, %c0_23], %201 {strides = array<i32>} : memref<1x32x128xf32, #tpu.memory_space<vmem>>, vector<1x32x128xf32>,
    return
  }
  func.func @transform_0(%arg0: i32, %arg1: i32) -> (i32, i32, i32) {
    %c0_i32 = arith.constant 0 : i32
    %c0_i32_0 = arith.constant 0 : i32
    return %arg0, %arg1, %c0_i32 : i32, i32, i32
  }
  func.func @transform_1(%arg0: i32, %arg1: i32) -> (i32, i32, i32) {
    %c1_i32 = arith.constant 1 : i32
    %0 = arith.addi %arg1, %c1_i32 : i32
    %c1_i32_0 = arith.constant 1 : i32
    %1 = arith.muli %0, %c1_i32_0 : i32
    %c0_i32 = arith.constant 0 : i32
    %c0_i32_1 = arith.constant 0 : i32
    return %arg0, %1, %c0_i32 : i32, i32, i32
  }
  func.func @transform_2(%arg0: i32, %arg1: i32) -> (i32, i32) {
    %c0_i32 = arith.constant 0 : i32
    %c0_i32_0 = arith.constant 0 : i32
    %c0_i32_1 = arith.constant 0 : i32
    return %c0_i32, %c0_i32_0 : i32, i32
  }
  func.func @transform_3(%arg0: i32, %arg1: i32) -> (i32, i32) {
    %c0_i32 = arith.constant 0 : i32
    %c0_i32_0 = arith.constant 0 : i32
    %c0_i32_1 = arith.constant 0 : i32
    return %c0_i32, %c0_i32_0 : i32, i32
  }
  func.func @transform_4(%arg0: i32, %arg1: i32) -> (i32, i32) {
    %c0_i32 = arith.constant 0 : i32
    %c0_i32_0 = arith.constant 0 : i32
    %c0_i32_1 = arith.constant 0 : i32
    return %c0_i32, %c0_i32_0 : i32, i32
  }
  func.func @transform_5(%arg0: i32, %arg1: i32) -> (i32, i32) {
    %c0_i32 = arith.constant 0 : i32
    %c0_i32_0 = arith.constant 0 : i32
    %c0_i32_1 = arith.constant 0 : i32
    return %c0_i32, %c0_i32_0 : i32, i32
  }
  func.func @transform_6(%arg0: i32, %arg1: i32) -> (i32, i32, i32) {
    %c0_i32 = arith.constant 0 : i32
    %c0_i32_0 = arith.constant 0 : i32
    return %arg0, %arg1, %c0_i32 : i32, i32, i32
  }
}

module attributes {stable_mosaic.version = 11 : i64} {
  func.func @kernel(%arg0: i32, %arg1: i32, %arg2: memref<1x32x128xf32, #tpu.memory_space<vmem>>, %arg3: memref<1x32x128xf32, #tpu.memory_space<vmem>>, %arg4: memref<128x256xf32, #tpu.memory_space<vmem>>, %arg5: memref<128x128xf32, #tpu.memory_space<vmem>>, %arg6: memref<8x128xf32, #tpu.memory_space<vmem>>, %arg7: memref<32x128xf32, #tpu.memory_space<vmem>>, %arg8: memref<1x32x128xf32, #tpu.memory_space<vmem>>) attributes {dimension_semantics = [#tpu.dimension_semantics<parallel>, #tpu.dimension_semantics<parallel>], iteration_bounds = array<i64: 2, 2>, scalar_prefetch = 0 : i64, scratch_operands = 0 : i64, tpu.core_type = #tpu.core_type<tc>, window_params = [{transform_indices = @transform_0, window_bounds = array<i64: 1, 32, 128>}, {transform_indices = @transform_1, window_bounds = array<i64: 1, 32, 128>}, {pipeline_mode = #tpu.pipeline_mode<synchronous>, transform_indices = @transform_2, window_bounds = array<i64: 128, 256>}, {pipeline_mode = #tpu.pipeline_mode<synchronous>, transform_indices = @transform_3, window_bounds = array<i64: 128, 128>}, {pipeline_mode = #tpu.pipeline_mode<synchronous>, transform_indices = @transform_4, window_bounds = array<i64: 8, 128>}, {pipeline_mode = #tpu.pipeline_mode<synchronous>, transform_indices = @transform_5, window_bounds = array<i64: 32, 128>}, {transform_indices = @transform_6, window_bounds = array<i64: 1, 32, 128>}]} {
    %c0 = arith.constant 0 : index
    %c0_0 = arith.constant 0 : index
    %c0_1 = arith.constant 0 : index
    %0 = vector.load %arg2[%c0, %c0_0, %c0_1] : memref<1x32x128xf32, #tpu.memory_space<vmem>>, vector<1x32x128xf32>
    %1 = vector.shape_cast %0 : vector<1x32x128xf32> to vector<32x128xf32>
    %c0_2 = arith.constant 0 : index
    %c0_3 = arith.constant 0 : index
    %c0_4 = arith.constant 0 : index
    %2 = vector.load %arg3[%c0_2, %c0_3, %c0_4] : memref<1x32x128xf32, #tpu.memory_space<vmem>>, vector<1x32x128xf32>
    %3 = vector.shape_cast %2 : vector<1x32x128xf32> to vector<32x128xf32>
    %4 = tpu.concatenate %1, %3 in 0 : vector<32x128xf32>, vector<32x128xf32> -> vector<64x128xf32>
    %c0_5 = arith.constant 0 : index
    %c0_6 = arith.constant 0 : index
    %5 = vector.load %arg6[%c0_5, %c0_6] : memref<8x128xf32, #tpu.memory_space<vmem>>, vector<1x128xf32>
    %c1 = arith.constant 1 : index
    %c0_7 = arith.constant 0 : index
    %6 = vector.load %arg6[%c1, %c0_7] : memref<8x128xf32, #tpu.memory_space<vmem>>, vector<1x128xf32>
    %c2 = arith.constant 2 : index
    %c0_8 = arith.constant 0 : index
    %7 = vector.load %arg6[%c2, %c0_8] : memref<8x128xf32, #tpu.memory_space<vmem>>, vector<1x128xf32>
    %c0_9 = arith.constant 0 : index
    %c0_10 = arith.constant 0 : index
    %8 = vector.load %arg4[%c0_9, %c0_10] : memref<128x256xf32, #tpu.memory_space<vmem>>, vector<128x128xf32>
    %cst = arith.constant dense<0.000000e+00> : vector<64x128xf32>
    %9 = tpu.matmul %4, %8, %cst {dimension_numbers = #tpu.dot_dimension_numbers<[1], [0], [0], [1], [0, 0, 1, 1], [], []>} : vector<64x128xf32>, vector<128x128xf32>, vector<64x128xf32> -> vector<64x128xf32>
    %10 = vector.broadcast %5 : vector<1x128xf32> to vector<64x128xf32>
    %11 = arith.addf %9, %10 : vector<64x128xf32>
    %c0_11 = arith.constant 0 : index
    %c128 = arith.constant 128 : index
    %12 = vector.load %arg4[%c0_11, %c128] : memref<128x256xf32, #tpu.memory_space<vmem>>, vector<128x128xf32>
    %cst_12 = arith.constant dense<0.000000e+00> : vector<64x128xf32>
    %13 = tpu.matmul %4, %12, %cst_12 {dimension_numbers = #tpu.dot_dimension_numbers<[1], [0], [0], [1], [0, 0, 1, 1], [], []>} : vector<64x128xf32>, vector<128x128xf32>, vector<64x128xf32> -> vector<64x128xf32>
    %14 = vector.broadcast %6 : vector<1x128xf32> to vector<64x128xf32>
    %15 = arith.addf %13, %14 : vector<64x128xf32>
    %16 = arith.negf %15 : vector<64x128xf32>
    %17 = math.exp %16 : vector<64x128xf32>
    %cst_13 = arith.constant 1.000000e+00 : f32
    %18 = vector.broadcast %cst_13 : f32 to vector<64x128xf32>
    %19 = arith.addf %18, %17 : vector<64x128xf32>
    %20 = arith.divf %18, %19 : vector<64x128xf32>
    %21 = arith.mulf %11, %20 : vector<64x128xf32>
    %22 = tpu.iota {dimensions = array<i32: 0>} : vector<64x1xi32>
    %c32_i32 = arith.constant 32 : i32
    %23 = arith.muli %arg1, %c32_i32 : i32
    %24 = vector.broadcast %23 : i32 to vector<64x1xi32>
    %25 = arith.addi %22, %24 : vector<64x1xi32>
    %c15_i32 = arith.constant 15 : i32
    %26 = vector.broadcast %c15_i32 : i32 to vector<64x1xi32>
    %27 = arith.cmpi sge, %25, %26 : vector<64x1xi32>
    %c79_i32 = arith.constant 79 : i32
    %28 = vector.broadcast %c79_i32 : i32 to vector<64x1xi32>
    %29 = arith.cmpi slt, %25, %28 : vector<64x1xi32>
    %30 = arith.andi %27, %29 : vector<64x1xi1>
    %cst_14 = arith.constant 0.000000e+00 : f32
    %31 = vector.shape_cast %30 : vector<64x1xi1> to vector<64x1xi1>
    %32 = vector.broadcast %31 : vector<64x1xi1> to vector<64x128xi1>
    %33 = vector.broadcast %cst_14 : f32 to vector<64x128xf32>
    %34 = arith.select %32, %21, %33 : vector<64x128xi1>, vector<64x128xf32>
    %c0_15 = arith.constant 0 : index
    %c0_16 = arith.constant 0 : index
    %35 = vector.load %arg7[%c0_15, %c0_16] : memref<32x128xf32, #tpu.memory_space<vmem>>, vector<32x128xf32>
    %36 = vector.extract_strided_slice %34 {offsets = [0, 0], sizes = [32, 128], strides = [1, 1]} : vector<64x128xf32> to vector<32x128xf32>
    %37 = vector.extract_strided_slice %35 {offsets = [0, 0], sizes = [1, 128], strides = [1, 1]} : vector<32x128xf32> to vector<1x128xf32>
    %38 = vector.broadcast %37 : vector<1x128xf32> to vector<32x128xf32>
    %39 = arith.mulf %36, %38 : vector<32x128xf32>
    %40 = vector.extract_strided_slice %34 {offsets = [1, 0], sizes = [32, 128], strides = [1, 1]} : vector<64x128xf32> to vector<32x128xf32>
    %41 = vector.extract_strided_slice %35 {offsets = [1, 0], sizes = [1, 128], strides = [1, 1]} : vector<32x128xf32> to vector<1x128xf32>
    %42 = vector.broadcast %41 : vector<1x128xf32> to vector<32x128xf32>
    %43 = arith.mulf %40, %42 : vector<32x128xf32>
    %44 = arith.addf %39, %43 : vector<32x128xf32>
    %45 = vector.extract_strided_slice %34 {offsets = [2, 0], sizes = [32, 128], strides = [1, 1]} : vector<64x128xf32> to vector<32x128xf32>
    %46 = vector.extract_strided_slice %35 {offsets = [2, 0], sizes = [1, 128], strides = [1, 1]} : vector<32x128xf32> to vector<1x128xf32>
    %47 = vector.broadcast %46 : vector<1x128xf32> to vector<32x128xf32>
    %48 = arith.mulf %45, %47 : vector<32x128xf32>
    %49 = arith.addf %44, %48 : vector<32x128xf32>
    %50 = vector.extract_strided_slice %34 {offsets = [3, 0], sizes = [32, 128], strides = [1, 1]} : vector<64x128xf32> to vector<32x128xf32>
    %51 = vector.extract_strided_slice %35 {offsets = [3, 0], sizes = [1, 128], strides = [1, 1]} : vector<32x128xf32> to vector<1x128xf32>
    %52 = vector.broadcast %51 : vector<1x128xf32> to vector<32x128xf32>
    %53 = arith.mulf %50, %52 : vector<32x128xf32>
    %54 = arith.addf %49, %53 : vector<32x128xf32>
    %55 = vector.extract_strided_slice %34 {offsets = [4, 0], sizes = [32, 128], strides = [1, 1]} : vector<64x128xf32> to vector<32x128xf32>
    %56 = vector.extract_strided_slice %35 {offsets = [4, 0], sizes = [1, 128], strides = [1, 1]} : vector<32x128xf32> to vector<1x128xf32>
    %57 = vector.broadcast %56 : vector<1x128xf32> to vector<32x128xf32>
    %58 = arith.mulf %55, %57 : vector<32x128xf32>
    %59 = arith.addf %54, %58 : vector<32x128xf32>
    %60 = vector.extract_strided_slice %34 {offsets = [5, 0], sizes = [32, 128], strides = [1, 1]} : vector<64x128xf32> to vector<32x128xf32>
    %61 = vector.extract_strided_slice %35 {offsets = [5, 0], sizes = [1, 128], strides = [1, 1]} : vector<32x128xf32> to vector<1x128xf32>
    %62 = vector.broadcast %61 : vector<1x128xf32> to vector<32x128xf32>
    %63 = arith.mulf %60, %62 : vector<32x128xf32>
    %64 = arith.addf %59, %63 : vector<32x128xf32>
    %65 = vector.extract_strided_slice %34 {offsets = [6, 0], sizes = [32, 128], strides = [1, 1]} : vector<64x128xf32> to vector<32x128xf32>
    %66 = vector.extract_strided_slice %35 {offsets = [6, 0], sizes = [1, 128], strides = [1, 1]} : vector<32x128xf32> to vector<1x128xf32>
    %67 = vector.broadcast %66 : vector<1x128xf32> to vector<32x128xf32>
    %68 = arith.mulf %65, %67 : vector<32x128xf32>
    %69 = arith.addf %64, %68 : vector<32x128xf32>
    %70 = vector.extract_strided_slice %34 {offsets = [7, 0], sizes = [32, 128], strides = [1, 1]} : vector<64x128xf32> to vector<32x128xf32>
    %71 = vector.extract_strided_slice %35 {offsets = [7, 0], sizes = [1, 128], strides = [1, 1]} : vector<32x128xf32> to vector<1x128xf32>
    %72 = vector.broadcast %71 : vector<1x128xf32> to vector<32x128xf32>
    %73 = arith.mulf %70, %72 : vector<32x128xf32>
    %74 = arith.addf %69, %73 : vector<32x128xf32>
    %75 = vector.extract_strided_slice %34 {offsets = [8, 0], sizes = [32, 128], strides = [1, 1]} : vector<64x128xf32> to vector<32x128xf32>
    %76 = vector.extract_strided_slice %35 {offsets = [8, 0], sizes = [1, 128], strides = [1, 1]} : vector<32x128xf32> to vector<1x128xf32>
    %77 = vector.broadcast %76 : vector<1x128xf32> to vector<32x128xf32>
    %78 = arith.mulf %75, %77 : vector<32x128xf32>
    %79 = arith.addf %74, %78 : vector<32x128xf32>
    %80 = vector.extract_strided_slice %34 {offsets = [9, 0], sizes = [32, 128], strides = [1, 1]} : vector<64x128xf32> to vector<32x128xf32>
    %81 = vector.extract_strided_slice %35 {offsets = [9, 0], sizes = [1, 128], strides = [1, 1]} : vector<32x128xf32> to vector<1x128xf32>
    %82 = vector.broadcast %81 : vector<1x128xf32> to vector<32x128xf32>
    %83 = arith.mulf %80, %82 : vector<32x128xf32>
    %84 = arith.addf %79, %83 : vector<32x128xf32>
    %85 = vector.extract_strided_slice %34 {offsets = [10, 0], sizes = [32, 128], strides = [1, 1]} : vector<64x128xf32> to vector<32x128xf32>
    %86 = vector.extract_strided_slice %35 {offsets = [10, 0], sizes = [1, 128], strides = [1, 1]} : vector<32x128xf32> to vector<1x128xf32>
    %87 = vector.broadcast %86 : vector<1x128xf32> to vector<32x128xf32>
    %88 = arith.mulf %85, %87 : vector<32x128xf32>
    %89 = arith.addf %84, %88 : vector<32x128xf32>
    %90 = vector.extract_strided_slice %34 {offsets = [11, 0], sizes = [32, 128], strides = [1, 1]} : vector<64x128xf32> to vector<32x128xf32>
    %91 = vector.extract_strided_slice %35 {offsets = [11, 0], sizes = [1, 128], strides = [1, 1]} : vector<32x128xf32> to vector<1x128xf32>
    %92 = vector.broadcast %91 : vector<1x128xf32> to vector<32x128xf32>
    %93 = arith.mulf %90, %92 : vector<32x128xf32>
    %94 = arith.addf %89, %93 : vector<32x128xf32>
    %95 = vector.extract_strided_slice %34 {offsets = [12, 0], sizes = [32, 128], strides = [1, 1]} : vector<64x128xf32> to vector<32x128xf32>
    %96 = vector.extract_strided_slice %35 {offsets = [12, 0], sizes = [1, 128], strides = [1, 1]} : vector<32x128xf32> to vector<1x128xf32>
    %97 = vector.broadcast %96 : vector<1x128xf32> to vector<32x128xf32>
    %98 = arith.mulf %95, %97 : vector<32x128xf32>
    %99 = arith.addf %94, %98 : vector<32x128xf32>
    %100 = vector.extract_strided_slice %34 {offsets = [13, 0], sizes = [32, 128], strides = [1, 1]} : vector<64x128xf32> to vector<32x128xf32>
    %101 = vector.extract_strided_slice %35 {offsets = [13, 0], sizes = [1, 128], strides = [1, 1]} : vector<32x128xf32> to vector<1x128xf32>
    %102 = vector.broadcast %101 : vector<1x128xf32> to vector<32x128xf32>
    %103 = arith.mulf %100, %102 : vector<32x128xf32>
    %104 = arith.addf %99, %103 : vector<32x128xf32>
    %105 = vector.extract_strided_slice %34 {offsets = [14, 0], sizes = [32, 128], strides = [1, 1]} : vector<64x128xf32> to vector<32x128xf32>
    %106 = vector.extract_strided_slice %35 {offsets = [14, 0], sizes = [1, 128], strides = [1, 1]} : vector<32x128xf32> to vector<1x128xf32>
    %107 = vector.broadcast %106 : vector<1x128xf32> to vector<32x128xf32>
    %108 = arith.mulf %105, %107 : vector<32x128xf32>
    %109 = arith.addf %104, %108 : vector<32x128xf32>
    %110 = vector.extract_strided_slice %34 {offsets = [15, 0], sizes = [32, 128], strides = [1, 1]} : vector<64x128xf32> to vector<32x128xf32>
    %111 = vector.extract_strided_slice %35 {offsets = [15, 0], sizes = [1, 128], strides = [1, 1]} : vector<32x128xf32> to vector<1x128xf32>
    %112 = vector.broadcast %111 : vector<1x128xf32> to vector<32x128xf32>
    %113 = arith.mulf %110, %112 : vector<32x128xf32>
    %114 = arith.addf %109, %113 : vector<32x128xf32>
    %115 = vector.extract_strided_slice %34 {offsets = [16, 0], sizes = [32, 128], strides = [1, 1]} : vector<64x128xf32> to vector<32x128xf32>
    %116 = vector.extract_strided_slice %35 {offsets = [16, 0], sizes = [1, 128], strides = [1, 1]} : vector<32x128xf32> to vector<1x128xf32>
    %117 = vector.broadcast %116 : vector<1x128xf32> to vector<32x128xf32>
    %118 = arith.mulf %115, %117 : vector<32x128xf32>
    %119 = arith.addf %114, %118 : vector<32x128xf32>
    %120 = vector.extract_strided_slice %34 {offsets = [17, 0], sizes = [32, 128], strides = [1, 1]} : vector<64x128xf32> to vector<32x128xf32>
    %121 = vector.extract_strided_slice %35 {offsets = [17, 0], sizes = [1, 128], strides = [1, 1]} : vector<32x128xf32> to vector<1x128xf32>
    %122 = vector.broadcast %121 : vector<1x128xf32> to vector<32x128xf32>
    %123 = arith.mulf %120, %122 : vector<32x128xf32>
    %124 = arith.addf %119, %123 : vector<32x128xf32>
    %125 = vector.extract_strided_slice %34 {offsets = [18, 0], sizes = [32, 128], strides = [1, 1]} : vector<64x128xf32> to vector<32x128xf32>
    %126 = vector.extract_strided_slice %35 {offsets = [18, 0], sizes = [1, 128], strides = [1, 1]} : vector<32x128xf32> to vector<1x128xf32>
    %127 = vector.broadcast %126 : vector<1x128xf32> to vector<32x128xf32>
    %128 = arith.mulf %125, %127 : vector<32x128xf32>
    %129 = arith.addf %124, %128 : vector<32x128xf32>
    %130 = vector.extract_strided_slice %34 {offsets = [19, 0], sizes = [32, 128], strides = [1, 1]} : vector<64x128xf32> to vector<32x128xf32>
    %131 = vector.extract_strided_slice %35 {offsets = [19, 0], sizes = [1, 128], strides = [1, 1]} : vector<32x128xf32> to vector<1x128xf32>
    %132 = vector.broadcast %131 : vector<1x128xf32> to vector<32x128xf32>
    %133 = arith.mulf %130, %132 : vector<32x128xf32>
    %134 = arith.addf %129, %133 : vector<32x128xf32>
    %135 = vector.extract_strided_slice %34 {offsets = [20, 0], sizes = [32, 128], strides = [1, 1]} : vector<64x128xf32> to vector<32x128xf32>
    %136 = vector.extract_strided_slice %35 {offsets = [20, 0], sizes = [1, 128], strides = [1, 1]} : vector<32x128xf32> to vector<1x128xf32>
    %137 = vector.broadcast %136 : vector<1x128xf32> to vector<32x128xf32>
    %138 = arith.mulf %135, %137 : vector<32x128xf32>
    %139 = arith.addf %134, %138 : vector<32x128xf32>
    %140 = vector.extract_strided_slice %34 {offsets = [21, 0], sizes = [32, 128], strides = [1, 1]} : vector<64x128xf32> to vector<32x128xf32>
    %141 = vector.extract_strided_slice %35 {offsets = [21, 0], sizes = [1, 128], strides = [1, 1]} : vector<32x128xf32> to vector<1x128xf32>
    %142 = vector.broadcast %141 : vector<1x128xf32> to vector<32x128xf32>
    %143 = arith.mulf %140, %142 : vector<32x128xf32>
    %144 = arith.addf %139, %143 : vector<32x128xf32>
    %145 = vector.extract_strided_slice %34 {offsets = [22, 0], sizes = [32, 128], strides = [1, 1]} : vector<64x128xf32> to vector<32x128xf32>
    %146 = vector.extract_strided_slice %35 {offsets = [22, 0], sizes = [1, 128], strides = [1, 1]} : vector<32x128xf32> to vector<1x128xf32>
    %147 = vector.broadcast %146 : vector<1x128xf32> to vector<32x128xf32>
    %148 = arith.mulf %145, %147 : vector<32x128xf32>
    %149 = arith.addf %144, %148 : vector<32x128xf32>
    %150 = vector.extract_strided_slice %34 {offsets = [23, 0], sizes = [32, 128], strides = [1, 1]} : vector<64x128xf32> to vector<32x128xf32>
    %151 = vector.extract_strided_slice %35 {offsets = [23, 0], sizes = [1, 128], strides = [1, 1]} : vector<32x128xf32> to vector<1x128xf32>
    %152 = vector.broadcast %151 : vector<1x128xf32> to vector<32x128xf32>
    %153 = arith.mulf %150, %152 : vector<32x128xf32>
    %154 = arith.addf %149, %153 : vector<32x128xf32>
    %155 = vector.extract_strided_slice %34 {offsets = [24, 0], sizes = [32, 128], strides = [1, 1]} : vector<64x128xf32> to vector<32x128xf32>
    %156 = vector.extract_strided_slice %35 {offsets = [24, 0], sizes = [1, 128], strides = [1, 1]} : vector<32x128xf32> to vector<1x128xf32>
    %157 = vector.broadcast %156 : vector<1x128xf32> to vector<32x128xf32>
    %158 = arith.mulf %155, %157 : vector<32x128xf32>
    %159 = arith.addf %154, %158 : vector<32x128xf32>
    %160 = vector.extract_strided_slice %34 {offsets = [25, 0], sizes = [32, 128], strides = [1, 1]} : vector<64x128xf32> to vector<32x128xf32>
    %161 = vector.extract_strided_slice %35 {offsets = [25, 0], sizes = [1, 128], strides = [1, 1]} : vector<32x128xf32> to vector<1x128xf32>
    %162 = vector.broadcast %161 : vector<1x128xf32> to vector<32x128xf32>
    %163 = arith.mulf %160, %162 : vector<32x128xf32>
    %164 = arith.addf %159, %163 : vector<32x128xf32>
    %165 = vector.extract_strided_slice %34 {offsets = [26, 0], sizes = [32, 128], strides = [1, 1]} : vector<64x128xf32> to vector<32x128xf32>
    %166 = vector.extract_strided_slice %35 {offsets = [26, 0], sizes = [1, 128], strides = [1, 1]} : vector<32x128xf32> to vector<1x128xf32>
    %167 = vector.broadcast %166 : vector<1x128xf32> to vector<32x128xf32>
    %168 = arith.mulf %165, %167 : vector<32x128xf32>
    %169 = arith.addf %164, %168 : vector<32x128xf32>
    %170 = vector.extract_strided_slice %34 {offsets = [27, 0], sizes = [32, 128], strides = [1, 1]} : vector<64x128xf32> to vector<32x128xf32>
    %171 = vector.extract_strided_slice %35 {offsets = [27, 0], sizes = [1, 128], strides = [1, 1]} : vector<32x128xf32> to vector<1x128xf32>
    %172 = vector.broadcast %171 : vector<1x128xf32> to vector<32x128xf32>
    %173 = arith.mulf %170, %172 : vector<32x128xf32>
    %174 = arith.addf %169, %173 : vector<32x128xf32>
    %175 = vector.extract_strided_slice %34 {offsets = [28, 0], sizes = [32, 128], strides = [1, 1]} : vector<64x128xf32> to vector<32x128xf32>
    %176 = vector.extract_strided_slice %35 {offsets = [28, 0], sizes = [1, 128], strides = [1, 1]} : vector<32x128xf32> to vector<1x128xf32>
    %177 = vector.broadcast %176 : vector<1x128xf32> to vector<32x128xf32>
    %178 = arith.mulf %175, %177 : vector<32x128xf32>
    %179 = arith.addf %174, %178 : vector<32x128xf32>
    %180 = vector.extract_strided_slice %34 {offsets = [29, 0], sizes = [32, 128], strides = [1, 1]} : vector<64x128xf32> to vector<32x128xf32>
    %181 = vector.extract_strided_slice %35 {offsets = [29, 0], sizes = [1, 128], strides = [1, 1]} : vector<32x128xf32> to vector<1x128xf32>
    %182 = vector.broadcast %181 : vector<1x128xf32> to vector<32x128xf32>
    %183 = arith.mulf %180, %182 : vector<32x128xf32>
    %184 = arith.addf %179, %183 : vector<32x128xf32>
    %185 = vector.extract_strided_slice %34 {offsets = [30, 0], sizes = [32, 128], strides = [1, 1]} : vector<64x128xf32> to vector<32x128xf32>
    %186 = vector.extract_strided_slice %35 {offsets = [30, 0], sizes = [1, 128], strides = [1, 1]} : vector<32x128xf32> to vector<1x128xf32>
    %187 = vector.broadcast %186 : vector<1x128xf32> to vector<32x128xf32>
    %188 = arith.mulf %185, %187 : vector<32x128xf32>
    %189 = arith.addf %184, %188 : vector<32x128xf32>
    %190 = vector.extract_strided_slice %35 {offsets = [31, 0], sizes = [1, 128], strides = [1, 1]} : vector<32x128xf32> to vector<1x128xf32>
    %191 = vector.broadcast %190 : vector<1x128xf32> to vector<32x128xf32>
    %192 = arith.addf %189, %191 : vector<32x128xf32>
    %cst_17 = arith.constant 0.000000e+00 : f32
    %193 = vector.broadcast %cst_17 : f32 to vector<32x128xf32>
    %194 = arith.maximumf %192, %193 : vector<32x128xf32>
    %c0_18 = arith.constant 0 : index
    %c0_19 = arith.constant 0 : index
    %195 = vector.load %arg5[%c0_18, %c0_19] : memref<128x128xf32, #tpu.memory_space<vmem>>, vector<128x128xf32>
    %cst_20 = arith.constant dense<0.000000e+00> : vector<32x128xf32>
    %196 = tpu.matmul %194, %195, %cst_20 {dimension_numbers = #tpu.dot_dimension_numbers<[1], [0], [0], [1], [0, 0, 1, 1], [], []>} : vector<32x128xf32>, vector<128x128xf32>, vector<32x128xf32> -> vector<32x128xf32>
    %197 = vector.broadcast %7 : vector<1x128xf32> to vector<32x128xf32>
    %198 = arith.addf %196, %197 : vector<32x128xf32>
    %c0_21 = arith.constant 0 : index
    %c0_22 = arith.constant 0 : index
    %c0_23 = arith.constant 0 : index
    %199 = vector.load %arg8[%c0_21, %c0_22, %c0_23] : memref<1x32x128xf32, #tpu.memory_space<vmem>>, vector<1x32x128xf32>
    %200 = vector.shape_cast %199 : vector<1x32x128xf32> to vector<32x128xf32>
    %201 = vector.shape_cast %198 : vector<32x128xf32> to vector<1x32x128xf32>
    tpu.vector_store %arg8[%c0_21, %c0_22, %c0_23], %201 {strides = array<i32>} : memref<1x32x128xf32, #tpu.memory_space<vmem>>, vector<1x32x128xf32>,
    return
  }
  func.func @transform_0(%arg0: i32, %arg1: i32) -> (i32, i32, i32) {
    %c0_i32 = arith.constant 0 : i32
    %c0_i32_0 = arith.constant 0 : i32
    return %arg0, %arg1, %c0_i32 : i32, i32, i32
  }
  func.func @transform_1(%arg0: i32, %arg1: i32) -> (i32, i32, i32) {
    %c1_i32 = arith.constant 1 : i32
    %0 = arith.addi %arg1, %c1_i32 : i32
    %c1_i32_0 = arith.constant 1 : i32
    %1 = arith.muli %0, %c1_i32_0 : i32
    %c0_i32 = arith.constant 0 : i32
    %c0_i32_1 = arith.constant 0 : i32
    return %arg0, %1, %c0_i32 : i32, i32, i32
  }
  func.func @transform_2(%arg0: i32, %arg1: i32) -> (i32, i32) {
    %c0_i32 = arith.constant 0 : i32
    %c0_i32_0 = arith.constant 0 : i32
    %c0_i32_1 = arith.constant 0 : i32
    return %c0_i32, %c0_i32_0 : i32, i32
  }
  func.func @transform_3(%arg0: i32, %arg1: i32) -> (i32, i32) {
    %c0_i32 = arith.constant 0 : i32
    %c0_i32_0 = arith.constant 0 : i32
    %c0_i32_1 = arith.constant 0 : i32
    return %c0_i32, %c0_i32_0 : i32, i32
  }
  func.func @transform_4(%arg0: i32, %arg1: i32) -> (i32, i32) {
    %c0_i32 = arith.constant 0 : i32
    %c0_i32_0 = arith.constant 0 : i32
    %c0_i32_1 = arith.constant 0 : i32
    return %c0_i32, %c0_i32_0 : i32, i32
  }
  func.func @transform_5(%arg0: i32, %arg1: i32) -> (i32, i32) {
    %c0_i32 = arith.constant 0 : i32
    %c0_i32_0 = arith.constant 0 : i32
    %c0_i32_1 = arith.constant 0 : i32
    return %c0_i32, %c0_i32_0 : i32, i32
  }
  func.func @transform_6(%arg0: i32, %arg1: i32) -> (i32, i32, i32) {
    %c0_i32 = arith.constant 0 : i32
    %c0_i32_0 = arith.constant 0 : i32
    return %arg0, %arg1, %c0_i32 : i32, i32, i32
  }
}

</mosaic_0001>

<llo_original>
// kernel: tpu_custom_call.1
$region0: #{tpu_custom_call.1}
  #allocation0 [shape = 'u32[]', space=smem, size = 0x4, offset = 0x4, fixed_abs, tag = 'smem constant byte address 0x4 - core index']
  #allocation1 [shape = 'u32[144,128]{1,0:T(1,128)}', space=vmem, size = 0x12000, scoped, tag = 'internal scratch']
  %s0 = inlined_call_operand.hbm [shape: f32[2,96,128], index: 0, kind: input, shape index: {}]
  %s1 = inlined_call_operand.hbm [shape: f32[2,96,128], index: 1, kind: input, shape index: {}]
  %s2 = inlined_call_operand.hbm [shape: f32[128,256], index: 2, kind: input, shape index: {}]
  %s3 = inlined_call_operand.hbm [shape: f32[128,128], index: 3, kind: input, shape index: {}]
  %s4 = inlined_call_operand.vmem [shape: f32[8,128], index: 4, kind: input, shape index: {}]
  %s5 = inlined_call_operand.hbm [shape: f32[32,128], index: 5, kind: input, shape index: {}]
  %s6 = inlined_call_operand.hbm [shape: f32[2,64,128], index: 6, kind: output, shape index: {}]
  %s7 = sld [smem:[#allocation0]]
  $region77: #{tpu_custom_call.1} parent=0
    _
  %s9 = ssub.s32 1, %s7
  %s10 = scalar_select 0, %s9, %s7
  $region1: #{tpu_custom_call.1} parent=0
    #allocation2 [shape = 'u8[32768]{0}', space=vmem, size = 0x8000, scoped, tag = 'input window, operand 0']
    #allocation3 [shape = 's32[2]{0}', space=sflag, size = 0x8, scoped, tag = 'scoped memory for tpu_custom_call.1']
    #allocation4 [shape = 's32[2]{0}', space=sflag, size = 0x8, scoped, tag = 'scoped memory for tpu_custom_call.1']
    #allocation5 [shape = 'u8[32768]{0}', space=vmem, size = 0x8000, scoped, tag = 'input window, operand 1']
    #allocation6 [shape = 's32[2]{0}', space=sflag, size = 0x8, scoped, tag = 'scoped memory for tpu_custom_call.1']
    #allocation7 [shape = 'u8[131072]{0}', space=vmem, size = 0x20000, scoped, tag = 'input window, operand 2, single buffered']
    #allocation8 [shape = 'u8[65536]{0}', space=vmem, size = 0x10000, scoped, tag = 'input window, operand 3, single buffered']
    #allocation9 [shape = 's32[1]{0}', space=sflag, size = 0x4, scoped, tag = 'scoped memory for tpu_custom_call.1']
    #allocation10 [shape = 'u8[16384]{0}', space=vmem, size = 0x4000, scoped, tag = 'input window, operand 5, single buffered']
    #allocation11 [shape = 'u8[32768]{0}', space=vmem, size = 0x8000, scoped, tag = 'output window, operand 0']
    %11 = vsyncpa [#allocation3], 0
    %s12 = scalar_lea.sflag [#allocation3], 1
    %13 = vsyncpa %s12, 0
    %14 = vsyncpa [#allocation6], 0
    %s15 = scalar_lea.sflag [#allocation6], 1
    %16 = vsyncpa %s15, 0
    %17 = vsyncpa [#allocation9], 0
    %18 = vsyncpa [#allocation4], 0
    %s19 = scalar_lea.sflag [#allocation4], 1
    %20 = vsyncpa %s19, 0
    loop: start=0, step=1, limit=6
    $region2: #{tpu_custom_call.1} parent=1 // loop_pre_header
      _
    $region3: #{tpu_custom_call.1} parent=1 // loop_header
      %s22 = sphi 0, %s26
      %p23 = scmp.ge.s32.totalorder %s22, 6
      %s29 = sphi 0, %s41
      %s30 = sphi 0, %s37
      %s31 = sphi 0, %s29
      %s32 = sphi 0, %s30
      %s33 = sphi 0, %s31
      %s34 = sphi 0, %s32
      %s46 = sphi 0, %s48
      %s49 = sphi 0, %s46
      %s50 = sphi 0, %s49
      %s66 = sphi 0, %s50
      %s76 = sphi 0, %s78
      %s79 = sphi 0, %s76
      %s80 = sphi 0, %s79
      %s96 = sphi 0, %s80
      %s100 = sphi 0, %s100
      %s102 = sphi 0, %s100
      %s103 = sphi 0, %s102
      %s117 = sphi 0, %s103
      %s121 = sphi 0, %s121
      %s123 = sphi 0, %s121
      %s124 = sphi 0, %s123
      %s138 = sphi 0, %s124
      %s142 = sphi 0, %s142
      %s144 = sphi 0, %s142
      %s145 = sphi 0, %s144
      %s159 = sphi 0, %s145
      %s163 = sphi 0, %s163
      %s165 = sphi 0, %s163
      %s166 = sphi 0, %s165
      %s180 = sphi 0, %s166
      %s188 = sphi 0, %s190
      %s191 = sphi 0, %s188
      %s192 = sphi 0, %s191
      %s208 = sphi 0, %s192
    $region4: #{tpu_custom_call.1} parent=1 // loop_header_branch
      %25 = sbr.rel (%p23) target = $region8
    $region5: #{tpu_custom_call.1} parent=1 // loop_body
      %s27 = ssub.s32 %s22, 1
      %s28 = ssub.s32 %s22, 2
      %s35 = sadd.s32 1, %s30
      %p36 = scmp.ge.s32.totalorder %s35, 2
      %s37 = scalar_select %p36, 0, %s35
      %s38 = sadd.s32 1, %s29
      %s39 = scalar_select %p36, %s38, %s29
      %p40 = scmp.ge.s32.totalorder %s39, 2
      %s41 = scalar_select %p40, 0, %s39
      %s42 = ssub.s32 %s29, %s41
      %s43 = ssub.s32 %s30, %s37
      %s44 = sor.u32 %s42, %s43
      %p45 = scmp.eq.s32.totalorder %s44, 0
      %s47 = sadd.s32 %s46, 1
      %s48 = scalar_select %p45, %s46, %s47
      %p51 = pneg %p45
      %p52 = scmp.eq.s32.totalorder %s22, 3
      %p53 = por %p51, %p52
      %p54 = scmp.ne.s32.totalorder %s46, %s49
      %p55 = scmp.eq.s32.totalorder %s22, 0
      %p56 = por %p54, %p55
      %p57 = scmp.ne.s32.totalorder %s46, %s49
      %p58 = scmp.eq.s32.totalorder %s27, 3
      %p59 = por %p57, %p58
      %p60 = scmp.ne.s32.totalorder %s49, %s50
      %p61 = scmp.eq.s32.totalorder %s27, 0
      %p62 = por %p60, %p61
      %p63 = scmp.ne.s32.totalorder %s49, %s50
      %p64 = scmp.eq.s32.totalorder %s28, 3
      %p65 = por %p63, %p64
      %p67 = scmp.ne.s32.totalorder %s50, %s66
      %p68 = scmp.eq.s32.totalorder %s28, 0
      %p69 = por %p67, %p68
      %s70 = sadd.s32 %s30, 1
      %s71 = sadd.s32 %s37, 1
      %s72 = ssub.s32 %s29, %s41
      %s73 = ssub.s32 %s70, %s71
      %s74 = sor.u32 %s72, %s73
      %p75 = scmp.eq.s32.totalorder %s74, 0
      %s77 = sadd.s32 %s76, 1
      %s78 = scalar_select %p75, %s76, %s77
      %p81 = pneg %p75
      %p82 = scmp.eq.s32.totalorder %s22, 3
      %p83 = por %p81, %p82
      %p84 = scmp.ne.s32.totalorder %s76, %s79
      %p85 = scmp.eq.s32.totalorder %s22, 0
      %p86 = por %p84, %p85
      %p87 = scmp.ne.s32.totalorder %s76, %s79
      %p88 = scmp.eq.s32.totalorder %s27, 3
      %p89 = por %p87, %p88
      %p90 = scmp.ne.s32.totalorder %s79, %s80
      %p91 = scmp.eq.s32.totalorder %s27, 0
      %p92 = por %p90, %p91
      %p93 = scmp.ne.s32.totalorder %s79, %s80
      %p94 = scmp.eq.s32.totalorder %s28, 3
      %p95 = por %p93, %p94
      %p97 = scmp.ne.s32.totalorder %s80, %s96
      %p98 = scmp.eq.s32.totalorder %s28, 0
      %p99 = por %p97, %p98
      %s101 = sadd.s32 %s100, 1
      %p104 = scmp.eq.s32.totalorder %s22, 3
      %p105 = scmp.ne.s32.totalorder %s100, %s102
      %p106 = scmp.eq.s32.totalorder %s22, 0
      %p107 = por %p105, %p106
      %p108 = scmp.ne.s32.totalorder %s100, %s102
      %p109 = scmp.eq.s32.totalorder %s27, 3
      %p110 = por %p108, %p109
      %p111 = scmp.ne.s32.totalorder %s102, %s103
      %p112 = scmp.eq.s32.totalorder %s27, 0
      %p113 = por %p111, %p112
      %p114 = scmp.ne.s32.totalorder %s102, %s103
      %p115 = scmp.eq.s32.totalorder %s28, 3
      %p116 = por %p114, %p115
      %p118 = scmp.ne.s32.totalorder %s103, %s117
      %p119 = scmp.eq.s32.totalorder %s28, 0
      %p120 = por %p118, %p119
      %s122 = sadd.s32 %s121, 1
      %p125 = scmp.eq.s32.totalorder %s22, 3
      %p126 = scmp.ne.s32.totalorder %s121, %s123
      %p127 = scmp.eq.s32.totalorder %s22, 0
      %p128 = por %p126, %p127
      %p129 = scmp.ne.s32.totalorder %s121, %s123
      %p130 = scmp.eq.s32.totalorder %s27, 3
      %p131 = por %p129, %p130
      %p132 = scmp.ne.s32.totalorder %s123, %s124
      %p133 = scmp.eq.s32.totalorder %s27, 0
      %p134 = por %p132, %p133
      %p135 = scmp.ne.s32.totalorder %s123, %s124
      %p136 = scmp.eq.s32.totalorder %s28, 3
      %p137 = por %p135, %p136
      %p139 = scmp.ne.s32.totalorder %s124, %s138
      %p140 = scmp.eq.s32.totalorder %s28, 0
      %p141 = por %p139, %p140
      %s143 = sadd.s32 %s142, 1
      %p146 = scmp.eq.s32.totalorder %s22, 3
      %p147 = scmp.ne.s32.totalorder %s142, %s144
      %p148 = scmp.eq.s32.totalorder %s22, 0
      %p149 = por %p147, %p148
      %p150 = scmp.ne.s32.totalorder %s142, %s144
      %p151 = scmp.eq.s32.totalorder %s27, 3
      %p152 = por %p150, %p151
      %p153 = scmp.ne.s32.totalorder %s144, %s145
      %p154 = scmp.eq.s32.totalorder %s27, 0
      %p155 = por %p153, %p154
      %p156 = scmp.ne.s32.totalorder %s144, %s145
      %p157 = scmp.eq.s32.totalorder %s28, 3
      %p158 = por %p156, %p157
      %p160 = scmp.ne.s32.totalorder %s145, %s159
      %p161 = scmp.eq.s32.totalorder %s28, 0
      %p162 = por %p160, %p161
      %s164 = sadd.s32 %s163, 1
      %p167 = scmp.eq.s32.totalorder %s22, 3
      %p168 = scmp.ne.s32.totalorder %s163, %s165
      %p169 = scmp.eq.s32.totalorder %s22, 0
      %p170 = por %p168, %p169
      %p171 = scmp.ne.s32.totalorder %s163, %s165
      %p172 = scmp.eq.s32.totalorder %s27, 3
      %p173 = por %p171, %p172
      %p174 = scmp.ne.s32.totalorder %s165, %s166
      %p175 = scmp.eq.s32.totalorder %s27, 0
      %p176 = por %p174, %p175
      %p177 = scmp.ne.s32.totalorder %s165, %s166
      %p178 = scmp.eq.s32.totalorder %s28, 3
      %p179 = por %p177, %p178
      %p181 = scmp.ne.s32.totalorder %s166, %s180
      %p182 = scmp.eq.s32.totalorder %s28, 0
      %p183 = por %p181, %p182
      %s184 = ssub.s32 %s29, %s41
      %s185 = ssub.s32 %s30, %s37
      %s186 = sor.u32 %s184, %s185
      %p187 = scmp.eq.s32.totalorder %s186, 0
      %s189 = sadd.s32 %s188, 1
      %s190 = scalar_select %p187, %s188, %s189
      %p193 = pneg %p187
      %p194 = scmp.eq.s32.totalorder %s22, 3
      %p195 = por %p193, %p194
      %p196 = scmp.ne.s32.totalorder %s188, %s191
      %p197 = scmp.eq.s32.totalorder %s22, 0
      %p198 = por %p196, %p197
      %p199 = scmp.ne.s32.totalorder %s188, %s191
      %p200 = scmp.eq.s32.totalorder %s27, 3
      %p201 = por %p199, %p200
      %p202 = scmp.ne.s32.totalorder %s191, %s192
      %p203 = scmp.eq.s32.totalorder %s27, 0
      %p204 = por %p202, %p203
      %p205 = scmp.ne.s32.totalorder %s191, %s192
      %p206 = scmp.eq.s32.totalorder %s28, 3
      %p207 = por %p205, %p206
      %p209 = scmp.ne.s32.totalorder %s192, %s208
      %p210 = scmp.eq.s32.totalorder %s28, 0
      %p211 = por %p209, %p210
      %p212 = scmp.le.s32.totalorder 1, %s22
      %p213 = scmp.lt.s32.totalorder %s22, 5
      %p214 = pnand %p212, %p213
      %p215 = pneg %p214
      // Predicated region
      $region9: #{tpu_custom_call.1} parent=5 // pred_check
        _
      $region10: #{tpu_custom_call.1} parent=5 // pred_check_branch
        %217 = sbr.rel (%p214) target = $region12
      $region11: #{tpu_custom_call.1} parent=5 // pred_region
        %s218 = ssub.s32 %s22, 1
        // Predicated region
        $region13: #{tpu_custom_call.1} parent=11 // pred_check
          %p219 = pneg %p113
        $region14: #{tpu_custom_call.1} parent=11 // pred_check_branch
          %221 = sbr.rel (%p219) target = $region16
        $region15: #{tpu_custom_call.1} parent=11 // pred_region
          %s223 = ssub.s32 4096, 4096
          %224 = vsyncadd [#allocation6], %s223
          %s225 = sshll.u32 [#allocation7], 4
          %s226 = int_to_ptr.vmem [resolvable:$true] %s225
          %231 = dma.hbm_to_vmem [thread:$0]  %s2, 4096, %s226, [#allocation6], 256, 256, 16
        $region16: #{tpu_custom_call.1} parent=11 // pred_fallthru
          _
        // Predicated region
        $region17: #{tpu_custom_call.1} parent=11 // pred_check
          %p232 = pneg %p134
        $region18: #{tpu_custom_call.1} parent=11 // pred_check_branch
          %234 = sbr.rel (%p232) target = $region20
        $region19: #{tpu_custom_call.1} parent=11 // pred_region
          %s236 = ssub.s32 2048, 2048
          %237 = vsyncadd [#allocation9], %s236
          %s238 = sshll.u32 [#allocation8], 4
          %s239 = int_to_ptr.vmem [resolvable:$true] %s238
          %244 = dma.hbm_to_vmem [thread:$0]  %s3, 2048, %s239, [#allocation9], 128, 128, 8
        $region20: #{tpu_custom_call.1} parent=11 // pred_fallthru
          _
        // Predicated region
        $region21: #{tpu_custom_call.1} parent=11 // pred_check
          %p245 = pneg %p155
        $region22: #{tpu_custom_call.1} parent=11 // pred_check_branch
          %247 = sbr.rel (%p245) target = $region24
        $region23: #{tpu_custom_call.1} parent=11 // pred_region
          _
        $region24: #{tpu_custom_call.1} parent=11 // pred_fallthru
          _
        // Predicated region
        $region25: #{tpu_custom_call.1} parent=11 // pred_check
          %p248 = pneg %p176
        $region26: #{tpu_custom_call.1} parent=11 // pred_check_branch
          %250 = sbr.rel (%p248) target = $region28
        $region27: #{tpu_custom_call.1} parent=11 // pred_region
          %s252 = ssub.s32 512, 512
          %253 = vsyncadd [#allocation9], %s252
          %s254 = sshll.u32 [#allocation10], 4
          %s255 = int_to_ptr.vmem [resolvable:$true] %s254
          %260 = dma.hbm_to_vmem [thread:$0]  %s5, 512, %s255, [#allocation9], 128, 128, 8
        $region28: #{tpu_custom_call.1} parent=11 // pred_fallthru
          _
      $region12: #{tpu_custom_call.1} parent=5 // pred_fallthru
        _
      %p261 = scmp.lt.s32.totalorder %s22, 4
      // Predicated region
      $region29: #{tpu_custom_call.1} parent=5 // pred_check
        %p262 = pneg %p261
      $region30: #{tpu_custom_call.1} parent=5 // pred_check_branch
        %264 = sbr.rel (%p262) target = $region32
      $region31: #{tpu_custom_call.1} parent=5 // pred_region
        // Predicated region
        $region33: #{tpu_custom_call.1} parent=31 // pred_check
          %p265 = pneg %p56
        $region34: #{tpu_custom_call.1} parent=31 // pred_check_branch
          %267 = sbr.rel (%p265) target = $region36
        $region35: #{tpu_custom_call.1} parent=31 // pred_region
          %s268 = sand.u32 %s46, 1
          %s269 = scalar_lea.sflag [#allocation3], %s268
          %s270 = sand.u32 %s46, 1
          %s271 = smul.addr %s270, 32
          %s272 = scalar_lea.vmem [#allocation2], %s271
          %s273 = smul.u32 4, %s30
          %s275 = ssub.s32 512, 512
          %276 = vsyncadd %s269, %s275
          %s277 = smul.addr %s29, 12
          %s278 = sadd.s32 %s273, %s277
          %s279 = smul.addr %s278, 128
          %s280 = scalar_lea.hbm %s0, %s279
          %s281 = sshll.u32 %s272, 4
          %s282 = int_to_ptr.vmem [resolvable:$true] %s281
          %287 = dma.hbm_to_vmem [thread:$0]  %s280, 512, %s282, %s269, 128, 128, 8
        $region36: #{tpu_custom_call.1} parent=31 // pred_fallthru
          _
        // Predicated region
        $region37: #{tpu_custom_call.1} parent=31 // pred_check
          %p288 = pneg %p86
        $region38: #{tpu_custom_call.1} parent=31 // pred_check_branch
          %290 = sbr.rel (%p288) target = $region40
        $region39: #{tpu_custom_call.1} parent=31 // pred_region
          %s291 = sand.u32 %s22, 1
          %s292 = scalar_lea.sflag [#allocation6], %s291
          %s293 = sand.u32 %s76, 1
          %s294 = smul.addr %s293, 32
          %s295 = scalar_lea.vmem [#allocation5], %s294
          %s296 = sadd.s32 %s30, 1
          %s297 = smul.u32 4, %s296
          %s299 = ssub.s32 512, 512
          %300 = vsyncadd %s292, %s299
          %s301 = smul.addr %s29, 12
          %s302 = sadd.s32 %s297, %s301
          %s303 = smul.addr %s302, 128
          %s304 = scalar_lea.hbm %s1, %s303
          %s305 = sshll.u32 %s295, 4
          %s306 = int_to_ptr.vmem [resolvable:$true] %s305
          %311 = dma.hbm_to_vmem [thread:$0]  %s304, 512, %s306, %s292, 128, 128, 8
        $region40: #{tpu_custom_call.1} parent=31 // pred_fallthru
          _
      $region32: #{tpu_custom_call.1} parent=5 // pred_fallthru
        _
      %p312 = scmp.le.s32.totalorder 1, %s22
      %p313 = scmp.lt.s32.totalorder %s22, 5
      %p314 = pnand %p312, %p313
      %p315 = pneg %p314
      // Predicated region
      $region41: #{tpu_custom_call.1} parent=5 // pred_check
        _
      $region42: #{tpu_custom_call.1} parent=5 // pred_check_branch
        %317 = sbr.rel (%p314) target = $region44
      $region43: #{tpu_custom_call.1} parent=5 // pred_region
        %s318 = ssub.s32 %s22, 1
        %s319 = sand.u32 %s49, 1
        %s320 = scalar_lea.sflag [#allocation3], %s319
        %s321 = sand.u32 %s49, 1
        %s322 = smul.addr %s321, 32
        %s323 = scalar_lea.vmem [#allocation2], %s322
        // Predicated region
        $region45: #{tpu_custom_call.1} parent=43 // pred_check
          %p324 = pneg %p62
        $region46: #{tpu_custom_call.1} parent=43 // pred_check_branch
          %326 = sbr.rel (%p324) target = $region48
        $region47: #{tpu_custom_call.1} parent=43 // pred_region
          %327 = dma.done %s320, 512
        $region48: #{tpu_custom_call.1} parent=43 // pred_fallthru
          _
        %s328 = sand.u32 %s27, 1
        %s329 = scalar_lea.sflag [#allocation6], %s328
        %s330 = sand.u32 %s79, 1
        %s331 = smul.addr %s330, 32
        %s332 = scalar_lea.vmem [#allocation5], %s331
        // Predicated region
        $region49: #{tpu_custom_call.1} parent=43 // pred_check
          %p333 = pneg %p92
        $region50: #{tpu_custom_call.1} parent=43 // pred_check_branch
          %335 = sbr.rel (%p333) target = $region52
        $region51: #{tpu_custom_call.1} parent=43 // pred_region
          %336 = dma.done %s329, 512
        $region52: #{tpu_custom_call.1} parent=43 // pred_fallthru
          _
        // Predicated region
        $region53: #{tpu_custom_call.1} parent=43 // pred_check
          %p337 = pneg %p113
        $region54: #{tpu_custom_call.1} parent=43 // pred_check_branch
          %339 = sbr.rel (%p337) target = $region56
        $region55: #{tpu_custom_call.1} parent=43 // pred_region
          %340 = dma.done [#allocation6], 4096
        $region56: #{tpu_custom_call.1} parent=43 // pred_fallthru
          _
        // Predicated region
        $region57: #{tpu_custom_call.1} parent=43 // pred_check
          %p341 = pneg %p134
        $region58: #{tpu_custom_call.1} parent=43 // pred_check_branch
          %343 = sbr.rel (%p341) target = $region60
        $region59: #{tpu_custom_call.1} parent=43 // pred_region
          %344 = dma.done [#allocation9], 2048
        $region60: #{tpu_custom_call.1} parent=43 // pred_fallthru
          _
        // Predicated region
        $region61: #{tpu_custom_call.1} parent=43 // pred_check
          %p345 = pneg %p176
        $region62: #{tpu_custom_call.1} parent=43 // pred_check_branch
          %347 = sbr.rel (%p345) target = $region64
        $region63: #{tpu_custom_call.1} parent=43 // pred_region
          %348 = dma.done [#allocation9], 512
        $region64: #{tpu_custom_call.1} parent=43 // pred_fallthru
          _
        %s349 = sand.u32 %s49, 1
        %s350 = scalar_lea.sflag [#allocation3], %s349
        %s351 = sand.u32 %s49, 1
        %s352 = smul.addr %s351, 32
        %s353 = scalar_lea.vmem [#allocation2], %s352
        %p354 = pneg %p62
        %p355 = pneg %p59
        %s356 = sand.u32 %s27, 1
        %s357 = scalar_lea.sflag [#allocation6], %s356
        %s358 = sand.u32 %s79, 1
        %s359 = smul.addr %s358, 32
        %s360 = scalar_lea.vmem [#allocation5], %s359
        %p361 = pneg %p92
        %p362 = pneg %p89
        %p363 = pneg %p113
        %p364 = pneg %p110
        %p365 = pneg %p134
        %p366 = pneg %p131
        %p367 = pneg %p155
        %p368 = pneg %p152
        %p369 = pneg %p176
        %p370 = pneg %p173
        %p371 = pneg %p204
        %p372 = pneg %p201
        %s373 = sand.u32 %s191, 1
        %s374 = scalar_lea.sflag [#allocation4], %s373
        %s375 = sand.u32 %s191, 1
        %s376 = smul.addr %s375, 32
        %s377 = scalar_lea.vmem [#allocation11], %s376
        %s378 = smul.u32 4, %s32
        %s379 = sadd.s32 %s32, 1
        %s380 = smul.u32 4, %s379
        %s381 = smul.u32 4, %s32
        %v382 = vld [vmem:[%s323] sm:$0xff]
        %v383 = vld [vmem:[%s323 + $0x8] sm:$0xff]
        %v384 = vld [vmem:[%s323 + $0x10] sm:$0xff]
        %v385 = vld [vmem:[%s323 + $0x18] sm:$0xff]
        %v386 = vld [vmem:[%s332] sm:$0xff]
        %v387 = vld [vmem:[%s332 + $0x8] sm:$0xff]
        %v388 = vld [vmem:[%s332 + $0x10] sm:$0xff]
        %v389 = vld [vmem:[%s332 + $0x18] sm:$0xff]
        %v390 = vld [vmem:[%s4] sm:$0x1]
        %v391 = vld [vmem:[%s4 + $0x1] sm:$0x1]
        %v392 = vld [vmem:[%s4 + $0x2] sm:$0x1]
        %v393 = vld [vmem:[#allocation7] sm:$0xff]
        %v394 = vld [vmem:[#allocation7 + $0x10] sm:$0xff]
        %v395 = vld [vmem:[#allocation7 + $0x20] sm:$0xff]
        %v396 = vld [vmem:[#allocation7 + $0x30] sm:$0xff]
        %v397 = vld [vmem:[#allocation7 + $0x40] sm:$0xff]
        %v398 = vld [vmem:[#allocation7 + $0x50] sm:$0xff]
        %v399 = vld [vmem:[#allocation7 + $0x60] sm:$0xff]
        %v400 = vld [vmem:[#allocation7 + $0x70] sm:$0xff]
        %v401 = vld [vmem:[#allocation7 + $0x80] sm:$0xff]
        %v402 = vld [vmem:[#allocation7 + $0x90] sm:$0xff]
        %v403 = vld [vmem:[#allocation7 + $0xa0] sm:$0xff]
        %v404 = vld [vmem:[#allocation7 + $0xb0] sm:$0xff]
        %v405 = vld [vmem:[#allocation7 + $0xc0] sm:$0xff]
        %v406 = vld [vmem:[#allocation7 + $0xd0] sm:$0xff]
        %v407 = vld [vmem:[#allocation7 + $0xe0] sm:$0xff]
        %v408 = vld [vmem:[#allocation7 + $0xf0] sm:$0xff]
        %v409 = vlaneseq
        %v410 = vshrl.u32 %v409, 7
        %v411 = vsub.s32 0, %v410
        %v412 = vrot.slane %v390, %v411
        %413 = vmatprep.subr.mxu0 0.0
        %414 = vmatpush1.msra.mxu0 %v393
        %415 = vmatprep.subr.mxu0 0.0
        %416 = vmatpush1.msra.mxu0 %v394
        %417 = vmatprep.subr.mxu0 0.0
        %418 = vmatpush1.msra.mxu0 %v395
        %419 = vmatprep.subr.mxu0 0.0
        %420 = vmatpush1.msra.mxu0 %v396
        %421 = vmatprep.subr.mxu0 0.0
        %422 = vmatpush1.msra.mxu0 %v397
        %423 = vmatprep.subr.mxu0 0.0
        %424 = vmatpush1.msra.mxu0 %v398
        %425 = vmatprep.subr.mxu0 0.0
        %426 = vmatpush1.msra.mxu0 %v399
        %427 = vmatprep.subr.mxu0 0.0
        %428 = vmatpush1.msra.mxu0 %v400
        %429 = vmatprep.subr.mxu0 0.0
        %430 = vmatpush1.msra.mxu0 %v401
        %431 = vmatprep.subr.mxu0 0.0
        %432 = vmatpush1.msra.mxu0 %v402
        %433 = vmatprep.subr.mxu0 0.0
        %434 = vmatpush1.msra.mxu0 %v403
        %435 = vmatprep.subr.mxu0 0.0
        %436 = vmatpush1.msra.mxu0 %v404
        %437 = vmatprep.subr.mxu0 0.0
        %438 = vmatpush1.msra.mxu0 %v405
        %439 = vmatprep.subr.mxu0 0.0
        %440 = vmatpush1.msra.mxu0 %v406
        %441 = vmatprep.subr.mxu0 0.0
        %442 = vmatpush1.msra.mxu0 %v407
        %443 = vmatprep.subr.mxu0 0.0
        %444 = vmatpush1.msra.mxu0 %v408
        %445 = vmatprep.subr.mxu0 0.0
        %446 = vmatpush1.msra.mxu0 0.0
        %447 = vmatprep.subr.mxu0 0.0
        %448 = vmatpush1.msra.mxu0 0.0
        %449 = vmatprep.subr.mxu0 0.0
        %450 = vmatpush1.msra.mxu0 0.0
        %451 = vmatprep.subr.mxu0 0.0
        %452 = vmatpush1.msra.mxu0 0.0
        %453 = vmatprep.subr.mxu0 0.0
        %454 = vmatpush1.msra.mxu0 0.0
        %455 = vmatprep.subr.mxu0 0.0
        %456 = vmatpush1.msra.mxu0 0.0
        %457 = vmatprep.subr.mxu0 0.0
        %458 = vmatpush1.msra.mxu0 0.0
        %459 = vmatprep.subr.mxu0 0.0
        %460 = vmatpush1.msra.mxu0 0.0
        %461 = vmatprep.subr.mxu0 0.0
        %462 = vmatpush1.msra.mxu0 0.0
        %463 = vmatprep.subr.mxu0 0.0
        %464 = vmatpush1.msra.mxu0 0.0
        %465 = vmatprep.subr.mxu0 0.0
        %466 = vmatpush1.msra.mxu0 0.0
        %467 = vmatprep.subr.mxu0 0.0
        %468 = vmatpush1.msra.mxu0 0.0
        %469 = vmatprep.subr.mxu0 0.0
        %470 = vmatpush1.msra.mxu0 0.0
        %471 = vmatprep.subr.mxu0 0.0
        %472 = vmatpush1.msra.mxu0 0.0
        %473 = vmatprep.subr.mxu0 0.0
        %474 = vmatpush1.msra.mxu0 0.0
        %475 = vmatprep.subr.mxu0 0.0
        %476 = vmatpush1.msra.mxu0 0.0
        %477 = vmatprep.mubr.f32.mxu0 0.0
        %478 = vmatmul.mubr.f32.gmra.mrb[0].mxu0 %v382
        %v479 = vpop.f32.mrb[0].mxu0
        %v480 = vadd.f32 %v412, %v479
        %v481 = vpop.f32.mrb[0].mxu0
        %482 = vmatprep.mubr.f32.mxu0 0.0
        %483 = vmatmul.mubr.f32.gmra.mrb[0].mxu0 %v383
        %v484 = vpop.f32.mrb[0].mxu0
        %v485 = vadd.f32 %v412, %v484
        %v486 = vpop.f32.mrb[0].mxu0
        %487 = vmatprep.mubr.f32.mxu0 0.0
        %488 = vmatmul.mubr.f32.gmra.mrb[0].mxu0 %v384
        %v489 = vpop.f32.mrb[0].mxu0
        %v490 = vadd.f32 %v412, %v489
        %v491 = vpop.f32.mrb[0].mxu0
        %492 = vmatprep.mubr.f32.mxu0 0.0
        %493 = vmatmul.mubr.f32.gmra.mrb[0].mxu0 %v385
        %v494 = vpop.f32.mrb[0].mxu0
        %v495 = vadd.f32 %v412, %v494
        %v496 = vpop.f32.mrb[0].mxu0
        %497 = vmatprep.mubr.f32.mxu0 0.0
        %498 = vmatmul.mubr.f32.gmra.mrb[0].mxu0 %v386
        %v499 = vpop.f32.mrb[0].mxu0
        %v500 = vadd.f32 %v412, %v499
        %v501 = vpop.f32.mrb[0].mxu0
        %502 = vmatprep.mubr.f32.mxu0 0.0
        %503 = vmatmul.mubr.f32.gmra.mrb[0].mxu0 %v387
        %v504 = vpop.f32.mrb[0].mxu0
        %v505 = vadd.f32 %v412, %v504
        %v506 = vpop.f32.mrb[0].mxu0
        %507 = vmatprep.mubr.f32.mxu0 0.0
        %508 = vmatmul.mubr.f32.gmra.mrb[0].mxu0 %v388
        %v509 = vpop.f32.mrb[0].mxu0
        %v510 = vadd.f32 %v412, %v509
        %v511 = vpop.f32.mrb[0].mxu0
        %512 = vmatprep.mubr.f32.mxu0 0.0
        %513 = vmatmul.mubr.f32.gmra.mrb[0].mxu0 %v389
        %v514 = vpop.f32.mrb[0].mxu0
        %v515 = vadd.f32 %v412, %v514
        %v516 = vpop.f32.mrb[0].mxu0
        %517 = vdwg.mxu0
        %v518 = vld [vmem:[#allocation7 + $0x8] sm:$0xff]
        %v519 = vld [vmem:[#allocation7 + $0x18] sm:$0xff]
        %v520 = vld [vmem:[#allocation7 + $0x28] sm:$0xff]
        %v521 = vld [vmem:[#allocation7 + $0x38] sm:$0xff]
        %v522 = vld [vmem:[#allocation7 + $0x48] sm:$0xff]
        %v523 = vld [vmem:[#allocation7 + $0x58] sm:$0xff]
        %v524 = vld [vmem:[#allocation7 + $0x68] sm:$0xff]
        %v525 = vld [vmem:[#allocation7 + $0x78] sm:$0xff]
        %v526 = vld [vmem:[#allocation7 + $0x88] sm:$0xff]
        %v527 = vld [vmem:[#allocation7 + $0x98] sm:$0xff]
        %v528 = vld [vmem:[#allocation7 + $0xa8] sm:$0xff]
        %v529 = vld [vmem:[#allocation7 + $0xb8] sm:$0xff]
        %v530 = vld [vmem:[#allocation7 + $0xc8] sm:$0xff]
        %v531 = vld [vmem:[#allocation7 + $0xd8] sm:$0xff]
        %v532 = vld [vmem:[#allocation7 + $0xe8] sm:$0xff]
        %v533 = vld [vmem:[#allocation7 + $0xf8] sm:$0xff]
        %v534 = vlaneseq
        %v535 = vshrl.u32 %v534, 7
        %v536 = vsub.s32 0, %v535
        %v537 = vrot.slane %v391, %v536
        %538 = vmatprep.subr.mxu0 0.0
        %539 = vmatpush1.msra.mxu0 %v518
        %540 = vmatprep.subr.mxu0 0.0
        %541 = vmatpush1.msra.mxu0 %v519
        %542 = vmatprep.subr.mxu0 0.0
        %543 = vmatpush1.msra.mxu0 %v520
        %544 = vmatprep.subr.mxu0 0.0
        %545 = vmatpush1.msra.mxu0 %v521
        %546 = vmatprep.subr.mxu0 0.0
        %547 = vmatpush1.msra.mxu0 %v522
        %548 = vmatprep.subr.mxu0 0.0
        %549 = vmatpush1.msra.mxu0 %v523
        %550 = vmatprep.subr.mxu0 0.0
        %551 = vmatpush1.msra.mxu0 %v524
        %552 = vmatprep.subr.mxu0 0.0
        %553 = vmatpush1.msra.mxu0 %v525
        %554 = vmatprep.subr.mxu0 0.0
        %555 = vmatpush1.msra.mxu0 %v526
        %556 = vmatprep.subr.mxu0 0.0
        %557 = vmatpush1.msra.mxu0 %v527
        %558 = vmatprep.subr.mxu0 0.0
        %559 = vmatpush1.msra.mxu0 %v528
        %560 = vmatprep.subr.mxu0 0.0
        %561 = vmatpush1.msra.mxu0 %v529
        %562 = vmatprep.subr.mxu0 0.0
        %563 = vmatpush1.msra.mxu0 %v530
        %564 = vmatprep.subr.mxu0 0.0
        %565 = vmatpush1.msra.mxu0 %v531
        %566 = vmatprep.subr.mxu0 0.0
        %567 = vmatpush1.msra.mxu0 %v532
        %568 = vmatprep.subr.mxu0 0.0
        %569 = vmatpush1.msra.mxu0 %v533
        %570 = vmatprep.subr.mxu0 0.0
        %571 = vmatpush1.msra.mxu0 0.0
        %572 = vmatprep.subr.mxu0 0.0
        %573 = vmatpush1.msra.mxu0 0.0
        %574 = vmatprep.subr.mxu0 0.0
        %575 = vmatpush1.msra.mxu0 0.0
        %576 = vmatprep.subr.mxu0 0.0
        %577 = vmatpush1.msra.mxu0 0.0
        %578 = vmatprep.subr.mxu0 0.0
        %579 = vmatpush1.msra.mxu0 0.0
        %580 = vmatprep.subr.mxu0 0.0
        %581 = vmatpush1.msra.mxu0 0.0
        %582 = vmatprep.subr.mxu0 0.0
        %583 = vmatpush1.msra.mxu0 0.0
        %584 = vmatprep.subr.mxu0 0.0
        %585 = vmatpush1.msra.mxu0 0.0
        %586 = vmatprep.subr.mxu0 0.0
        %587 = vmatpush1.msra.mxu0 0.0
        %588 = vmatprep.subr.mxu0 0.0
        %589 = vmatpush1.msra.mxu0 0.0
        %590 = vmatprep.subr.mxu0 0.0
        %591 = vmatpush1.msra.mxu0 0.0
        %592 = vmatprep.subr.mxu0 0.0
        %593 = vmatpush1.msra.mxu0 0.0
        %594 = vmatprep.subr.mxu0 0.0
        %595 = vmatpush1.msra.mxu0 0.0
        %596 = vmatprep.subr.mxu0 0.0
        %597 = vmatpush1.msra.mxu0 0.0
        %598 = vmatprep.subr.mxu0 0.0
        %599 = vmatpush1.msra.mxu0 0.0
        %600 = vmatprep.subr.mxu0 0.0
        %601 = vmatpush1.msra.mxu0 0.0
        %602 = vmatprep.mubr.f32.mxu0 0.0
        %603 = vmatmul.mubr.f32.gmra.mrb[0].mxu0 %v382
        %v604 = vpop.f32.mrb[0].mxu0
        %v605 = vadd.f32 %v537, %v604
        %v606 = vpop.f32.mrb[0].mxu0
        %607 = vmatprep.mubr.f32.mxu0 0.0
        %608 = vmatmul.mubr.f32.gmra.mrb[0].mxu0 %v383
        %v609 = vpop.f32.mrb[0].mxu0
        %v610 = vadd.f32 %v537, %v609
        %v611 = vpop.f32.mrb[0].mxu0
        %612 = vmatprep.mubr.f32.mxu0 0.0
        %613 = vmatmul.mubr.f32.gmra.mrb[0].mxu0 %v384
        %v614 = vpop.f32.mrb[0].mxu0
        %v615 = vadd.f32 %v537, %v614
        %v616 = vpop.f32.mrb[0].mxu0
        %617 = vmatprep.mubr.f32.mxu0 0.0
        %618 = vmatmul.mubr.f32.gmra.mrb[0].mxu0 %v385
        %v619 = vpop.f32.mrb[0].mxu0
        %v620 = vadd.f32 %v537, %v619
        %v621 = vpop.f32.mrb[0].mxu0
        %622 = vmatprep.mubr.f32.mxu0 0.0
        %623 = vmatmul.mubr.f32.gmra.mrb[0].mxu0 %v386
        %v624 = vpop.f32.mrb[0].mxu0
        %v625 = vadd.f32 %v537, %v624
        %v626 = vpop.f32.mrb[0].mxu0
        %627 = vmatprep.mubr.f32.mxu0 0.0
        %628 = vmatmul.mubr.f32.gmra.mrb[0].mxu0 %v387
        %v629 = vpop.f32.mrb[0].mxu0
        %v630 = vadd.f32 %v537, %v629
        %v631 = vpop.f32.mrb[0].mxu0
        %632 = vmatprep.mubr.f32.mxu0 0.0
        %633 = vmatmul.mubr.f32.gmra.mrb[0].mxu0 %v388
        %v634 = vpop.f32.mrb[0].mxu0
        %v635 = vadd.f32 %v537, %v634
        %v636 = vpop.f32.mrb[0].mxu0
        %637 = vmatprep.mubr.f32.mxu0 0.0
        %638 = vmatmul.mubr.f32.gmra.mrb[0].mxu0 %v389
        %v639 = vpop.f32.mrb[0].mxu0
        %v640 = vadd.f32 %v537, %v639
        %v641 = vpop.f32.mrb[0].mxu0
        %642 = vdwg.mxu0
        %v643 = vxor.u32 %v605, 2147483648
        %v644 = vxor.u32 %v610, 2147483648
        %v645 = vxor.u32 %v615, 2147483648
        %v646 = vxor.u32 %v620, 2147483648
        %v647 = vxor.u32 %v625, 2147483648
        %v648 = vxor.u32 %v630, 2147483648
        %v649 = vxor.u32 %v635, 2147483648
        %v650 = vxor.u32 %v640, 2147483648
        %v651 = vmul.f32 %v643, 1.442695
        %v652 = vpow.pop %v651
        %v653 = vmul.f32 %v644, 1.442695
        %v654 = vpow.pop %v653
        %v655 = vmul.f32 %v645, 1.442695
        %v656 = vpow.pop %v655
        %v657 = vmul.f32 %v646, 1.442695
        %v658 = vpow.pop %v657
        %v659 = vmul.f32 %v647, 1.442695
        %v660 = vpow.pop %v659
        %v661 = vmul.f32 %v648, 1.442695
        %v662 = vpow.pop %v661
        %v663 = vmul.f32 %v649, 1.442695
        %v664 = vpow.pop %v663
        %v665 = vmul.f32 %v650, 1.442695
        %v666 = vpow.pop %v665
        %v667 = vadd.f32 %v652, 1.0
        %v668 = vadd.f32 %v654, 1.0
        %v669 = vadd.f32 %v656, 1.0
        %v670 = vadd.f32 %v658, 1.0
        %v671 = vadd.f32 %v660, 1.0
        %v672 = vadd.f32 %v662, 1.0
        %v673 = vadd.f32 %v664, 1.0
        %v674 = vadd.f32 %v666, 1.0
        %v675 = vrcp.pop %v667
        %v676 = vmul.f32 1.0, %v675
        %v677 = vrcp.pop %v668
        %v678 = vmul.f32 1.0, %v677
        %v679 = vrcp.pop %v669
        %v680 = vmul.f32 1.0, %v679
        %v681 = vrcp.pop %v670
        %v682 = vmul.f32 1.0, %v681
        %v683 = vrcp.pop %v671
        %v684 = vmul.f32 1.0, %v683
        %v685 = vrcp.pop %v672
        %v686 = vmul.f32 1.0, %v685
        %v687 = vrcp.pop %v673
        %v688 = vmul.f32 1.0, %v687
        %v689 = vrcp.pop %v674
        %v690 = vmul.f32 1.0, %v689
        %v691 = vmul.f32 %v480, %v676
        %v692 = vmul.f32 %v485, %v678
        %v693 = vmul.f32 %v490, %v680
        %v694 = vmul.f32 %v495, %v682
        %v695 = vmul.f32 %v500, %v684
        %v696 = vmul.f32 %v505, %v686
        %v697 = vmul.f32 %v510, %v688
        %v698 = vmul.f32 %v515, %v690
        %v699 = vlaneseq
        %v700 = vshrl.u32 %v699, 7
        %v701 = vadd.s32 %v700, 8
        %v702 = vadd.s32 %v700, 16
        %v703 = vadd.s32 %v700, 24
        %v704 = vadd.s32 %v700, 32
        %v705 = vadd.s32 %v700, 40
        %v706 = vadd.s32 %v700, 48
        %v707 = vadd.s32 %v700, 56
        %s708 = smul.u32 %s32, 32
        %v709 = vstv %s708
        %v710 = vadd.s32 %v700, %v709
        %v711 = vadd.s32 %v701, %v709
        %v712 = vadd.s32 %v702, %v709
        %v713 = vadd.s32 %v703, %v709
        %v714 = vadd.s32 %v704, %v709
        %v715 = vadd.s32 %v705, %v709
        %v716 = vadd.s32 %v706, %v709
        %v717 = vadd.s32 %v707, %v709
        %vm718 = vcmp.ge.s32.totalorder %v710, 15
        %vm719 = vcmp.ge.s32.totalorder %v711, 15
        %vm720 = vcmp.ge.s32.totalorder %v712, 15
        %vm721 = vcmp.ge.s32.totalorder %v713, 15
        %vm722 = vcmp.ge.s32.totalorder %v714, 15
        %vm723 = vcmp.ge.s32.totalorder %v715, 15
        %vm724 = vcmp.ge.s32.totalorder %v716, 15
        %vm725 = vcmp.ge.s32.totalorder %v717, 15
        %vm726 = vcmp.lt.s32.totalorder %v710, 79
        %vm727 = vcmp.lt.s32.totalorder %v711, 79
        %vm728 = vcmp.lt.s32.totalorder %v712, 79
        %vm729 = vcmp.lt.s32.totalorder %v713, 79
        %vm730 = vcmp.lt.s32.totalorder %v714, 79
        %vm731 = vcmp.lt.s32.totalorder %v715, 79
        %vm732 = vcmp.lt.s32.totalorder %v716, 79
        %vm733 = vcmp.lt.s32.totalorder %v717, 79
        %vm734 = vmand %vm718, %vm726
        %vm735 = vmand %vm719, %vm727
        %vm736 = vmand %vm720, %vm728
        %vm737 = vmand %vm721, %vm729
        %vm738 = vmand %vm722, %vm730
        %vm739 = vmand %vm723, %vm731
        %vm740 = vmand %vm724, %vm732
        %vm741 = vmand %vm725, %vm733
        %v742 = vsel %vm734, 1, 0
        %v743 = vsel %vm735, 1, 0
        %v744 = vsel %vm736, 1, 0
        %v745 = vsel %vm737, 1, 0
        %v746 = vsel %vm738, 1, 0
        %v747 = vsel %vm739, 1, 0
        %v748 = vsel %vm740, 1, 0
        %v749 = vsel %vm741, 1, 0
        %vm750 = vcmp.eq.s32.totalorder %v742, 1
        %vm751 = vcmp.eq.s32.totalorder %v743, 1
        %vm752 = vcmp.eq.s32.totalorder %v744, 1
        %vm753 = vcmp.eq.s32.totalorder %v745, 1
        %vm754 = vcmp.eq.s32.totalorder %v746, 1
        %vm755 = vcmp.eq.s32.totalorder %v747, 1
        %vm756 = vcmp.eq.s32.totalorder %v748, 1
        %vm757 = vcmp.eq.s32.totalorder %v749, 1
        %v758 = vsel %vm750, %v691, 0.0
        %v759 = vsel %vm751, %v692, 0.0
        %v760 = vsel %vm752, %v693, 0.0
        %v761 = vsel %vm753, %v694, 0.0
        %v762 = vsel %vm754, %v695, 0.0
        %v763 = vsel %vm755, %v696, 0.0
        %v764 = vsel %vm756, %v697, 0.0
        %v765 = vsel %vm757, %v698, 0.0
        %v766 = vld [vmem:[#allocation10] sm:$0xff]
        %v767 = vld [vmem:[#allocation10 + $0x8] sm:$0xff]
        %v768 = vld [vmem:[#allocation10 + $0x10] sm:$0xff]
        %v769 = vld [vmem:[#allocation10 + $0x18] sm:$0xff]
        %v770 = vlaneseq
        %v771 = vshrl.u32 %v770, 7
        %v772 = vsub.s32 0, %v771
        %v773 = vrot.slane %v766, %v772
        %v774 = vmul.f32 %v758, %v773
        %v775 = vmul.f32 %v759, %v773
        %v776 = vmul.f32 %v760, %v773
        %v777 = vmul.f32 %v761, %v773
        %v778 = vlaneseq
        %v779 = vshrl.u32 %v778, 7
        %v780 = vsub.s32 1, %v779
        %v781 = vrot.slane %v766, %v780
        %v782 = vmul.f32 %v758, %v781
        %v783 = vmul.f32 %v759, %v781
        %v784 = vmul.f32 %v760, %v781
        %v785 = vmul.f32 %v761, %v781
        %v786 = vmul.f32 %v762, %v781
        %vm792 = vcmask 1046528
        %v793 = vrot.slane %v782, 1
        %v794 = vrot.slane %v783, 1
        %v795 = vsel %vm792, %v793, %v794
        %v796 = vrot.slane %v784, 1
        %v797 = vsel %vm792, %v794, %v796
        %v798 = vrot.slane %v785, 1
        %v799 = vsel %vm792, %v796, %v798
        %v800 = vrot.slane %v786, 1
        %v801 = vsel %vm792, %v798, %v800
        %v806 = vadd.f32 %v774, %v795
        %v807 = vadd.f32 %v775, %v797
        %v808 = vadd.f32 %v776, %v799
        %v809 = vadd.f32 %v777, %v801
        %v810 = vlaneseq
        %v811 = vshrl.u32 %v810, 7
        %v812 = vsub.s32 2, %v811
        %v813 = vrot.slane %v766, %v812
        %v814 = vmul.f32 %v758, %v813
        %v815 = vmul.f32 %v759, %v813
        %v816 = vmul.f32 %v760, %v813
        %v817 = vmul.f32 %v761, %v813
        %v818 = vmul.f32 %v762, %v813
        %vm824 = vcmask 1045504
        %v825 = vrot.slane %v814, 2
        %v826 = vrot.slane %v815, 2
        %v827 = vsel %vm824, %v825, %v826
        %v828 = vrot.slane %v816, 2
        %v829 = vsel %vm824, %v826, %v828
        %v830 = vrot.slane %v817, 2
        %v831 = vsel %vm824, %v828, %v830
        %v832 = vrot.slane %v818, 2
        %v833 = vsel %vm824, %v830, %v832
        %v838 = vadd.f32 %v806, %v827
        %v839 = vadd.f32 %v807, %v829
        %v840 = vadd.f32 %v808, %v831
        %v841 = vadd.f32 %v809, %v833
        %v842 = vlaneseq
        %v843 = vshrl.u32 %v842, 7
        %v844 = vsub.s32 3, %v843
        %v845 = vrot.slane %v766, %v844
        %v846 = vmul.f32 %v758, %v845
        %v847 = vmul.f32 %v759, %v845
        %v848 = vmul.f32 %v760, %v845
        %v849 = vmul.f32 %v761, %v845
        %v850 = vmul.f32 %v762, %v845
        %vm856 = vcmask 1044480
        %v857 = vrot.slane %v846, 3
        %v858 = vrot.slane %v847, 3
        %v859 = vsel %vm856, %v857, %v858
        %v860 = vrot.slane %v848, 3
        %v861 = vsel %vm856, %v858, %v860
        %v862 = vrot.slane %v849, 3
        %v863 = vsel %vm856, %v860, %v862
        %v864 = vrot.slane %v850, 3
        %v865 = vsel %vm856, %v862, %v864
        %v870 = vadd.f32 %v838, %v859
        %v871 = vadd.f32 %v839, %v861
        %v872 = vadd.f32 %v840, %v863
        %v873 = vadd.f32 %v841, %v865
        %v874 = vlaneseq
        %v875 = vshrl.u32 %v874, 7
        %v876 = vsub.s32 4, %v875
        %v877 = vrot.slane %v766, %v876
        %v878 = vmul.f32 %v758, %v877
        %v879 = vmul.f32 %v759, %v877
        %v880 = vmul.f32 %v760, %v877
        %v881 = vmul.f32 %v761, %v877
        %v882 = vmul.f32 %v762, %v877
        %vm888 = vcmask 1043456
        %v889 = vrot.slane %v878, 4
        %v890 = vrot.slane %v879, 4
        %v891 = vsel %vm888, %v889, %v890
        %v892 = vrot.slane %v880, 4
        %v893 = vsel %vm888, %v890, %v892
        %v894 = vrot.slane %v881, 4
        %v895 = vsel %vm888, %v892, %v894
        %v896 = vrot.slane %v882, 4
        %v897 = vsel %vm888, %v894, %v896
        %v902 = vadd.f32 %v870, %v891
        %v903 = vadd.f32 %v871, %v893
        %v904 = vadd.f32 %v872, %v895
        %v905 = vadd.f32 %v873, %v897
        %v906 = vlaneseq
        %v907 = vshrl.u32 %v906, 7
        %v908 = vsub.s32 5, %v907
        %v909 = vrot.slane %v766, %v908
        %v910 = vmul.f32 %v758, %v909
        %v911 = vmul.f32 %v759, %v909
        %v912 = vmul.f32 %v760, %v909
        %v913 = vmul.f32 %v761, %v909
        %v914 = vmul.f32 %v762, %v909
        %vm920 = vcmask 1042432
        %v921 = vrot.slane %v910, 5
        %v922 = vrot.slane %v911, 5
        %v923 = vsel %vm920, %v921, %v922
        %v924 = vrot.slane %v912, 5
        %v925 = vsel %vm920, %v922, %v924
        %v926 = vrot.slane %v913, 5
        %v927 = vsel %vm920, %v924, %v926
        %v928 = vrot.slane %v914, 5
        %v929 = vsel %vm920, %v926, %v928
        %v934 = vadd.f32 %v902, %v923
        %v935 = vadd.f32 %v903, %v925
        %v936 = vadd.f32 %v904, %v927
        %v937 = vadd.f32 %v905, %v929
        %v938 = vlaneseq
        %v939 = vshrl.u32 %v938, 7
        %v940 = vsub.s32 6, %v939
        %v941 = vrot.slane %v766, %v940
        %v942 = vmul.f32 %v758, %v941
        %v943 = vmul.f32 %v759, %v941
        %v944 = vmul.f32 %v760, %v941
        %v945 = vmul.f32 %v761, %v941
        %v946 = vmul.f32 %v762, %v941
        %vm952 = vcmask 1041408
        %v953 = vrot.slane %v942, 6
        %v954 = vrot.slane %v943, 6
        %v955 = vsel %vm952, %v953, %v954
        %v956 = vrot.slane %v944, 6
        %v957 = vsel %vm952, %v954, %v956
        %v958 = vrot.slane %v945, 6
        %v959 = vsel %vm952, %v956, %v958
        %v960 = vrot.slane %v946, 6
        %v961 = vsel %vm952, %v958, %v960
        %v966 = vadd.f32 %v934, %v955
        %v967 = vadd.f32 %v935, %v957
        %v968 = vadd.f32 %v936, %v959
        %v969 = vadd.f32 %v937, %v961
        %v970 = vlaneseq
        %v971 = vshrl.u32 %v970, 7
        %v972 = vsub.s32 7, %v971
        %v973 = vrot.slane %v766, %v972
        %v974 = vmul.f32 %v758, %v973
        %v975 = vmul.f32 %v759, %v973
        %v976 = vmul.f32 %v760, %v973
        %v977 = vmul.f32 %v761, %v973
        %v978 = vmul.f32 %v762, %v973
        %vm984 = vcmask 1040384
        %v985 = vrot.slane %v974, 7
        %v986 = vrot.slane %v975, 7
        %v987 = vsel %vm984, %v985, %v986
        %v988 = vrot.slane %v976, 7
        %v989 = vsel %vm984, %v986, %v988
        %v990 = vrot.slane %v977, 7
        %v991 = vsel %vm984, %v988, %v990
        %v992 = vrot.slane %v978, 7
        %v993 = vsel %vm984, %v990, %v992
        %v998 = vadd.f32 %v966, %v987
        %v999 = vadd.f32 %v967, %v989
        %v1000 = vadd.f32 %v968, %v991
        %v1001 = vadd.f32 %v969, %v993
        %v1002 = vlaneseq
        %v1003 = vshrl.u32 %v1002, 7
        %v1004 = vsub.s32 0, %v1003
        %v1005 = vrot.slane %v767, %v1004
        %v1006 = vmul.f32 %v759, %v1005
        %v1007 = vmul.f32 %v760, %v1005
        %v1008 = vmul.f32 %v761, %v1005
        %v1009 = vmul.f32 %v762, %v1005
        %v1010 = vadd.f32 %v998, %v1006
        %v1011 = vadd.f32 %v999, %v1007
        %v1012 = vadd.f32 %v1000, %v1008
        %v1013 = vadd.f32 %v1001, %v1009
        %v1014 = vlaneseq
        %v1015 = vshrl.u32 %v1014, 7
        %v1016 = vsub.s32 1, %v1015
        %v1017 = vrot.slane %v767, %v1016
        %v1018 = vmul.f32 %v759, %v1017
        %v1019 = vmul.f32 %v760, %v1017
        %v1020 = vmul.f32 %v761, %v1017
        %v1021 = vmul.f32 %v762, %v1017
        %v1022 = vmul.f32 %v763, %v1017
        %v1028 = vrot.slane %v1018, 1
        %v1029 = vrot.slane %v1019, 1
        %v1030 = vsel %vm792, %v1028, %v1029
        %v1031 = vrot.slane %v1020, 1
        %v1032 = vsel %vm792, %v1029, %v1031
        %v1033 = vrot.slane %v1021, 1
        %v1034 = vsel %vm792, %v1031, %v1033
        %v1035 = vrot.slane %v1022, 1
        %v1036 = vsel %vm792, %v1033, %v1035
        %v1041 = vadd.f32 %v1010, %v1030
        %v1042 = vadd.f32 %v1011, %v1032
        %v1043 = vadd.f32 %v1012, %v1034
        %v1044 = vadd.f32 %v1013, %v1036
        %v1045 = vlaneseq
        %v1046 = vshrl.u32 %v1045, 7
        %v1047 = vsub.s32 2, %v1046
        %v1048 = vrot.slane %v767, %v1047
        %v1049 = vmul.f32 %v759, %v1048
        %v1050 = vmul.f32 %v760, %v1048
        %v1051 = vmul.f32 %v761, %v1048
        %v1052 = vmul.f32 %v762, %v1048
        %v1053 = vmul.f32 %v763, %v1048
        %v1059 = vrot.slane %v1049, 2
        %v1060 = vrot.slane %v1050, 2
        %v1061 = vsel %vm824, %v1059, %v1060
        %v1062 = vrot.slane %v1051, 2
        %v1063 = vsel %vm824, %v1060, %v1062
        %v1064 = vrot.slane %v1052, 2
        %v1065 = vsel %vm824, %v1062, %v1064
        %v1066 = vrot.slane %v1053, 2
        %v1067 = vsel %vm824, %v1064, %v1066
        %v1072 = vadd.f32 %v1041, %v1061
        %v1073 = vadd.f32 %v1042, %v1063
        %v1074 = vadd.f32 %v1043, %v1065
        %v1075 = vadd.f32 %v1044, %v1067
        %v1076 = vlaneseq
        %v1077 = vshrl.u32 %v1076, 7
        %v1078 = vsub.s32 3, %v1077
        %v1079 = vrot.slane %v767, %v1078
        %v1080 = vmul.f32 %v759, %v1079
        %v1081 = vmul.f32 %v760, %v1079
        %v1082 = vmul.f32 %v761, %v1079
        %v1083 = vmul.f32 %v762, %v1079
        %v1084 = vmul.f32 %v763, %v1079
        %v1090 = vrot.slane %v1080, 3
        %v1091 = vrot.slane %v1081, 3
        %v1092 = vsel %vm856, %v1090, %v1091
        %v1093 = vrot.slane %v1082, 3
        %v1094 = vsel %vm856, %v1091, %v1093
        %v1095 = vrot.slane %v1083, 3
        %v1096 = vsel %vm856, %v1093, %v1095
        %v1097 = vrot.slane %v1084, 3
        %v1098 = vsel %vm856, %v1095, %v1097
        %v1103 = vadd.f32 %v1072, %v1092
        %v1104 = vadd.f32 %v1073, %v1094
        %v1105 = vadd.f32 %v1074, %v1096
        %v1106 = vadd.f32 %v1075, %v1098
        %v1107 = vlaneseq
        %v1108 = vshrl.u32 %v1107, 7
        %v1109 = vsub.s32 4, %v1108
        %v1110 = vrot.slane %v767, %v1109
        %v1111 = vmul.f32 %v759, %v1110
        %v1112 = vmul.f32 %v760, %v1110
        %v1113 = vmul.f32 %v761, %v1110
        %v1114 = vmul.f32 %v762, %v1110
        %v1115 = vmul.f32 %v763, %v1110
        %v1121 = vrot.slane %v1111, 4
        %v1122 = vrot.slane %v1112, 4
        %v1123 = vsel %vm888, %v1121, %v1122
        %v1124 = vrot.slane %v1113, 4
        %v1125 = vsel %vm888, %v1122, %v1124
        %v1126 = vrot.slane %v1114, 4
        %v1127 = vsel %vm888, %v1124, %v1126
        %v1128 = vrot.slane %v1115, 4
        %v1129 = vsel %vm888, %v1126, %v1128
        %v1134 = vadd.f32 %v1103, %v1123
        %v1135 = vadd.f32 %v1104, %v1125
        %v1136 = vadd.f32 %v1105, %v1127
        %v1137 = vadd.f32 %v1106, %v1129
        %v1138 = vlaneseq
        %v1139 = vshrl.u32 %v1138, 7
        %v1140 = vsub.s32 5, %v1139
        %v1141 = vrot.slane %v767, %v1140
        %v1142 = vmul.f32 %v759, %v1141
        %v1143 = vmul.f32 %v760, %v1141
        %v1144 = vmul.f32 %v761, %v1141
        %v1145 = vmul.f32 %v762, %v1141
        %v1146 = vmul.f32 %v763, %v1141
        %v1152 = vrot.slane %v1142, 5
        %v1153 = vrot.slane %v1143, 5
        %v1154 = vsel %vm920, %v1152, %v1153
        %v1155 = vrot.slane %v1144, 5
        %v1156 = vsel %vm920, %v1153, %v1155
        %v1157 = vrot.slane %v1145, 5
        %v1158 = vsel %vm920, %v1155, %v1157
        %v1159 = vrot.slane %v1146, 5
        %v1160 = vsel %vm920, %v1157, %v1159
        %v1165 = vadd.f32 %v1134, %v1154
        %v1166 = vadd.f32 %v1135, %v1156
        %v1167 = vadd.f32 %v1136, %v1158
        %v1168 = vadd.f32 %v1137, %v1160
        %v1169 = vlaneseq
        %v1170 = vshrl.u32 %v1169, 7
        %v1171 = vsub.s32 6, %v1170
        %v1172 = vrot.slane %v767, %v1171
        %v1173 = vmul.f32 %v759, %v1172
        %v1174 = vmul.f32 %v760, %v1172
        %v1175 = vmul.f32 %v761, %v1172
        %v1176 = vmul.f32 %v762, %v1172
        %v1177 = vmul.f32 %v763, %v1172
        %v1183 = vrot.slane %v1173, 6
        %v1184 = vrot.slane %v1174, 6
        %v1185 = vsel %vm952, %v1183, %v1184
        %v1186 = vrot.slane %v1175, 6
        %v1187 = vsel %vm952, %v1184, %v1186
        %v1188 = vrot.slane %v1176, 6
        %v1189 = vsel %vm952, %v1186, %v1188
        %v1190 = vrot.slane %v1177, 6
        %v1191 = vsel %vm952, %v1188, %v1190
        %v1196 = vadd.f32 %v1165, %v1185
        %v1197 = vadd.f32 %v1166, %v1187
        %v1198 = vadd.f32 %v1167, %v1189
        %v1199 = vadd.f32 %v1168, %v1191
        %v1200 = vlaneseq
        %v1201 = vshrl.u32 %v1200, 7
        %v1202 = vsub.s32 7, %v1201
        %v1203 = vrot.slane %v767, %v1202
        %v1204 = vmul.f32 %v759, %v1203
        %v1205 = vmul.f32 %v760, %v1203
        %v1206 = vmul.f32 %v761, %v1203
        %v1207 = vmul.f32 %v762, %v1203
        %v1208 = vmul.f32 %v763, %v1203
        %v1214 = vrot.slane %v1204, 7
        %v1215 = vrot.slane %v1205, 7
        %v1216 = vsel %vm984, %v1214, %v1215
        %v1217 = vrot.slane %v1206, 7
        %v1218 = vsel %vm984, %v1215, %v1217
        %v1219 = vrot.slane %v1207, 7
        %v1220 = vsel %vm984, %v1217, %v1219
        %v1221 = vrot.slane %v1208, 7
        %v1222 = vsel %vm984, %v1219, %v1221
        %v1227 = vadd.f32 %v1196, %v1216
        %v1228 = vadd.f32 %v1197, %v1218
        %v1229 = vadd.f32 %v1198, %v1220
        %v1230 = vadd.f32 %v1199, %v1222
        %v1231 = vlaneseq
        %v1232 = vshrl.u32 %v1231, 7
        %v1233 = vsub.s32 0, %v1232
        %v1234 = vrot.slane %v768, %v1233
        %v1235 = vmul.f32 %v760, %v1234
        %v1236 = vmul.f32 %v761, %v1234
        %v1237 = vmul.f32 %v762, %v1234
        %v1238 = vmul.f32 %v763, %v1234
        %v1239 = vadd.f32 %v1227, %v1235
        %v1240 = vadd.f32 %v1228, %v1236
        %v1241 = vadd.f32 %v1229, %v1237
        %v1242 = vadd.f32 %v1230, %v1238
        %v1243 = vlaneseq
        %v1244 = vshrl.u32 %v1243, 7
        %v1245 = vsub.s32 1, %v1244
        %v1246 = vrot.slane %v768, %v1245
        %v1247 = vmul.f32 %v760, %v1246
        %v1248 = vmul.f32 %v761, %v1246
        %v1249 = vmul.f32 %v762, %v1246
        %v1250 = vmul.f32 %v763, %v1246
        %v1251 = vmul.f32 %v764, %v1246
        %v1257 = vrot.slane %v1247, 1
        %v1258 = vrot.slane %v1248, 1
        %v1259 = vsel %vm792, %v1257, %v1258
        %v1260 = vrot.slane %v1249, 1
        %v1261 = vsel %vm792, %v1258, %v1260
        %v1262 = vrot.slane %v1250, 1
        %v1263 = vsel %vm792, %v1260, %v1262
        %v1264 = vrot.slane %v1251, 1
        %v1265 = vsel %vm792, %v1262, %v1264
        %v1270 = vadd.f32 %v1239, %v1259
        %v1271 = vadd.f32 %v1240, %v1261
        %v1272 = vadd.f32 %v1241, %v1263
        %v1273 = vadd.f32 %v1242, %v1265
        %v1274 = vlaneseq
        %v1275 = vshrl.u32 %v1274, 7
        %v1276 = vsub.s32 2, %v1275
        %v1277 = vrot.slane %v768, %v1276
        %v1278 = vmul.f32 %v760, %v1277
        %v1279 = vmul.f32 %v761, %v1277
        %v1280 = vmul.f32 %v762, %v1277
        %v1281 = vmul.f32 %v763, %v1277
        %v1282 = vmul.f32 %v764, %v1277
        %v1288 = vrot.slane %v1278, 2
        %v1289 = vrot.slane %v1279, 2
        %v1290 = vsel %vm824, %v1288, %v1289
        %v1291 = vrot.slane %v1280, 2
        %v1292 = vsel %vm824, %v1289, %v1291
        %v1293 = vrot.slane %v1281, 2
        %v1294 = vsel %vm824, %v1291, %v1293
        %v1295 = vrot.slane %v1282, 2
        %v1296 = vsel %vm824, %v1293, %v1295
        %v1301 = vadd.f32 %v1270, %v1290
        %v1302 = vadd.f32 %v1271, %v1292
        %v1303 = vadd.f32 %v1272, %v1294
        %v1304 = vadd.f32 %v1273, %v1296
        %v1305 = vlaneseq
        %v1306 = vshrl.u32 %v1305, 7
        %v1307 = vsub.s32 3, %v1306
        %v1308 = vrot.slane %v768, %v1307
        %v1309 = vmul.f32 %v760, %v1308
        %v1310 = vmul.f32 %v761, %v1308
        %v1311 = vmul.f32 %v762, %v1308
        %v1312 = vmul.f32 %v763, %v1308
        %v1313 = vmul.f32 %v764, %v1308
        %v1319 = vrot.slane %v1309, 3
        %v1320 = vrot.slane %v1310, 3
        %v1321 = vsel %vm856, %v1319, %v1320
        %v1322 = vrot.slane %v1311, 3
        %v1323 = vsel %vm856, %v1320, %v1322
        %v1324 = vrot.slane %v1312, 3
        %v1325 = vsel %vm856, %v1322, %v1324
        %v1326 = vrot.slane %v1313, 3
        %v1327 = vsel %vm856, %v1324, %v1326
        %v1332 = vadd.f32 %v1301, %v1321
        %v1333 = vadd.f32 %v1302, %v1323
        %v1334 = vadd.f32 %v1303, %v1325
        %v1335 = vadd.f32 %v1304, %v1327
        %v1336 = vlaneseq
        %v1337 = vshrl.u32 %v1336, 7
        %v1338 = vsub.s32 4, %v1337
        %v1339 = vrot.slane %v768, %v1338
        %v1340 = vmul.f32 %v760, %v1339
        %v1341 = vmul.f32 %v761, %v1339
        %v1342 = vmul.f32 %v762, %v1339
        %v1343 = vmul.f32 %v763, %v1339
        %v1344 = vmul.f32 %v764, %v1339
        %v1350 = vrot.slane %v1340, 4
        %v1351 = vrot.slane %v1341, 4
        %v1352 = vsel %vm888, %v1350, %v1351
        %v1353 = vrot.slane %v1342, 4
        %v1354 = vsel %vm888, %v1351, %v1353
        %v1355 = vrot.slane %v1343, 4
        %v1356 = vsel %vm888, %v1353, %v1355
        %v1357 = vrot.slane %v1344, 4
        %v1358 = vsel %vm888, %v1355, %v1357
        %v1363 = vadd.f32 %v1332, %v1352
        %v1364 = vadd.f32 %v1333, %v1354
        %v1365 = vadd.f32 %v1334, %v1356
        %v1366 = vadd.f32 %v1335, %v1358
        %v1367 = vlaneseq
        %v1368 = vshrl.u32 %v1367, 7
        %v1369 = vsub.s32 5, %v1368
        %v1370 = vrot.slane %v768, %v1369
        %v1371 = vmul.f32 %v760, %v1370
        %v1372 = vmul.f32 %v761, %v1370
        %v1373 = vmul.f32 %v762, %v1370
        %v1374 = vmul.f32 %v763, %v1370
        %v1375 = vmul.f32 %v764, %v1370
        %v1381 = vrot.slane %v1371, 5
        %v1382 = vrot.slane %v1372, 5
        %v1383 = vsel %vm920, %v1381, %v1382
        %v1384 = vrot.slane %v1373, 5
        %v1385 = vsel %vm920, %v1382, %v1384
        %v1386 = vrot.slane %v1374, 5
        %v1387 = vsel %vm920, %v1384, %v1386
        %v1388 = vrot.slane %v1375, 5
        %v1389 = vsel %vm920, %v1386, %v1388
        %v1394 = vadd.f32 %v1363, %v1383
        %v1395 = vadd.f32 %v1364, %v1385
        %v1396 = vadd.f32 %v1365, %v1387
        %v1397 = vadd.f32 %v1366, %v1389
        %v1398 = vlaneseq
        %v1399 = vshrl.u32 %v1398, 7
        %v1400 = vsub.s32 6, %v1399
        %v1401 = vrot.slane %v768, %v1400
        %v1402 = vmul.f32 %v760, %v1401
        %v1403 = vmul.f32 %v761, %v1401
        %v1404 = vmul.f32 %v762, %v1401
        %v1405 = vmul.f32 %v763, %v1401
        %v1406 = vmul.f32 %v764, %v1401
        %v1412 = vrot.slane %v1402, 6
        %v1413 = vrot.slane %v1403, 6
        %v1414 = vsel %vm952, %v1412, %v1413
        %v1415 = vrot.slane %v1404, 6
        %v1416 = vsel %vm952, %v1413, %v1415
        %v1417 = vrot.slane %v1405, 6
        %v1418 = vsel %vm952, %v1415, %v1417
        %v1419 = vrot.slane %v1406, 6
        %v1420 = vsel %vm952, %v1417, %v1419
        %v1425 = vadd.f32 %v1394, %v1414
        %v1426 = vadd.f32 %v1395, %v1416
        %v1427 = vadd.f32 %v1396, %v1418
        %v1428 = vadd.f32 %v1397, %v1420
        %v1429 = vlaneseq
        %v1430 = vshrl.u32 %v1429, 7
        %v1431 = vsub.s32 7, %v1430
        %v1432 = vrot.slane %v768, %v1431
        %v1433 = vmul.f32 %v760, %v1432
        %v1434 = vmul.f32 %v761, %v1432
        %v1435 = vmul.f32 %v762, %v1432
        %v1436 = vmul.f32 %v763, %v1432
        %v1437 = vmul.f32 %v764, %v1432
        %v1443 = vrot.slane %v1433, 7
        %v1444 = vrot.slane %v1434, 7
        %v1445 = vsel %vm984, %v1443, %v1444
        %v1446 = vrot.slane %v1435, 7
        %v1447 = vsel %vm984, %v1444, %v1446
        %v1448 = vrot.slane %v1436, 7
        %v1449 = vsel %vm984, %v1446, %v1448
        %v1450 = vrot.slane %v1437, 7
        %v1451 = vsel %vm984, %v1448, %v1450
        %v1456 = vadd.f32 %v1425, %v1445
        %v1457 = vadd.f32 %v1426, %v1447
        %v1458 = vadd.f32 %v1427, %v1449
        %v1459 = vadd.f32 %v1428, %v1451
        %v1460 = vlaneseq
        %v1461 = vshrl.u32 %v1460, 7
        %v1462 = vsub.s32 0, %v1461
        %v1463 = vrot.slane %v769, %v1462
        %v1464 = vmul.f32 %v761, %v1463
        %v1465 = vmul.f32 %v762, %v1463
        %v1466 = vmul.f32 %v763, %v1463
        %v1467 = vmul.f32 %v764, %v1463
        %v1468 = vadd.f32 %v1456, %v1464
        %v1469 = vadd.f32 %v1457, %v1465
        %v1470 = vadd.f32 %v1458, %v1466
        %v1471 = vadd.f32 %v1459, %v1467
        %v1472 = vlaneseq
        %v1473 = vshrl.u32 %v1472, 7
        %v1474 = vsub.s32 1, %v1473
        %v1475 = vrot.slane %v769, %v1474
        %v1476 = vmul.f32 %v761, %v1475
        %v1477 = vmul.f32 %v762, %v1475
        %v1478 = vmul.f32 %v763, %v1475
        %v1479 = vmul.f32 %v764, %v1475
        %v1480 = vmul.f32 %v765, %v1475
        %v1486 = vrot.slane %v1476, 1
        %v1487 = vrot.slane %v1477, 1
        %v1488 = vsel %vm792, %v1486, %v1487
        %v1489 = vrot.slane %v1478, 1
        %v1490 = vsel %vm792, %v1487, %v1489
        %v1491 = vrot.slane %v1479, 1
        %v1492 = vsel %vm792, %v1489, %v1491
        %v1493 = vrot.slane %v1480, 1
        %v1494 = vsel %vm792, %v1491, %v1493
        %v1499 = vadd.f32 %v1468, %v1488
        %v1500 = vadd.f32 %v1469, %v1490
        %v1501 = vadd.f32 %v1470, %v1492
        %v1502 = vadd.f32 %v1471, %v1494
        %v1503 = vlaneseq
        %v1504 = vshrl.u32 %v1503, 7
        %v1505 = vsub.s32 2, %v1504
        %v1506 = vrot.slane %v769, %v1505
        %v1507 = vmul.f32 %v761, %v1506
        %v1508 = vmul.f32 %v762, %v1506
        %v1509 = vmul.f32 %v763, %v1506
        %v1510 = vmul.f32 %v764, %v1506
        %v1511 = vmul.f32 %v765, %v1506
        %v1517 = vrot.slane %v1507, 2
        %v1518 = vrot.slane %v1508, 2
        %v1519 = vsel %vm824, %v1517, %v1518
        %v1520 = vrot.slane %v1509, 2
        %v1521 = vsel %vm824, %v1518, %v1520
        %v1522 = vrot.slane %v1510, 2
        %v1523 = vsel %vm824, %v1520, %v1522
        %v1524 = vrot.slane %v1511, 2
        %v1525 = vsel %vm824, %v1522, %v1524
        %v1530 = vadd.f32 %v1499, %v1519
        %v1531 = vadd.f32 %v1500, %v1521
        %v1532 = vadd.f32 %v1501, %v1523
        %v1533 = vadd.f32 %v1502, %v1525
        %v1534 = vlaneseq
        %v1535 = vshrl.u32 %v1534, 7
        %v1536 = vsub.s32 3, %v1535
        %v1537 = vrot.slane %v769, %v1536
        %v1538 = vmul.f32 %v761, %v1537
        %v1539 = vmul.f32 %v762, %v1537
        %v1540 = vmul.f32 %v763, %v1537
        %v1541 = vmul.f32 %v764, %v1537
        %v1542 = vmul.f32 %v765, %v1537
        %v1548 = vrot.slane %v1538, 3
        %v1549 = vrot.slane %v1539, 3
        %v1550 = vsel %vm856, %v1548, %v1549
        %v1551 = vrot.slane %v1540, 3
        %v1552 = vsel %vm856, %v1549, %v1551
        %v1553 = vrot.slane %v1541, 3
        %v1554 = vsel %vm856, %v1551, %v1553
        %v1555 = vrot.slane %v1542, 3
        %v1556 = vsel %vm856, %v1553, %v1555
        %v1561 = vadd.f32 %v1530, %v1550
        %v1562 = vadd.f32 %v1531, %v1552
        %v1563 = vadd.f32 %v1532, %v1554
        %v1564 = vadd.f32 %v1533, %v1556
        %v1565 = vlaneseq
        %v1566 = vshrl.u32 %v1565, 7
        %v1567 = vsub.s32 4, %v1566
        %v1568 = vrot.slane %v769, %v1567
        %v1569 = vmul.f32 %v761, %v1568
        %v1570 = vmul.f32 %v762, %v1568
        %v1571 = vmul.f32 %v763, %v1568
        %v1572 = vmul.f32 %v764, %v1568
        %v1573 = vmul.f32 %v765, %v1568
        %v1579 = vrot.slane %v1569, 4
        %v1580 = vrot.slane %v1570, 4
        %v1581 = vsel %vm888, %v1579, %v1580
        %v1582 = vrot.slane %v1571, 4
        %v1583 = vsel %vm888, %v1580, %v1582
        %v1584 = vrot.slane %v1572, 4
        %v1585 = vsel %vm888, %v1582, %v1584
        %v1586 = vrot.slane %v1573, 4
        %v1587 = vsel %vm888, %v1584, %v1586
        %v1592 = vadd.f32 %v1561, %v1581
        %v1593 = vadd.f32 %v1562, %v1583
        %v1594 = vadd.f32 %v1563, %v1585
        %v1595 = vadd.f32 %v1564, %v1587
        %v1596 = vlaneseq
        %v1597 = vshrl.u32 %v1596, 7
        %v1598 = vsub.s32 5, %v1597
        %v1599 = vrot.slane %v769, %v1598
        %v1600 = vmul.f32 %v761, %v1599
        %v1601 = vmul.f32 %v762, %v1599
        %v1602 = vmul.f32 %v763, %v1599
        %v1603 = vmul.f32 %v764, %v1599
        %v1604 = vmul.f32 %v765, %v1599
        %v1610 = vrot.slane %v1600, 5
        %v1611 = vrot.slane %v1601, 5
        %v1612 = vsel %vm920, %v1610, %v1611
        %v1613 = vrot.slane %v1602, 5
        %v1614 = vsel %vm920, %v1611, %v1613
        %v1615 = vrot.slane %v1603, 5
        %v1616 = vsel %vm920, %v1613, %v1615
        %v1617 = vrot.slane %v1604, 5
        %v1618 = vsel %vm920, %v1615, %v1617
        %v1623 = vadd.f32 %v1592, %v1612
        %v1624 = vadd.f32 %v1593, %v1614
        %v1625 = vadd.f32 %v1594, %v1616
        %v1626 = vadd.f32 %v1595, %v1618
        %v1627 = vlaneseq
        %v1628 = vshrl.u32 %v1627, 7
        %v1629 = vsub.s32 6, %v1628
        %v1630 = vrot.slane %v769, %v1629
        %v1631 = vmul.f32 %v761, %v1630
        %v1632 = vmul.f32 %v762, %v1630
        %v1633 = vmul.f32 %v763, %v1630
        %v1634 = vmul.f32 %v764, %v1630
        %v1635 = vmul.f32 %v765, %v1630
        %v1641 = vrot.slane %v1631, 6
        %v1642 = vrot.slane %v1632, 6
        %v1643 = vsel %vm952, %v1641, %v1642
        %v1644 = vrot.slane %v1633, 6
        %v1645 = vsel %vm952, %v1642, %v1644
        %v1646 = vrot.slane %v1634, 6
        %v1647 = vsel %vm952, %v1644, %v1646
        %v1648 = vrot.slane %v1635, 6
        %v1649 = vsel %vm952, %v1646, %v1648
        %v1654 = vadd.f32 %v1623, %v1643
        %v1655 = vadd.f32 %v1624, %v1645
        %v1656 = vadd.f32 %v1625, %v1647
        %v1657 = vadd.f32 %v1626, %v1649
        %v1658 = vlaneseq
        %v1659 = vshrl.u32 %v1658, 7
        %v1660 = vsub.s32 7, %v1659
        %v1661 = vrot.slane %v769, %v1660
        %v1662 = vadd.f32 %v1654, %v1661
        %v1663 = vadd.f32 %v1655, %v1661
        %v1664 = vadd.f32 %v1656, %v1661
        %v1665 = vadd.f32 %v1657, %v1661
        %v1666 = vmax.f32 %v1662, 0.0
        %v1667 = vmax.f32 %v1663, 0.0
        %v1668 = vmax.f32 %v1664, 0.0
        %v1669 = vmax.f32 %v1665, 0.0
        %v1670 = vld [vmem:[#allocation8] sm:$0xff]
        %v1671 = vld [vmem:[#allocation8 + $0x8] sm:$0xff]
        %v1672 = vld [vmem:[#allocation8 + $0x10] sm:$0xff]
        %v1673 = vld [vmem:[#allocation8 + $0x18] sm:$0xff]
        %v1674 = vld [vmem:[#allocation8 + $0x20] sm:$0xff]
        %v1675 = vld [vmem:[#allocation8 + $0x28] sm:$0xff]
        %v1676 = vld [vmem:[#allocation8 + $0x30] sm:$0xff]
        %v1677 = vld [vmem:[#allocation8 + $0x38] sm:$0xff]
        %v1678 = vld [vmem:[#allocation8 + $0x40] sm:$0xff]
        %v1679 = vld [vmem:[#allocation8 + $0x48] sm:$0xff]
        %v1680 = vld [vmem:[#allocation8 + $0x50] sm:$0xff]
        %v1681 = vld [vmem:[#allocation8 + $0x58] sm:$0xff]
        %v1682 = vld [vmem:[#allocation8 + $0x60] sm:$0xff]
        %v1683 = vld [vmem:[#allocation8 + $0x68] sm:$0xff]
        %v1684 = vld [vmem:[#allocation8 + $0x70] sm:$0xff]
        %v1685 = vld [vmem:[#allocation8 + $0x78] sm:$0xff]
        %v1686 = vlaneseq
        %v1687 = vshrl.u32 %v1686, 7
        %v1688 = vsub.s32 0, %v1687
        %v1689 = vrot.slane %v392, %v1688
        %1690 = vmatprep.subr.mxu0 0.0
        %1691 = vmatpush1.msra.mxu0 %v1670
        %1692 = vmatprep.subr.mxu0 0.0
        %1693 = vmatpush1.msra.mxu0 %v1671
        %1694 = vmatprep.subr.mxu0 0.0
        %1695 = vmatpush1.msra.mxu0 %v1672
        %1696 = vmatprep.subr.mxu0 0.0
        %1697 = vmatpush1.msra.mxu0 %v1673
        %1698 = vmatprep.subr.mxu0 0.0
        %1699 = vmatpush1.msra.mxu0 %v1674
        %1700 = vmatprep.subr.mxu0 0.0
        %1701 = vmatpush1.msra.mxu0 %v1675
        %1702 = vmatprep.subr.mxu0 0.0
        %1703 = vmatpush1.msra.mxu0 %v1676
        %1704 = vmatprep.subr.mxu0 0.0
        %1705 = vmatpush1.msra.mxu0 %v1677
        %1706 = vmatprep.subr.mxu0 0.0
        %1707 = vmatpush1.msra.mxu0 %v1678
        %1708 = vmatprep.subr.mxu0 0.0
        %1709 = vmatpush1.msra.mxu0 %v1679
        %1710 = vmatprep.subr.mxu0 0.0
        %1711 = vmatpush1.msra.mxu0 %v1680
        %1712 = vmatprep.subr.mxu0 0.0
        %1713 = vmatpush1.msra.mxu0 %v1681
        %1714 = vmatprep.subr.mxu0 0.0
        %1715 = vmatpush1.msra.mxu0 %v1682
        %1716 = vmatprep.subr.mxu0 0.0
        %1717 = vmatpush1.msra.mxu0 %v1683
        %1718 = vmatprep.subr.mxu0 0.0
        %1719 = vmatpush1.msra.mxu0 %v1684
        %1720 = vmatprep.subr.mxu0 0.0
        %1721 = vmatpush1.msra.mxu0 %v1685
        %1722 = vmatprep.subr.mxu0 0.0
        %1723 = vmatpush1.msra.mxu0 0.0
        %1724 = vmatprep.subr.mxu0 0.0
        %1725 = vmatpush1.msra.mxu0 0.0
        %1726 = vmatprep.subr.mxu0 0.0
        %1727 = vmatpush1.msra.mxu0 0.0
        %1728 = vmatprep.subr.mxu0 0.0
        %1729 = vmatpush1.msra.mxu0 0.0
        %1730 = vmatprep.subr.mxu0 0.0
        %1731 = vmatpush1.msra.mxu0 0.0
        %1732 = vmatprep.subr.mxu0 0.0
        %1733 = vmatpush1.msra.mxu0 0.0
        %1734 = vmatprep.subr.mxu0 0.0
        %1735 = vmatpush1.msra.mxu0 0.0
        %1736 = vmatprep.subr.mxu0 0.0
        %1737 = vmatpush1.msra.mxu0 0.0
        %1738 = vmatprep.subr.mxu0 0.0
        %1739 = vmatpush1.msra.mxu0 0.0
        %1740 = vmatprep.subr.mxu0 0.0
        %1741 = vmatpush1.msra.mxu0 0.0
        %1742 = vmatprep.subr.mxu0 0.0
        %1743 = vmatpush1.msra.mxu0 0.0
        %1744 = vmatprep.subr.mxu0 0.0
        %1745 = vmatpush1.msra.mxu0 0.0
        %1746 = vmatprep.subr.mxu0 0.0
        %1747 = vmatpush1.msra.mxu0 0.0
        %1748 = vmatprep.subr.mxu0 0.0
        %1749 = vmatpush1.msra.mxu0 0.0
        %1750 = vmatprep.subr.mxu0 0.0
        %1751 = vmatpush1.msra.mxu0 0.0
        %1752 = vmatprep.subr.mxu0 0.0
        %1753 = vmatpush1.msra.mxu0 0.0
        %1754 = vmatprep.mubr.f32.mxu0 0.0
        %1755 = vmatmul.mubr.f32.gmra.mrb[0].mxu0 %v1666
        %v1756 = vpop.f32.mrb[0].mxu0
        %v1757 = vadd.f32 %v1689, %v1756
        %v1758 = vpop.f32.mrb[0].mxu0
        %1759 = vmatprep.mubr.f32.mxu0 0.0
        %1760 = vmatmul.mubr.f32.gmra.mrb[0].mxu0 %v1667
        %v1761 = vpop.f32.mrb[0].mxu0
        %v1762 = vadd.f32 %v1689, %v1761
        %v1763 = vpop.f32.mrb[0].mxu0
        %1764 = vmatprep.mubr.f32.mxu0 0.0
        %1765 = vmatmul.mubr.f32.gmra.mrb[0].mxu0 %v1668
        %v1766 = vpop.f32.mrb[0].mxu0
        %v1767 = vadd.f32 %v1689, %v1766
        %v1768 = vpop.f32.mrb[0].mxu0
        %1769 = vmatprep.mubr.f32.mxu0 0.0
        %1770 = vmatmul.mubr.f32.gmra.mrb[0].mxu0 %v1669
        %v1771 = vpop.f32.mrb[0].mxu0
        %v1772 = vadd.f32 %v1689, %v1771
        %v1773 = vpop.f32.mrb[0].mxu0
        %1774 = vdwg.mxu0
        %1775 = vst [vmem:[%s377] sm:$0xff] %v1757
        %1776 = vst [vmem:[%s377 + $0x8] sm:$0xff] %v1762
        %1777 = vst [vmem:[%s377 + $0x10] sm:$0xff] %v1767
        %1778 = vst [vmem:[%s377 + $0x18] sm:$0xff] %v1772
        %s1779 = sand.u32 %s191, 1
        %s1780 = scalar_lea.sflag [#allocation4], %s1779
        %s1781 = sand.u32 %s191, 1
        %s1782 = smul.addr %s1781, 32
        %s1783 = scalar_lea.vmem [#allocation11], %s1782
        // Predicated region
        $region65: #{tpu_custom_call.1} parent=43 // pred_check
          %p1784 = pneg %p201
        $region66: #{tpu_custom_call.1} parent=43 // pred_check_branch
          %1786 = sbr.rel (%p1784) target = $region68
        $region67: #{tpu_custom_call.1} parent=43 // pred_region
          %s1787 = smul.u32 4, %s32
          %s1789 = ssub.s32 512, 512
          %1790 = vsyncadd %s1780, %s1789
          %s1791 = smul.addr %s31, 8
          %s1792 = sadd.s32 %s1787, %s1791
          %s1793 = smul.addr %s1792, 128
          %s1794 = scalar_lea.hbm %s6, %s1793
          %s1795 = sshll.u32 %s1783, 4
          %s1796 = int_to_ptr.vmem [resolvable:$true] %s1795
          %1801 = dma.vmem_to_hbm [thread:$0]  %s1796, 512, %s1794, %s1780, 128, 128, 8
        $region68: #{tpu_custom_call.1} parent=43 // pred_fallthru
          _
      $region44: #{tpu_custom_call.1} parent=5 // pred_fallthru
        _
      %p1802 = scmp.le.s32.totalorder 2, %s22
      // Predicated region
      $region69: #{tpu_custom_call.1} parent=5 // pred_check
        %p1803 = pneg %p1802
      $region70: #{tpu_custom_call.1} parent=5 // pred_check_branch
        %1805 = sbr.rel (%p1803) target = $region72
      $region71: #{tpu_custom_call.1} parent=5 // pred_region
        %s1806 = ssub.s32 %s22, 2
        // Predicated region
        $region73: #{tpu_custom_call.1} parent=71 // pred_check
          %p1807 = pneg %p207
        $region74: #{tpu_custom_call.1} parent=71 // pred_check_branch
          %1809 = sbr.rel (%p1807) target = $region76
        $region75: #{tpu_custom_call.1} parent=71 // pred_region
          %s1810 = sand.u32 %s192, 1
          %s1811 = scalar_lea.sflag [#allocation4], %s1810
          %s1812 = sand.u32 %s192, 1
          %s1813 = smul.addr %s1812, 32
          %s1814 = scalar_lea.vmem [#allocation11], %s1813
          %1815 = dma.done %s1811, 512
        $region76: #{tpu_custom_call.1} parent=71 // pred_fallthru
          _
      $region72: #{tpu_custom_call.1} parent=5 // pred_fallthru
        _
    $region6: #{tpu_custom_call.1} parent=1 // loop_footer
      %s26 = sadd.s32 1, %s22
    $region7: #{tpu_custom_call.1} parent=1 // loop_footer_branch
      %21 = sbr.rel target = $region3
    $region8: #{tpu_custom_call.1} parent=1 // loop_exit
      _
    %1816 = vsyncpa [#allocation3], 1
    %s1817 = scalar_lea.sflag [#allocation3], 1
    %1818 = vsyncpa %s1817, 1
    %1819 = vsyncpa [#allocation6], 1
    %s1820 = scalar_lea.sflag [#allocation6], 1
    %1821 = vsyncpa %s1820, 1
    %1822 = vsyncpa [#allocation9], 1
    %1823 = vsyncpa [#allocation4], 1
    %s1824 = scalar_lea.sflag [#allocation4], 1
    %1825 = vsyncpa %s1824, 1

// kernel: tpu_custom_call.1
$region0: #{tpu_custom_call.1}
  #allocation0 [shape = 'u32[]', space=smem, size = 0x4, offset = 0x4, fixed_abs, tag = 'smem constant byte address 0x4 - core index']
  #allocation1 [shape = 'u32[144,128]{1,0:T(1,128)}', space=vmem, size = 0x12000, scoped, tag = 'internal scratch']
  %s0 = inlined_call_operand.hbm [shape: f32[2,96,128], index: 0, kind: input, shape index: {}]
  %s1 = inlined_call_operand.hbm [shape: f32[2,96,128], index: 1, kind: input, shape index: {}]
  %s2 = inlined_call_operand.hbm [shape: f32[128,256], index: 2, kind: input, shape index: {}]
  %s3 = inlined_call_operand.hbm [shape: f32[128,128], index: 3, kind: input, shape index: {}]
  %s4 = inlined_call_operand.vmem [shape: f32[8,128], index: 4, kind: input, shape index: {}]
  %s5 = inlined_call_operand.hbm [shape: f32[32,128], index: 5, kind: input, shape index: {}]
  %s6 = inlined_call_operand.hbm [shape: f32[2,64,128], index: 6, kind: output, shape index: {}]
  %s7 = sld [smem:[#allocation0]]
  $region77: #{tpu_custom_call.1} parent=0
    _
  %s9 = ssub.s32 1, %s7
  %s10 = scalar_select 0, %s9, %s7
  $region1: #{tpu_custom_call.1} parent=0
    #allocation2 [shape = 'u8[32768]{0}', space=vmem, size = 0x8000, scoped, tag = 'input window, operand 0']
    #allocation3 [shape = 's32[2]{0}', space=sflag, size = 0x8, scoped, tag = 'scoped memory for tpu_custom_call.1']
    #allocation4 [shape = 's32[2]{0}', space=sflag, size = 0x8, scoped, tag = 'scoped memory for tpu_custom_call.1']
    #allocation5 [shape = 'u8[32768]{0}', space=vmem, size = 0x8000, scoped, tag = 'input window, operand 1']
    #allocation6 [shape = 's32[2]{0}', space=sflag, size = 0x8, scoped, tag = 'scoped memory for tpu_custom_call.1']
    #allocation7 [shape = 'u8[131072]{0}', space=vmem, size = 0x20000, scoped, tag = 'input window, operand 2, single buffered']
    #allocation8 [shape = 'u8[65536]{0}', space=vmem, size = 0x10000, scoped, tag = 'input window, operand 3, single buffered']
    #allocation9 [shape = 's32[1]{0}', space=sflag, size = 0x4, scoped, tag = 'scoped memory for tpu_custom_call.1']
    #allocation10 [shape = 'u8[16384]{0}', space=vmem, size = 0x4000, scoped, tag = 'input window, operand 5, single buffered']
    #allocation11 [shape = 'u8[32768]{0}', space=vmem, size = 0x8000, scoped, tag = 'output window, operand 0']
    %11 = vsyncpa [#allocation3], 0
    %s12 = scalar_lea.sflag [#allocation3], 1
    %13 = vsyncpa %s12, 0
    %14 = vsyncpa [#allocation6], 0
    %s15 = scalar_lea.sflag [#allocation6], 1
    %16 = vsyncpa %s15, 0
    %17 = vsyncpa [#allocation9], 0
    %18 = vsyncpa [#allocation4], 0
    %s19 = scalar_lea.sflag [#allocation4], 1
    %20 = vsyncpa %s19, 0
    loop: start=0, step=1, limit=6
    $region2: #{tpu_custom_call.1} parent=1 // loop_pre_header
      _
    $region3: #{tpu_custom_call.1} parent=1 // loop_header
      %s22 = sphi 0, %s26
      %p23 = scmp.ge.s32.totalorder %s22, 6
      %s29 = sphi 0, %s41
      %s30 = sphi 0, %s37
      %s31 = sphi 0, %s29
      %s32 = sphi 0, %s30
      %s33 = sphi 0, %s31
      %s34 = sphi 0, %s32
      %s46 = sphi 0, %s48
      %s49 = sphi 0, %s46
      %s50 = sphi 0, %s49
      %s66 = sphi 0, %s50
      %s76 = sphi 0, %s78
      %s79 = sphi 0, %s76
      %s80 = sphi 0, %s79
      %s96 = sphi 0, %s80
      %s100 = sphi 0, %s100
      %s102 = sphi 0, %s100
      %s103 = sphi 0, %s102
      %s117 = sphi 0, %s103
      %s121 = sphi 0, %s121
      %s123 = sphi 0, %s121
      %s124 = sphi 0, %s123
      %s138 = sphi 0, %s124
      %s142 = sphi 0, %s142
      %s144 = sphi 0, %s142
      %s145 = sphi 0, %s144
      %s159 = sphi 0, %s145
      %s163 = sphi 0, %s163
      %s165 = sphi 0, %s163
      %s166 = sphi 0, %s165
      %s180 = sphi 0, %s166
      %s188 = sphi 0, %s190
      %s191 = sphi 0, %s188
      %s192 = sphi 0, %s191
      %s208 = sphi 0, %s192
    $region4: #{tpu_custom_call.1} parent=1 // loop_header_branch
      %25 = sbr.rel (%p23) target = $region8
    $region5: #{tpu_custom_call.1} parent=1 // loop_body
      %s27 = ssub.s32 %s22, 1
      %s28 = ssub.s32 %s22, 2
      %s35 = sadd.s32 1, %s30
      %p36 = scmp.ge.s32.totalorder %s35, 2
      %s37 = scalar_select %p36, 0, %s35
      %s38 = sadd.s32 1, %s29
      %s39 = scalar_select %p36, %s38, %s29
      %p40 = scmp.ge.s32.totalorder %s39, 2
      %s41 = scalar_select %p40, 0, %s39
      %s42 = ssub.s32 %s29, %s41
      %s43 = ssub.s32 %s30, %s37
      %s44 = sor.u32 %s42, %s43
      %p45 = scmp.eq.s32.totalorder %s44, 0
      %s47 = sadd.s32 %s46, 1
      %s48 = scalar_select %p45, %s46, %s47
      %p51 = pneg %p45
      %p52 = scmp.eq.s32.totalorder %s22, 3
      %p53 = por %p51, %p52
      %p54 = scmp.ne.s32.totalorder %s46, %s49
      %p55 = scmp.eq.s32.totalorder %s22, 0
      %p56 = por %p54, %p55
      %p57 = scmp.ne.s32.totalorder %s46, %s49
      %p58 = scmp.eq.s32.totalorder %s27, 3
      %p59 = por %p57, %p58
      %p60 = scmp.ne.s32.totalorder %s49, %s50
      %p61 = scmp.eq.s32.totalorder %s27, 0
      %p62 = por %p60, %p61
      %p63 = scmp.ne.s32.totalorder %s49, %s50
      %p64 = scmp.eq.s32.totalorder %s28, 3
      %p65 = por %p63, %p64
      %p67 = scmp.ne.s32.totalorder %s50, %s66
      %p68 = scmp.eq.s32.totalorder %s28, 0
      %p69 = por %p67, %p68
      %s70 = sadd.s32 %s30, 1
      %s71 = sadd.s32 %s37, 1
      %s72 = ssub.s32 %s29, %s41
      %s73 = ssub.s32 %s70, %s71
      %s74 = sor.u32 %s72, %s73
      %p75 = scmp.eq.s32.totalorder %s74, 0
      %s77 = sadd.s32 %s76, 1
      %s78 = scalar_select %p75, %s76, %s77
      %p81 = pneg %p75
      %p82 = scmp.eq.s32.totalorder %s22, 3
      %p83 = por %p81, %p82
      %p84 = scmp.ne.s32.totalorder %s76, %s79
      %p85 = scmp.eq.s32.totalorder %s22, 0
      %p86 = por %p84, %p85
      %p87 = scmp.ne.s32.totalorder %s76, %s79
      %p88 = scmp.eq.s32.totalorder %s27, 3
      %p89 = por %p87, %p88
      %p90 = scmp.ne.s32.totalorder %s79, %s80
      %p91 = scmp.eq.s32.totalorder %s27, 0
      %p92 = por %p90, %p91
      %p93 = scmp.ne.s32.totalorder %s79, %s80
      %p94 = scmp.eq.s32.totalorder %s28, 3
      %p95 = por %p93, %p94
      %p97 = scmp.ne.s32.totalorder %s80, %s96
      %p98 = scmp.eq.s32.totalorder %s28, 0
      %p99 = por %p97, %p98
      %s101 = sadd.s32 %s100, 1
      %p104 = scmp.eq.s32.totalorder %s22, 3
      %p105 = scmp.ne.s32.totalorder %s100, %s102
      %p106 = scmp.eq.s32.totalorder %s22, 0
      %p107 = por %p105, %p106
      %p108 = scmp.ne.s32.totalorder %s100, %s102
      %p109 = scmp.eq.s32.totalorder %s27, 3
      %p110 = por %p108, %p109
      %p111 = scmp.ne.s32.totalorder %s102, %s103
      %p112 = scmp.eq.s32.totalorder %s27, 0
      %p113 = por %p111, %p112
      %p114 = scmp.ne.s32.totalorder %s102, %s103
      %p115 = scmp.eq.s32.totalorder %s28, 3
      %p116 = por %p114, %p115
      %p118 = scmp.ne.s32.totalorder %s103, %s117
      %p119 = scmp.eq.s32.totalorder %s28, 0
      %p120 = por %p118, %p119
      %s122 = sadd.s32 %s121, 1
      %p125 = scmp.eq.s32.totalorder %s22, 3
      %p126 = scmp.ne.s32.totalorder %s121, %s123
      %p127 = scmp.eq.s32.totalorder %s22, 0
      %p128 = por %p126, %p127
      %p129 = scmp.ne.s32.totalorder %s121, %s123
      %p130 = scmp.eq.s32.totalorder %s27, 3
      %p131 = por %p129, %p130
      %p132 = scmp.ne.s32.totalorder %s123, %s124
      %p133 = scmp.eq.s32.totalorder %s27, 0
      %p134 = por %p132, %p133
      %p135 = scmp.ne.s32.totalorder %s123, %s124
      %p136 = scmp.eq.s32.totalorder %s28, 3
      %p137 = por %p135, %p136
      %p139 = scmp.ne.s32.totalorder %s124, %s138
      %p140 = scmp.eq.s32.totalorder %s28, 0
      %p141 = por %p139, %p140
      %s143 = sadd.s32 %s142, 1
      %p146 = scmp.eq.s32.totalorder %s22, 3
      %p147 = scmp.ne.s32.totalorder %s142, %s144
      %p148 = scmp.eq.s32.totalorder %s22, 0
      %p149 = por %p147, %p148
      %p150 = scmp.ne.s32.totalorder %s142, %s144
      %p151 = scmp.eq.s32.totalorder %s27, 3
      %p152 = por %p150, %p151
      %p153 = scmp.ne.s32.totalorder %s144, %s145
      %p154 = scmp.eq.s32.totalorder %s27, 0
      %p155 = por %p153, %p154
      %p156 = scmp.ne.s32.totalorder %s144, %s145
      %p157 = scmp.eq.s32.totalorder %s28, 3
      %p158 = por %p156, %p157
      %p160 = scmp.ne.s32.totalorder %s145, %s159
      %p161 = scmp.eq.s32.totalorder %s28, 0
      %p162 = por %p160, %p161
      %s164 = sadd.s32 %s163, 1
      %p167 = scmp.eq.s32.totalorder %s22, 3
      %p168 = scmp.ne.s32.totalorder %s163, %s165
      %p169 = scmp.eq.s32.totalorder %s22, 0
      %p170 = por %p168, %p169
      %p171 = scmp.ne.s32.totalorder %s163, %s165
      %p172 = scmp.eq.s32.totalorder %s27, 3
      %p173 = por %p171, %p172
      %p174 = scmp.ne.s32.totalorder %s165, %s166
      %p175 = scmp.eq.s32.totalorder %s27, 0
      %p176 = por %p174, %p175
      %p177 = scmp.ne.s32.totalorder %s165, %s166
      %p178 = scmp.eq.s32.totalorder %s28, 3
      %p179 = por %p177, %p178
      %p181 = scmp.ne.s32.totalorder %s166, %s180
      %p182 = scmp.eq.s32.totalorder %s28, 0
      %p183 = por %p181, %p182
      %s184 = ssub.s32 %s29, %s41
      %s185 = ssub.s32 %s30, %s37
      %s186 = sor.u32 %s184, %s185
      %p187 = scmp.eq.s32.totalorder %s186, 0
      %s189 = sadd.s32 %s188, 1
      %s190 = scalar_select %p187, %s188, %s189
      %p193 = pneg %p187
      %p194 = scmp.eq.s32.totalorder %s22, 3
      %p195 = por %p193, %p194
      %p196 = scmp.ne.s32.totalorder %s188, %s191
      %p197 = scmp.eq.s32.totalorder %s22, 0
      %p198 = por %p196, %p197
      %p199 = scmp.ne.s32.totalorder %s188, %s191
      %p200 = scmp.eq.s32.totalorder %s27, 3
      %p201 = por %p199, %p200
      %p202 = scmp.ne.s32.totalorder %s191, %s192
      %p203 = scmp.eq.s32.totalorder %s27, 0
      %p204 = por %p202, %p203
      %p205 = scmp.ne.s32.totalorder %s191, %s192
      %p206 = scmp.eq.s32.totalorder %s28, 3
      %p207 = por %p205, %p206
      %p209 = scmp.ne.s32.totalorder %s192, %s208
      %p210 = scmp.eq.s32.totalorder %s28, 0
      %p211 = por %p209, %p210
      %p212 = scmp.le.s32.totalorder 1, %s22
      %p213 = scmp.lt.s32.totalorder %s22, 5
      %p214 = pnand %p212, %p213
      %p215 = pneg %p214
      // Predicated region
      $region9: #{tpu_custom_call.1} parent=5 // pred_check
        _
      $region10: #{tpu_custom_call.1} parent=5 // pred_check_branch
        %217 = sbr.rel (%p214) target = $region12
      $region11: #{tpu_custom_call.1} parent=5 // pred_region
        %s218 = ssub.s32 %s22, 1
        // Predicated region
        $region13: #{tpu_custom_call.1} parent=11 // pred_check
          %p219 = pneg %p113
        $region14: #{tpu_custom_call.1} parent=11 // pred_check_branch
          %221 = sbr.rel (%p219) target = $region16
        $region15: #{tpu_custom_call.1} parent=11 // pred_region
          %s223 = ssub.s32 4096, 4096
          %224 = vsyncadd [#allocation6], %s223
          %s225 = sshll.u32 [#allocation7], 4
          %s226 = int_to_ptr.vmem [resolvable:$true] %s225
          %231 = dma.hbm_to_vmem [thread:$0]  %s2, 4096, %s226, [#allocation6], 256, 256, 16
        $region16: #{tpu_custom_call.1} parent=11 // pred_fallthru
          _
        // Predicated region
        $region17: #{tpu_custom_call.1} parent=11 // pred_check
          %p232 = pneg %p134
        $region18: #{tpu_custom_call.1} parent=11 // pred_check_branch
          %234 = sbr.rel (%p232) target = $region20
        $region19: #{tpu_custom_call.1} parent=11 // pred_region
          %s236 = ssub.s32 2048, 2048
          %237 = vsyncadd [#allocation9], %s236
          %s238 = sshll.u32 [#allocation8], 4
          %s239 = int_to_ptr.vmem [resolvable:$true] %s238
          %244 = dma.hbm_to_vmem [thread:$0]  %s3, 2048, %s239, [#allocation9], 128, 128, 8
        $region20: #{tpu_custom_call.1} parent=11 // pred_fallthru
          _
        // Predicated region
        $region21: #{tpu_custom_call.1} parent=11 // pred_check
          %p245 = pneg %p155
        $region22: #{tpu_custom_call.1} parent=11 // pred_check_branch
          %247 = sbr.rel (%p245) target = $region24
        $region23: #{tpu_custom_call.1} parent=11 // pred_region
          _
        $region24: #{tpu_custom_call.1} parent=11 // pred_fallthru
          _
        // Predicated region
        $region25: #{tpu_custom_call.1} parent=11 // pred_check
          %p248 = pneg %p176
        $region26: #{tpu_custom_call.1} parent=11 // pred_check_branch
          %250 = sbr.rel (%p248) target = $region28
        $region27: #{tpu_custom_call.1} parent=11 // pred_region
          %s252 = ssub.s32 512, 512
          %253 = vsyncadd [#allocation9], %s252
          %s254 = sshll.u32 [#allocation10], 4
          %s255 = int_to_ptr.vmem [resolvable:$true] %s254
          %260 = dma.hbm_to_vmem [thread:$0]  %s5, 512, %s255, [#allocation9], 128, 128, 8
        $region28: #{tpu_custom_call.1} parent=11 // pred_fallthru
          _
      $region12: #{tpu_custom_call.1} parent=5 // pred_fallthru
        _
      %p261 = scmp.lt.s32.totalorder %s22, 4
      // Predicated region
      $region29: #{tpu_custom_call.1} parent=5 // pred_check
        %p262 = pneg %p261
      $region30: #{tpu_custom_call.1} parent=5 // pred_check_branch
        %264 = sbr.rel (%p262) target = $region32
      $region31: #{tpu_custom_call.1} parent=5 // pred_region
        // Predicated region
        $region33: #{tpu_custom_call.1} parent=31 // pred_check
          %p265 = pneg %p56
        $region34: #{tpu_custom_call.1} parent=31 // pred_check_branch
          %267 = sbr.rel (%p265) target = $region36
        $region35: #{tpu_custom_call.1} parent=31 // pred_region
          %s268 = sand.u32 %s46, 1
          %s269 = scalar_lea.sflag [#allocation3], %s268
          %s270 = sand.u32 %s46, 1
          %s271 = smul.addr %s270, 32
          %s272 = scalar_lea.vmem [#allocation2], %s271
          %s273 = smul.u32 4, %s30
          %s275 = ssub.s32 512, 512
          %276 = vsyncadd %s269, %s275
          %s277 = smul.addr %s29, 12
          %s278 = sadd.s32 %s273, %s277
          %s279 = smul.addr %s278, 128
          %s280 = scalar_lea.hbm %s0, %s279
          %s281 = sshll.u32 %s272, 4
          %s282 = int_to_ptr.vmem [resolvable:$true] %s281
          %287 = dma.hbm_to_vmem [thread:$0]  %s280, 512, %s282, %s269, 128, 128, 8
        $region36: #{tpu_custom_call.1} parent=31 // pred_fallthru
          _
        // Predicated region
        $region37: #{tpu_custom_call.1} parent=31 // pred_check
          %p288 = pneg %p86
        $region38: #{tpu_custom_call.1} parent=31 // pred_check_branch
          %290 = sbr.rel (%p288) target = $region40
        $region39: #{tpu_custom_call.1} parent=31 // pred_region
          %s291 = sand.u32 %s22, 1
          %s292 = scalar_lea.sflag [#allocation6], %s291
          %s293 = sand.u32 %s76, 1
          %s294 = smul.addr %s293, 32
          %s295 = scalar_lea.vmem [#allocation5], %s294
          %s296 = sadd.s32 %s30, 1
          %s297 = smul.u32 4, %s296
          %s299 = ssub.s32 512, 512
          %300 = vsyncadd %s292, %s299
          %s301 = smul.addr %s29, 12
          %s302 = sadd.s32 %s297, %s301
          %s303 = smul.addr %s302, 128
          %s304 = scalar_lea.hbm %s1, %s303
          %s305 = sshll.u32 %s295, 4
          %s306 = int_to_ptr.vmem [resolvable:$true] %s305
          %311 = dma.hbm_to_vmem [thread:$0]  %s304, 512, %s306, %s292, 128, 128, 8
        $region40: #{tpu_custom_call.1} parent=31 // pred_fallthru
          _
      $region32: #{tpu_custom_call.1} parent=5 // pred_fallthru
        _
      %p312 = scmp.le.s32.totalorder 1, %s22
      %p313 = scmp.lt.s32.totalorder %s22, 5
      %p314 = pnand %p312, %p313
      %p315 = pneg %p314
      // Predicated region
      $region41: #{tpu_custom_call.1} parent=5 // pred_check
        _
      $region42: #{tpu_custom_call.1} parent=5 // pred_check_branch
        %317 = sbr.rel (%p314) target = $region44
      $region43: #{tpu_custom_call.1} parent=5 // pred_region
        %s318 = ssub.s32 %s22, 1
        %s319 = sand.u32 %s49, 1
        %s320 = scalar_lea.sflag [#allocation3], %s319
        %s321 = sand.u32 %s49, 1
        %s322 = smul.addr %s321, 32
        %s323 = scalar_lea.vmem [#allocation2], %s322
        // Predicated region
        $region45: #{tpu_custom_call.1} parent=43 // pred_check
          %p324 = pneg %p62
        $region46: #{tpu_custom_call.1} parent=43 // pred_check_branch
          %326 = sbr.rel (%p324) target = $region48
        $region47: #{tpu_custom_call.1} parent=43 // pred_region
          %327 = dma.done %s320, 512
        $region48: #{tpu_custom_call.1} parent=43 // pred_fallthru
          _
        %s328 = sand.u32 %s27, 1
        %s329 = scalar_lea.sflag [#allocation6], %s328
        %s330 = sand.u32 %s79, 1
        %s331 = smul.addr %s330, 32
        %s332 = scalar_lea.vmem [#allocation5], %s331
        // Predicated region
        $region49: #{tpu_custom_call.1} parent=43 // pred_check
          %p333 = pneg %p92
        $region50: #{tpu_custom_call.1} parent=43 // pred_check_branch
          %335 = sbr.rel (%p333) target = $region52
        $region51: #{tpu_custom_call.1} parent=43 // pred_region
          %336 = dma.done %s329, 512
        $region52: #{tpu_custom_call.1} parent=43 // pred_fallthru
          _
        // Predicated region
        $region53: #{tpu_custom_call.1} parent=43 // pred_check
          %p337 = pneg %p113
        $region54: #{tpu_custom_call.1} parent=43 // pred_check_branch
          %339 = sbr.rel (%p337) target = $region56
        $region55: #{tpu_custom_call.1} parent=43 // pred_region
          %340 = dma.done [#allocation6], 4096
        $region56: #{tpu_custom_call.1} parent=43 // pred_fallthru
          _
        // Predicated region
        $region57: #{tpu_custom_call.1} parent=43 // pred_check
          %p341 = pneg %p134
        $region58: #{tpu_custom_call.1} parent=43 // pred_check_branch
          %343 = sbr.rel (%p341) target = $region60
        $region59: #{tpu_custom_call.1} parent=43 // pred_region
          %344 = dma.done [#allocation9], 2048
        $region60: #{tpu_custom_call.1} parent=43 // pred_fallthru
          _
        // Predicated region
        $region61: #{tpu_custom_call.1} parent=43 // pred_check
          %p345 = pneg %p176
        $region62: #{tpu_custom_call.1} parent=43 // pred_check_branch
          %347 = sbr.rel (%p345) target = $region64
        $region63: #{tpu_custom_call.1} parent=43 // pred_region
          %348 = dma.done [#allocation9], 512
        $region64: #{tpu_custom_call.1} parent=43 // pred_fallthru
          _
        %s349 = sand.u32 %s49, 1
        %s350 = scalar_lea.sflag [#allocation3], %s349
        %s351 = sand.u32 %s49, 1
        %s352 = smul.addr %s351, 32
        %s353 = scalar_lea.vmem [#allocation2], %s352
        %p354 = pneg %p62
        %p355 = pneg %p59
        %s356 = sand.u32 %s27, 1
        %s357 = scalar_lea.sflag [#allocation6], %s356
        %s358 = sand.u32 %s79, 1
        %s359 = smul.addr %s358, 32
        %s360 = scalar_lea.vmem [#allocation5], %s359
        %p361 = pneg %p92
        %p362 = pneg %p89
        %p363 = pneg %p113
        %p364 = pneg %p110
        %p365 = pneg %p134
        %p366 = pneg %p131
        %p367 = pneg %p155
        %p368 = pneg %p152
        %p369 = pneg %p176
        %p370 = pneg %p173
        %p371 = pneg %p204
        %p372 = pneg %p201
        %s373 = sand.u32 %s191, 1
        %s374 = scalar_lea.sflag [#allocation4], %s373
        %s375 = sand.u32 %s191, 1
        %s376 = smul.addr %s375, 32
        %s377 = scalar_lea.vmem [#allocation11], %s376
        %s378 = smul.u32 4, %s32
        %s379 = sadd.s32 %s32, 1
        %s380 = smul.u32 4, %s379
        %s381 = smul.u32 4, %s32
        %v382 = vld [vmem:[%s323] sm:$0xff]
        %v383 = vld [vmem:[%s323 + $0x8] sm:$0xff]
        %v384 = vld [vmem:[%s323 + $0x10] sm:$0xff]
        %v385 = vld [vmem:[%s323 + $0x18] sm:$0xff]
        %v386 = vld [vmem:[%s332] sm:$0xff]
        %v387 = vld [vmem:[%s332 + $0x8] sm:$0xff]
        %v388 = vld [vmem:[%s332 + $0x10] sm:$0xff]
        %v389 = vld [vmem:[%s332 + $0x18] sm:$0xff]
        %v390 = vld [vmem:[%s4] sm:$0x1]
        %v391 = vld [vmem:[%s4 + $0x1] sm:$0x1]
        %v392 = vld [vmem:[%s4 + $0x2] sm:$0x1]
        %v393 = vld [vmem:[#allocation7] sm:$0xff]
        %v394 = vld [vmem:[#allocation7 + $0x10] sm:$0xff]
        %v395 = vld [vmem:[#allocation7 + $0x20] sm:$0xff]
        %v396 = vld [vmem:[#allocation7 + $0x30] sm:$0xff]
        %v397 = vld [vmem:[#allocation7 + $0x40] sm:$0xff]
        %v398 = vld [vmem:[#allocation7 + $0x50] sm:$0xff]
        %v399 = vld [vmem:[#allocation7 + $0x60] sm:$0xff]
        %v400 = vld [vmem:[#allocation7 + $0x70] sm:$0xff]
        %v401 = vld [vmem:[#allocation7 + $0x80] sm:$0xff]
        %v402 = vld [vmem:[#allocation7 + $0x90] sm:$0xff]
        %v403 = vld [vmem:[#allocation7 + $0xa0] sm:$0xff]
        %v404 = vld [vmem:[#allocation7 + $0xb0] sm:$0xff]
        %v405 = vld [vmem:[#allocation7 + $0xc0] sm:$0xff]
        %v406 = vld [vmem:[#allocation7 + $0xd0] sm:$0xff]
        %v407 = vld [vmem:[#allocation7 + $0xe0] sm:$0xff]
        %v408 = vld [vmem:[#allocation7 + $0xf0] sm:$0xff]
        %v409 = vlaneseq
        %v410 = vshrl.u32 %v409, 7
        %v411 = vsub.s32 0, %v410
        %v412 = vrot.slane %v390, %v411
        %413 = vmatprep.subr.mxu0 0.0
        %414 = vmatpush1.msra.mxu0 %v393
        %415 = vmatprep.subr.mxu0 0.0
        %416 = vmatpush1.msra.mxu0 %v394
        %417 = vmatprep.subr.mxu0 0.0
        %418 = vmatpush1.msra.mxu0 %v395
        %419 = vmatprep.subr.mxu0 0.0
        %420 = vmatpush1.msra.mxu0 %v396
        %421 = vmatprep.subr.mxu0 0.0
        %422 = vmatpush1.msra.mxu0 %v397
        %423 = vmatprep.subr.mxu0 0.0
        %424 = vmatpush1.msra.mxu0 %v398
        %425 = vmatprep.subr.mxu0 0.0
        %426 = vmatpush1.msra.mxu0 %v399
        %427 = vmatprep.subr.mxu0 0.0
        %428 = vmatpush1.msra.mxu0 %v400
        %429 = vmatprep.subr.mxu0 0.0
        %430 = vmatpush1.msra.mxu0 %v401
        %431 = vmatprep.subr.mxu0 0.0
        %432 = vmatpush1.msra.mxu0 %v402
        %433 = vmatprep.subr.mxu0 0.0
        %434 = vmatpush1.msra.mxu0 %v403
        %435 = vmatprep.subr.mxu0 0.0
        %436 = vmatpush1.msra.mxu0 %v404
        %437 = vmatprep.subr.mxu0 0.0
        %438 = vmatpush1.msra.mxu0 %v405
        %439 = vmatprep.subr.mxu0 0.0
        %440 = vmatpush1.msra.mxu0 %v406
        %441 = vmatprep.subr.mxu0 0.0
        %442 = vmatpush1.msra.mxu0 %v407
        %443 = vmatprep.subr.mxu0 0.0
        %444 = vmatpush1.msra.mxu0 %v408
        %445 = vmatprep.subr.mxu0 0.0
        %446 = vmatpush1.msra.mxu0 0.0
        %447 = vmatprep.subr.mxu0 0.0
        %448 = vmatpush1.msra.mxu0 0.0
        %449 = vmatprep.subr.mxu0 0.0
        %450 = vmatpush1.msra.mxu0 0.0
        %451 = vmatprep.subr.mxu0 0.0
        %452 = vmatpush1.msra.mxu0 0.0
        %453 = vmatprep.subr.mxu0 0.0
        %454 = vmatpush1.msra.mxu0 0.0
        %455 = vmatprep.subr.mxu0 0.0
        %456 = vmatpush1.msra.mxu0 0.0
        %457 = vmatprep.subr.mxu0 0.0
        %458 = vmatpush1.msra.mxu0 0.0
        %459 = vmatprep.subr.mxu0 0.0
        %460 = vmatpush1.msra.mxu0 0.0
        %461 = vmatprep.subr.mxu0 0.0
        %462 = vmatpush1.msra.mxu0 0.0
        %463 = vmatprep.subr.mxu0 0.0
        %464 = vmatpush1.msra.mxu0 0.0
        %465 = vmatprep.subr.mxu0 0.0
        %466 = vmatpush1.msra.mxu0 0.0
        %467 = vmatprep.subr.mxu0 0.0
        %468 = vmatpush1.msra.mxu0 0.0
        %469 = vmatprep.subr.mxu0 0.0
        %470 = vmatpush1.msra.mxu0 0.0
        %471 = vmatprep.subr.mxu0 0.0
        %472 = vmatpush1.msra.mxu0 0.0
        %473 = vmatprep.subr.mxu0 0.0
        %474 = vmatpush1.msra.mxu0 0.0
        %475 = vmatprep.subr.mxu0 0.0
        %476 = vmatpush1.msra.mxu0 0.0
        %477 = vmatprep.mubr.f32.mxu0 0.0
        %478 = vmatmul.mubr.f32.gmra.mrb[0].mxu0 %v382
        %v479 = vpop.f32.mrb[0].mxu0
        %v480 = vadd.f32 %v412, %v479
        %v481 = vpop.f32.mrb[0].mxu0
        %482 = vmatprep.mubr.f32.mxu0 0.0
        %483 = vmatmul.mubr.f32.gmra.mrb[0].mxu0 %v383
        %v484 = vpop.f32.mrb[0].mxu0
        %v485 = vadd.f32 %v412, %v484
        %v486 = vpop.f32.mrb[0].mxu0
        %487 = vmatprep.mubr.f32.mxu0 0.0
        %488 = vmatmul.mubr.f32.gmra.mrb[0].mxu0 %v384
        %v489 = vpop.f32.mrb[0].mxu0
        %v490 = vadd.f32 %v412, %v489
        %v491 = vpop.f32.mrb[0].mxu0
        %492 = vmatprep.mubr.f32.mxu0 0.0
        %493 = vmatmul.mubr.f32.gmra.mrb[0].mxu0 %v385
        %v494 = vpop.f32.mrb[0].mxu0
        %v495 = vadd.f32 %v412, %v494
        %v496 = vpop.f32.mrb[0].mxu0
        %497 = vmatprep.mubr.f32.mxu0 0.0
        %498 = vmatmul.mubr.f32.gmra.mrb[0].mxu0 %v386
        %v499 = vpop.f32.mrb[0].mxu0
        %v500 = vadd.f32 %v412, %v499
        %v501 = vpop.f32.mrb[0].mxu0
        %502 = vmatprep.mubr.f32.mxu0 0.0
        %503 = vmatmul.mubr.f32.gmra.mrb[0].mxu0 %v387
        %v504 = vpop.f32.mrb[0].mxu0
        %v505 = vadd.f32 %v412, %v504
        %v506 = vpop.f32.mrb[0].mxu0
        %507 = vmatprep.mubr.f32.mxu0 0.0
        %508 = vmatmul.mubr.f32.gmra.mrb[0].mxu0 %v388
        %v509 = vpop.f32.mrb[0].mxu0
        %v510 = vadd.f32 %v412, %v509
        %v511 = vpop.f32.mrb[0].mxu0
        %512 = vmatprep.mubr.f32.mxu0 0.0
        %513 = vmatmul.mubr.f32.gmra.mrb[0].mxu0 %v389
        %v514 = vpop.f32.mrb[0].mxu0
        %v515 = vadd.f32 %v412, %v514
        %v516 = vpop.f32.mrb[0].mxu0
        %517 = vdwg.mxu0
        %v518 = vld [vmem:[#allocation7 + $0x8] sm:$0xff]
        %v519 = vld [vmem:[#allocation7 + $0x18] sm:$0xff]
        %v520 = vld [vmem:[#allocation7 + $0x28] sm:$0xff]
        %v521 = vld [vmem:[#allocation7 + $0x38] sm:$0xff]
        %v522 = vld [vmem:[#allocation7 + $0x48] sm:$0xff]
        %v523 = vld [vmem:[#allocation7 + $0x58] sm:$0xff]
        %v524 = vld [vmem:[#allocation7 + $0x68] sm:$0xff]
        %v525 = vld [vmem:[#allocation7 + $0x78] sm:$0xff]
        %v526 = vld [vmem:[#allocation7 + $0x88] sm:$0xff]
        %v527 = vld [vmem:[#allocation7 + $0x98] sm:$0xff]
        %v528 = vld [vmem:[#allocation7 + $0xa8] sm:$0xff]
        %v529 = vld [vmem:[#allocation7 + $0xb8] sm:$0xff]
        %v530 = vld [vmem:[#allocation7 + $0xc8] sm:$0xff]
        %v531 = vld [vmem:[#allocation7 + $0xd8] sm:$0xff]
        %v532 = vld [vmem:[#allocation7 + $0xe8] sm:$0xff]
        %v533 = vld [vmem:[#allocation7 + $0xf8] sm:$0xff]
        %v534 = vlaneseq
        %v535 = vshrl.u32 %v534, 7
        %v536 = vsub.s32 0, %v535
        %v537 = vrot.slane %v391, %v536
        %538 = vmatprep.subr.mxu0 0.0
        %539 = vmatpush1.msra.mxu0 %v518
        %540 = vmatprep.subr.mxu0 0.0
        %541 = vmatpush1.msra.mxu0 %v519
        %542 = vmatprep.subr.mxu0 0.0
        %543 = vmatpush1.msra.mxu0 %v520
        %544 = vmatprep.subr.mxu0 0.0
        %545 = vmatpush1.msra.mxu0 %v521
        %546 = vmatprep.subr.mxu0 0.0
        %547 = vmatpush1.msra.mxu0 %v522
        %548 = vmatprep.subr.mxu0 0.0
        %549 = vmatpush1.msra.mxu0 %v523
        %550 = vmatprep.subr.mxu0 0.0
        %551 = vmatpush1.msra.mxu0 %v524
        %552 = vmatprep.subr.mxu0 0.0
        %553 = vmatpush1.msra.mxu0 %v525
        %554 = vmatprep.subr.mxu0 0.0
        %555 = vmatpush1.msra.mxu0 %v526
        %556 = vmatprep.subr.mxu0 0.0
        %557 = vmatpush1.msra.mxu0 %v527
        %558 = vmatprep.subr.mxu0 0.0
        %559 = vmatpush1.msra.mxu0 %v528
        %560 = vmatprep.subr.mxu0 0.0
        %561 = vmatpush1.msra.mxu0 %v529
        %562 = vmatprep.subr.mxu0 0.0
        %563 = vmatpush1.msra.mxu0 %v530
        %564 = vmatprep.subr.mxu0 0.0
        %565 = vmatpush1.msra.mxu0 %v531
        %566 = vmatprep.subr.mxu0 0.0
        %567 = vmatpush1.msra.mxu0 %v532
        %568 = vmatprep.subr.mxu0 0.0
        %569 = vmatpush1.msra.mxu0 %v533
        %570 = vmatprep.subr.mxu0 0.0
        %571 = vmatpush1.msra.mxu0 0.0
        %572 = vmatprep.subr.mxu0 0.0
        %573 = vmatpush1.msra.mxu0 0.0
        %574 = vmatprep.subr.mxu0 0.0
        %575 = vmatpush1.msra.mxu0 0.0
        %576 = vmatprep.subr.mxu0 0.0
        %577 = vmatpush1.msra.mxu0 0.0
        %578 = vmatprep.subr.mxu0 0.0
        %579 = vmatpush1.msra.mxu0 0.0
        %580 = vmatprep.subr.mxu0 0.0
        %581 = vmatpush1.msra.mxu0 0.0
        %582 = vmatprep.subr.mxu0 0.0
        %583 = vmatpush1.msra.mxu0 0.0
        %584 = vmatprep.subr.mxu0 0.0
        %585 = vmatpush1.msra.mxu0 0.0
        %586 = vmatprep.subr.mxu0 0.0
        %587 = vmatpush1.msra.mxu0 0.0
        %588 = vmatprep.subr.mxu0 0.0
        %589 = vmatpush1.msra.mxu0 0.0
        %590 = vmatprep.subr.mxu0 0.0
        %591 = vmatpush1.msra.mxu0 0.0
        %592 = vmatprep.subr.mxu0 0.0
        %593 = vmatpush1.msra.mxu0 0.0
        %594 = vmatprep.subr.mxu0 0.0
        %595 = vmatpush1.msra.mxu0 0.0
        %596 = vmatprep.subr.mxu0 0.0
        %597 = vmatpush1.msra.mxu0 0.0
        %598 = vmatprep.subr.mxu0 0.0
        %599 = vmatpush1.msra.mxu0 0.0
        %600 = vmatprep.subr.mxu0 0.0
        %601 = vmatpush1.msra.mxu0 0.0
        %602 = vmatprep.mubr.f32.mxu0 0.0
        %603 = vmatmul.mubr.f32.gmra.mrb[0].mxu0 %v382
        %v604 = vpop.f32.mrb[0].mxu0
        %v605 = vadd.f32 %v537, %v604
        %v606 = vpop.f32.mrb[0].mxu0
        %607 = vmatprep.mubr.f32.mxu0 0.0
        %608 = vmatmul.mubr.f32.gmra.mrb[0].mxu0 %v383
        %v609 = vpop.f32.mrb[0].mxu0
        %v610 = vadd.f32 %v537, %v609
        %v611 = vpop.f32.mrb[0].mxu0
        %612 = vmatprep.mubr.f32.mxu0 0.0
        %613 = vmatmul.mubr.f32.gmra.mrb[0].mxu0 %v384
        %v614 = vpop.f32.mrb[0].mxu0
        %v615 = vadd.f32 %v537, %v614
        %v616 = vpop.f32.mrb[0].mxu0
        %617 = vmatprep.mubr.f32.mxu0 0.0
        %618 = vmatmul.mubr.f32.gmra.mrb[0].mxu0 %v385
        %v619 = vpop.f32.mrb[0].mxu0
        %v620 = vadd.f32 %v537, %v619
        %v621 = vpop.f32.mrb[0].mxu0
        %622 = vmatprep.mubr.f32.mxu0 0.0
        %623 = vmatmul.mubr.f32.gmra.mrb[0].mxu0 %v386
        %v624 = vpop.f32.mrb[0].mxu0
        %v625 = vadd.f32 %v537, %v624
        %v626 = vpop.f32.mrb[0].mxu0
        %627 = vmatprep.mubr.f32.mxu0 0.0
        %628 = vmatmul.mubr.f32.gmra.mrb[0].mxu0 %v387
        %v629 = vpop.f32.mrb[0].mxu0
        %v630 = vadd.f32 %v537, %v629
        %v631 = vpop.f32.mrb[0].mxu0
        %632 = vmatprep.mubr.f32.mxu0 0.0
        %633 = vmatmul.mubr.f32.gmra.mrb[0].mxu0 %v388
        %v634 = vpop.f32.mrb[0].mxu0
        %v635 = vadd.f32 %v537, %v634
        %v636 = vpop.f32.mrb[0].mxu0
        %637 = vmatprep.mubr.f32.mxu0 0.0
        %638 = vmatmul.mubr.f32.gmra.mrb[0].mxu0 %v389
        %v639 = vpop.f32.mrb[0].mxu0
        %v640 = vadd.f32 %v537, %v639
        %v641 = vpop.f32.mrb[0].mxu0
        %642 = vdwg.mxu0
        %v643 = vxor.u32 %v605, 2147483648
        %v644 = vxor.u32 %v610, 2147483648
        %v645 = vxor.u32 %v615, 2147483648
        %v646 = vxor.u32 %v620, 2147483648
        %v647 = vxor.u32 %v625, 2147483648
        %v648 = vxor.u32 %v630, 2147483648
        %v649 = vxor.u32 %v635, 2147483648
        %v650 = vxor.u32 %v640, 2147483648
        %v651 = vmul.f32 %v643, 1.442695
        %v652 = vpow.pop %v651
        %v653 = vmul.f32 %v644, 1.442695
        %v654 = vpow.pop %v653
        %v655 = vmul.f32 %v645, 1.442695
        %v656 = vpow.pop %v655
        %v657 = vmul.f32 %v646, 1.442695
        %v658 = vpow.pop %v657
        %v659 = vmul.f32 %v647, 1.442695
        %v660 = vpow.pop %v659
        %v661 = vmul.f32 %v648, 1.442695
        %v662 = vpow.pop %v661
        %v663 = vmul.f32 %v649, 1.442695
        %v664 = vpow.pop %v663
        %v665 = vmul.f32 %v650, 1.442695
        %v666 = vpow.pop %v665
        %v667 = vadd.f32 %v652, 1.0
        %v668 = vadd.f32 %v654, 1.0
        %v669 = vadd.f32 %v656, 1.0
        %v670 = vadd.f32 %v658, 1.0
        %v671 = vadd.f32 %v660, 1.0
        %v672 = vadd.f32 %v662, 1.0
        %v673 = vadd.f32 %v664, 1.0
        %v674 = vadd.f32 %v666, 1.0
        %v675 = vrcp.pop %v667
        %v676 = vmul.f32 1.0, %v675
        %v677 = vrcp.pop %v668
        %v678 = vmul.f32 1.0, %v677
        %v679 = vrcp.pop %v669
        %v680 = vmul.f32 1.0, %v679
        %v681 = vrcp.pop %v670
        %v682 = vmul.f32 1.0, %v681
        %v683 = vrcp.pop %v671
        %v684 = vmul.f32 1.0, %v683
        %v685 = vrcp.pop %v672
        %v686 = vmul.f32 1.0, %v685
        %v687 = vrcp.pop %v673
        %v688 = vmul.f32 1.0, %v687
        %v689 = vrcp.pop %v674
        %v690 = vmul.f32 1.0, %v689
        %v691 = vmul.f32 %v480, %v676
        %v692 = vmul.f32 %v485, %v678
        %v693 = vmul.f32 %v490, %v680
        %v694 = vmul.f32 %v495, %v682
        %v695 = vmul.f32 %v500, %v684
        %v696 = vmul.f32 %v505, %v686
        %v697 = vmul.f32 %v510, %v688
        %v698 = vmul.f32 %v515, %v690
        %v699 = vlaneseq
        %v700 = vshrl.u32 %v699, 7
        %v701 = vadd.s32 %v700, 8
        %v702 = vadd.s32 %v700, 16
        %v703 = vadd.s32 %v700, 24
        %v704 = vadd.s32 %v700, 32
        %v705 = vadd.s32 %v700, 40
        %v706 = vadd.s32 %v700, 48
        %v707 = vadd.s32 %v700, 56
        %s708 = smul.u32 %s32, 32
        %v709 = vstv %s708
        %v710 = vadd.s32 %v700, %v709
        %v711 = vadd.s32 %v701, %v709
        %v712 = vadd.s32 %v702, %v709
        %v713 = vadd.s32 %v703, %v709
        %v714 = vadd.s32 %v704, %v709
        %v715 = vadd.s32 %v705, %v709
        %v716 = vadd.s32 %v706, %v709
        %v717 = vadd.s32 %v707, %v709
        %vm718 = vcmp.ge.s32.totalorder %v710, 15
        %vm719 = vcmp.ge.s32.totalorder %v711, 15
        %vm720 = vcmp.ge.s32.totalorder %v712, 15
        %vm721 = vcmp.ge.s32.totalorder %v713, 15
        %vm722 = vcmp.ge.s32.totalorder %v714, 15
        %vm723 = vcmp.ge.s32.totalorder %v715, 15
        %vm724 = vcmp.ge.s32.totalorder %v716, 15
        %vm725 = vcmp.ge.s32.totalorder %v717, 15
        %vm726 = vcmp.lt.s32.totalorder %v710, 79
        %vm727 = vcmp.lt.s32.totalorder %v711, 79
        %vm728 = vcmp.lt.s32.totalorder %v712, 79
        %vm729 = vcmp.lt.s32.totalorder %v713, 79
        %vm730 = vcmp.lt.s32.totalorder %v714, 79
        %vm731 = vcmp.lt.s32.totalorder %v715, 79
        %vm732 = vcmp.lt.s32.totalorder %v716, 79
        %vm733 = vcmp.lt.s32.totalorder %v717, 79
        %vm734 = vmand %vm718, %vm726
        %vm735 = vmand %vm719, %vm727
        %vm736 = vmand %vm720, %vm728
        %vm737 = vmand %vm721, %vm729
        %vm738 = vmand %vm722, %vm730
        %vm739 = vmand %vm723, %vm731
        %vm740 = vmand %vm724, %vm732
        %vm741 = vmand %vm725, %vm733
        %v742 = vsel %vm734, 1, 0
        %v743 = vsel %vm735, 1, 0
        %v744 = vsel %vm736, 1, 0
        %v745 = vsel %vm737, 1, 0
        %v746 = vsel %vm738, 1, 0
        %v747 = vsel %vm739, 1, 0
        %v748 = vsel %vm740, 1, 0
        %v749 = vsel %vm741, 1, 0
        %vm750 = vcmp.eq.s32.totalorder %v742, 1
        %vm751 = vcmp.eq.s32.totalorder %v743, 1
        %vm752 = vcmp.eq.s32.totalorder %v744, 1
        %vm753 = vcmp.eq.s32.totalorder %v745, 1
        %vm754 = vcmp.eq.s32.totalorder %v746, 1
        %vm755 = vcmp.eq.s32.totalorder %v747, 1
        %vm756 = vcmp.eq.s32.totalorder %v748, 1
        %vm757 = vcmp.eq.s32.totalorder %v749, 1
        %v758 = vsel %vm750, %v691, 0.0
        %v759 = vsel %vm751, %v692, 0.0
        %v760 = vsel %vm752, %v693, 0.0
        %v761 = vsel %vm753, %v694, 0.0
        %v762 = vsel %vm754, %v695, 0.0
        %v763 = vsel %vm755, %v696, 0.0
        %v764 = vsel %vm756, %v697, 0.0
        %v765 = vsel %vm757, %v698, 0.0
        %v766 = vld [vmem:[#allocation10] sm:$0xff]
        %v767 = vld [vmem:[#allocation10 + $0x8] sm:$0xff]
        %v768 = vld [vmem:[#allocation10 + $0x10] sm:$0xff]
        %v769 = vld [vmem:[#allocation10 + $0x18] sm:$0xff]
        %v770 = vlaneseq
        %v771 = vshrl.u32 %v770, 7
        %v772 = vsub.s32 0, %v771
        %v773 = vrot.slane %v766, %v772
        %v774 = vmul.f32 %v758, %v773
        %v775 = vmul.f32 %v759, %v773
        %v776 = vmul.f32 %v760, %v773
        %v777 = vmul.f32 %v761, %v773
        %v778 = vlaneseq
        %v779 = vshrl.u32 %v778, 7
        %v780 = vsub.s32 1, %v779
        %v781 = vrot.slane %v766, %v780
        %v782 = vmul.f32 %v758, %v781
        %v783 = vmul.f32 %v759, %v781
        %v784 = vmul.f32 %v760, %v781
        %v785 = vmul.f32 %v761, %v781
        %v786 = vmul.f32 %v762, %v781
        %vm792 = vcmask 1046528
        %v793 = vrot.slane %v782, 1
        %v794 = vrot.slane %v783, 1
        %v795 = vsel %vm792, %v793, %v794
        %v796 = vrot.slane %v784, 1
        %v797 = vsel %vm792, %v794, %v796
        %v798 = vrot.slane %v785, 1
        %v799 = vsel %vm792, %v796, %v798
        %v800 = vrot.slane %v786, 1
        %v801 = vsel %vm792, %v798, %v800
        %v806 = vadd.f32 %v774, %v795
        %v807 = vadd.f32 %v775, %v797
        %v808 = vadd.f32 %v776, %v799
        %v809 = vadd.f32 %v777, %v801
        %v810 = vlaneseq
        %v811 = vshrl.u32 %v810, 7
        %v812 = vsub.s32 2, %v811
        %v813 = vrot.slane %v766, %v812
        %v814 = vmul.f32 %v758, %v813
        %v815 = vmul.f32 %v759, %v813
        %v816 = vmul.f32 %v760, %v813
        %v817 = vmul.f32 %v761, %v813
        %v818 = vmul.f32 %v762, %v813
        %vm824 = vcmask 1045504
        %v825 = vrot.slane %v814, 2
        %v826 = vrot.slane %v815, 2
        %v827 = vsel %vm824, %v825, %v826
        %v828 = vrot.slane %v816, 2
        %v829 = vsel %vm824, %v826, %v828
        %v830 = vrot.slane %v817, 2
        %v831 = vsel %vm824, %v828, %v830
        %v832 = vrot.slane %v818, 2
        %v833 = vsel %vm824, %v830, %v832
        %v838 = vadd.f32 %v806, %v827
        %v839 = vadd.f32 %v807, %v829
        %v840 = vadd.f32 %v808, %v831
        %v841 = vadd.f32 %v809, %v833
        %v842 = vlaneseq
        %v843 = vshrl.u32 %v842, 7
        %v844 = vsub.s32 3, %v843
        %v845 = vrot.slane %v766, %v844
        %v846 = vmul.f32 %v758, %v845
        %v847 = vmul.f32 %v759, %v845
        %v848 = vmul.f32 %v760, %v845
        %v849 = vmul.f32 %v761, %v845
        %v850 = vmul.f32 %v762, %v845
        %vm856 = vcmask 1044480
        %v857 = vrot.slane %v846, 3
        %v858 = vrot.slane %v847, 3
        %v859 = vsel %vm856, %v857, %v858
        %v860 = vrot.slane %v848, 3
        %v861 = vsel %vm856, %v858, %v860
        %v862 = vrot.slane %v849, 3
        %v863 = vsel %vm856, %v860, %v862
        %v864 = vrot.slane %v850, 3
        %v865 = vsel %vm856, %v862, %v864
        %v870 = vadd.f32 %v838, %v859
        %v871 = vadd.f32 %v839, %v861
        %v872 = vadd.f32 %v840, %v863
        %v873 = vadd.f32 %v841, %v865
        %v874 = vlaneseq
        %v875 = vshrl.u32 %v874, 7
        %v876 = vsub.s32 4, %v875
        %v877 = vrot.slane %v766, %v876
        %v878 = vmul.f32 %v758, %v877
        %v879 = vmul.f32 %v759, %v877
        %v880 = vmul.f32 %v760, %v877
        %v881 = vmul.f32 %v761, %v877
        %v882 = vmul.f32 %v762, %v877
        %vm888 = vcmask 1043456
        %v889 = vrot.slane %v878, 4
        %v890 = vrot.slane %v879, 4
        %v891 = vsel %vm888, %v889, %v890
        %v892 = vrot.slane %v880, 4
        %v893 = vsel %vm888, %v890, %v892
        %v894 = vrot.slane %v881, 4
        %v895 = vsel %vm888, %v892, %v894
        %v896 = vrot.slane %v882, 4
        %v897 = vsel %vm888, %v894, %v896
        %v902 = vadd.f32 %v870, %v891
        %v903 = vadd.f32 %v871, %v893
        %v904 = vadd.f32 %v872, %v895
        %v905 = vadd.f32 %v873, %v897
        %v906 = vlaneseq
        %v907 = vshrl.u32 %v906, 7
        %v908 = vsub.s32 5, %v907
        %v909 = vrot.slane %v766, %v908
        %v910 = vmul.f32 %v758, %v909
        %v911 = vmul.f32 %v759, %v909
        %v912 = vmul.f32 %v760, %v909
        %v913 = vmul.f32 %v761, %v909
        %v914 = vmul.f32 %v762, %v909
        %vm920 = vcmask 1042432
        %v921 = vrot.slane %v910, 5
        %v922 = vrot.slane %v911, 5
        %v923 = vsel %vm920, %v921, %v922
        %v924 = vrot.slane %v912, 5
        %v925 = vsel %vm920, %v922, %v924
        %v926 = vrot.slane %v913, 5
        %v927 = vsel %vm920, %v924, %v926
        %v928 = vrot.slane %v914, 5
        %v929 = vsel %vm920, %v926, %v928
        %v934 = vadd.f32 %v902, %v923
        %v935 = vadd.f32 %v903, %v925
        %v936 = vadd.f32 %v904, %v927
        %v937 = vadd.f32 %v905, %v929
        %v938 = vlaneseq
        %v939 = vshrl.u32 %v938, 7
        %v940 = vsub.s32 6, %v939
        %v941 = vrot.slane %v766, %v940
        %v942 = vmul.f32 %v758, %v941
        %v943 = vmul.f32 %v759, %v941
        %v944 = vmul.f32 %v760, %v941
        %v945 = vmul.f32 %v761, %v941
        %v946 = vmul.f32 %v762, %v941
        %vm952 = vcmask 1041408
        %v953 = vrot.slane %v942, 6
        %v954 = vrot.slane %v943, 6
        %v955 = vsel %vm952, %v953, %v954
        %v956 = vrot.slane %v944, 6
        %v957 = vsel %vm952, %v954, %v956
        %v958 = vrot.slane %v945, 6
        %v959 = vsel %vm952, %v956, %v958
        %v960 = vrot.slane %v946, 6
        %v961 = vsel %vm952, %v958, %v960
        %v966 = vadd.f32 %v934, %v955
        %v967 = vadd.f32 %v935, %v957
        %v968 = vadd.f32 %v936, %v959
        %v969 = vadd.f32 %v937, %v961
        %v970 = vlaneseq
        %v971 = vshrl.u32 %v970, 7
        %v972 = vsub.s32 7, %v971
        %v973 = vrot.slane %v766, %v972
        %v974 = vmul.f32 %v758, %v973
        %v975 = vmul.f32 %v759, %v973
        %v976 = vmul.f32 %v760, %v973
        %v977 = vmul.f32 %v761, %v973
        %v978 = vmul.f32 %v762, %v973
        %vm984 = vcmask 1040384
        %v985 = vrot.slane %v974, 7
        %v986 = vrot.slane %v975, 7
        %v987 = vsel %vm984, %v985, %v986
        %v988 = vrot.slane %v976, 7
        %v989 = vsel %vm984, %v986, %v988
        %v990 = vrot.slane %v977, 7
        %v991 = vsel %vm984, %v988, %v990
        %v992 = vrot.slane %v978, 7
        %v993 = vsel %vm984, %v990, %v992
        %v998 = vadd.f32 %v966, %v987
        %v999 = vadd.f32 %v967, %v989
        %v1000 = vadd.f32 %v968, %v991
        %v1001 = vadd.f32 %v969, %v993
        %v1002 = vlaneseq
        %v1003 = vshrl.u32 %v1002, 7
        %v1004 = vsub.s32 0, %v1003
        %v1005 = vrot.slane %v767, %v1004
        %v1006 = vmul.f32 %v759, %v1005
        %v1007 = vmul.f32 %v760, %v1005
        %v1008 = vmul.f32 %v761, %v1005
        %v1009 = vmul.f32 %v762, %v1005
        %v1010 = vadd.f32 %v998, %v1006
        %v1011 = vadd.f32 %v999, %v1007
        %v1012 = vadd.f32 %v1000, %v1008
        %v1013 = vadd.f32 %v1001, %v1009
        %v1014 = vlaneseq
        %v1015 = vshrl.u32 %v1014, 7
        %v1016 = vsub.s32 1, %v1015
        %v1017 = vrot.slane %v767, %v1016
        %v1018 = vmul.f32 %v759, %v1017
        %v1019 = vmul.f32 %v760, %v1017
        %v1020 = vmul.f32 %v761, %v1017
        %v1021 = vmul.f32 %v762, %v1017
        %v1022 = vmul.f32 %v763, %v1017
        %v1028 = vrot.slane %v1018, 1
        %v1029 = vrot.slane %v1019, 1
        %v1030 = vsel %vm792, %v1028, %v1029
        %v1031 = vrot.slane %v1020, 1
        %v1032 = vsel %vm792, %v1029, %v1031
        %v1033 = vrot.slane %v1021, 1
        %v1034 = vsel %vm792, %v1031, %v1033
        %v1035 = vrot.slane %v1022, 1
        %v1036 = vsel %vm792, %v1033, %v1035
        %v1041 = vadd.f32 %v1010, %v1030
        %v1042 = vadd.f32 %v1011, %v1032
        %v1043 = vadd.f32 %v1012, %v1034
        %v1044 = vadd.f32 %v1013, %v1036
        %v1045 = vlaneseq
        %v1046 = vshrl.u32 %v1045, 7
        %v1047 = vsub.s32 2, %v1046
        %v1048 = vrot.slane %v767, %v1047
        %v1049 = vmul.f32 %v759, %v1048
        %v1050 = vmul.f32 %v760, %v1048
        %v1051 = vmul.f32 %v761, %v1048
        %v1052 = vmul.f32 %v762, %v1048
        %v1053 = vmul.f32 %v763, %v1048
        %v1059 = vrot.slane %v1049, 2
        %v1060 = vrot.slane %v1050, 2
        %v1061 = vsel %vm824, %v1059, %v1060
        %v1062 = vrot.slane %v1051, 2
        %v1063 = vsel %vm824, %v1060, %v1062
        %v1064 = vrot.slane %v1052, 2
        %v1065 = vsel %vm824, %v1062, %v1064
        %v1066 = vrot.slane %v1053, 2
        %v1067 = vsel %vm824, %v1064, %v1066
        %v1072 = vadd.f32 %v1041, %v1061
        %v1073 = vadd.f32 %v1042, %v1063
        %v1074 = vadd.f32 %v1043, %v1065
        %v1075 = vadd.f32 %v1044, %v1067
        %v1076 = vlaneseq
        %v1077 = vshrl.u32 %v1076, 7
        %v1078 = vsub.s32 3, %v1077
        %v1079 = vrot.slane %v767, %v1078
        %v1080 = vmul.f32 %v759, %v1079
        %v1081 = vmul.f32 %v760, %v1079
        %v1082 = vmul.f32 %v761, %v1079
        %v1083 = vmul.f32 %v762, %v1079
        %v1084 = vmul.f32 %v763, %v1079
        %v1090 = vrot.slane %v1080, 3
        %v1091 = vrot.slane %v1081, 3
        %v1092 = vsel %vm856, %v1090, %v1091
        %v1093 = vrot.slane %v1082, 3
        %v1094 = vsel %vm856, %v1091, %v1093
        %v1095 = vrot.slane %v1083, 3
        %v1096 = vsel %vm856, %v1093, %v1095
        %v1097 = vrot.slane %v1084, 3
        %v1098 = vsel %vm856, %v1095, %v1097
        %v1103 = vadd.f32 %v1072, %v1092
        %v1104 = vadd.f32 %v1073, %v1094
        %v1105 = vadd.f32 %v1074, %v1096
        %v1106 = vadd.f32 %v1075, %v1098
        %v1107 = vlaneseq
        %v1108 = vshrl.u32 %v1107, 7
        %v1109 = vsub.s32 4, %v1108
        %v1110 = vrot.slane %v767, %v1109
        %v1111 = vmul.f32 %v759, %v1110
        %v1112 = vmul.f32 %v760, %v1110
        %v1113 = vmul.f32 %v761, %v1110
        %v1114 = vmul.f32 %v762, %v1110
        %v1115 = vmul.f32 %v763, %v1110
        %v1121 = vrot.slane %v1111, 4
        %v1122 = vrot.slane %v1112, 4
        %v1123 = vsel %vm888, %v1121, %v1122
        %v1124 = vrot.slane %v1113, 4
        %v1125 = vsel %vm888, %v1122, %v1124
        %v1126 = vrot.slane %v1114, 4
        %v1127 = vsel %vm888, %v1124, %v1126
        %v1128 = vrot.slane %v1115, 4
        %v1129 = vsel %vm888, %v1126, %v1128
        %v1134 = vadd.f32 %v1103, %v1123
        %v1135 = vadd.f32 %v1104, %v1125
        %v1136 = vadd.f32 %v1105, %v1127
        %v1137 = vadd.f32 %v1106, %v1129
        %v1138 = vlaneseq
        %v1139 = vshrl.u32 %v1138, 7
        %v1140 = vsub.s32 5, %v1139
        %v1141 = vrot.slane %v767, %v1140
        %v1142 = vmul.f32 %v759, %v1141
        %v1143 = vmul.f32 %v760, %v1141
        %v1144 = vmul.f32 %v761, %v1141
        %v1145 = vmul.f32 %v762, %v1141
        %v1146 = vmul.f32 %v763, %v1141
        %v1152 = vrot.slane %v1142, 5
        %v1153 = vrot.slane %v1143, 5
        %v1154 = vsel %vm920, %v1152, %v1153
        %v1155 = vrot.slane %v1144, 5
        %v1156 = vsel %vm920, %v1153, %v1155
        %v1157 = vrot.slane %v1145, 5
        %v1158 = vsel %vm920, %v1155, %v1157
        %v1159 = vrot.slane %v1146, 5
        %v1160 = vsel %vm920, %v1157, %v1159
        %v1165 = vadd.f32 %v1134, %v1154
        %v1166 = vadd.f32 %v1135, %v1156
        %v1167 = vadd.f32 %v1136, %v1158
        %v1168 = vadd.f32 %v1137, %v1160
        %v1169 = vlaneseq
        %v1170 = vshrl.u32 %v1169, 7
        %v1171 = vsub.s32 6, %v1170
        %v1172 = vrot.slane %v767, %v1171
        %v1173 = vmul.f32 %v759, %v1172
        %v1174 = vmul.f32 %v760, %v1172
        %v1175 = vmul.f32 %v761, %v1172
        %v1176 = vmul.f32 %v762, %v1172
        %v1177 = vmul.f32 %v763, %v1172
        %v1183 = vrot.slane %v1173, 6
        %v1184 = vrot.slane %v1174, 6
        %v1185 = vsel %vm952, %v1183, %v1184
        %v1186 = vrot.slane %v1175, 6
        %v1187 = vsel %vm952, %v1184, %v1186
        %v1188 = vrot.slane %v1176, 6
        %v1189 = vsel %vm952, %v1186, %v1188
        %v1190 = vrot.slane %v1177, 6
        %v1191 = vsel %vm952, %v1188, %v1190
        %v1196 = vadd.f32 %v1165, %v1185
        %v1197 = vadd.f32 %v1166, %v1187
        %v1198 = vadd.f32 %v1167, %v1189
        %v1199 = vadd.f32 %v1168, %v1191
        %v1200 = vlaneseq
        %v1201 = vshrl.u32 %v1200, 7
        %v1202 = vsub.s32 7, %v1201
        %v1203 = vrot.slane %v767, %v1202
        %v1204 = vmul.f32 %v759, %v1203
        %v1205 = vmul.f32 %v760, %v1203
        %v1206 = vmul.f32 %v761, %v1203
        %v1207 = vmul.f32 %v762, %v1203
        %v1208 = vmul.f32 %v763, %v1203
        %v1214 = vrot.slane %v1204, 7
        %v1215 = vrot.slane %v1205, 7
        %v1216 = vsel %vm984, %v1214, %v1215
        %v1217 = vrot.slane %v1206, 7
        %v1218 = vsel %vm984, %v1215, %v1217
        %v1219 = vrot.slane %v1207, 7
        %v1220 = vsel %vm984, %v1217, %v1219
        %v1221 = vrot.slane %v1208, 7
        %v1222 = vsel %vm984, %v1219, %v1221
        %v1227 = vadd.f32 %v1196, %v1216
        %v1228 = vadd.f32 %v1197, %v1218
        %v1229 = vadd.f32 %v1198, %v1220
        %v1230 = vadd.f32 %v1199, %v1222
        %v1231 = vlaneseq
        %v1232 = vshrl.u32 %v1231, 7
        %v1233 = vsub.s32 0, %v1232
        %v1234 = vrot.slane %v768, %v1233
        %v1235 = vmul.f32 %v760, %v1234
        %v1236 = vmul.f32 %v761, %v1234
        %v1237 = vmul.f32 %v762, %v1234
        %v1238 = vmul.f32 %v763, %v1234
        %v1239 = vadd.f32 %v1227, %v1235
        %v1240 = vadd.f32 %v1228, %v1236
        %v1241 = vadd.f32 %v1229, %v1237
        %v1242 = vadd.f32 %v1230, %v1238
        %v1243 = vlaneseq
        %v1244 = vshrl.u32 %v1243, 7
        %v1245 = vsub.s32 1, %v1244
        %v1246 = vrot.slane %v768, %v1245
        %v1247 = vmul.f32 %v760, %v1246
        %v1248 = vmul.f32 %v761, %v1246
        %v1249 = vmul.f32 %v762, %v1246
        %v1250 = vmul.f32 %v763, %v1246
        %v1251 = vmul.f32 %v764, %v1246
        %v1257 = vrot.slane %v1247, 1
        %v1258 = vrot.slane %v1248, 1
        %v1259 = vsel %vm792, %v1257, %v1258
        %v1260 = vrot.slane %v1249, 1
        %v1261 = vsel %vm792, %v1258, %v1260
        %v1262 = vrot.slane %v1250, 1
        %v1263 = vsel %vm792, %v1260, %v1262
        %v1264 = vrot.slane %v1251, 1
        %v1265 = vsel %vm792, %v1262, %v1264
        %v1270 = vadd.f32 %v1239, %v1259
        %v1271 = vadd.f32 %v1240, %v1261
        %v1272 = vadd.f32 %v1241, %v1263
        %v1273 = vadd.f32 %v1242, %v1265
        %v1274 = vlaneseq
        %v1275 = vshrl.u32 %v1274, 7
        %v1276 = vsub.s32 2, %v1275
        %v1277 = vrot.slane %v768, %v1276
        %v1278 = vmul.f32 %v760, %v1277
        %v1279 = vmul.f32 %v761, %v1277
        %v1280 = vmul.f32 %v762, %v1277
        %v1281 = vmul.f32 %v763, %v1277
        %v1282 = vmul.f32 %v764, %v1277
        %v1288 = vrot.slane %v1278, 2
        %v1289 = vrot.slane %v1279, 2
        %v1290 = vsel %vm824, %v1288, %v1289
        %v1291 = vrot.slane %v1280, 2
        %v1292 = vsel %vm824, %v1289, %v1291
        %v1293 = vrot.slane %v1281, 2
        %v1294 = vsel %vm824, %v1291, %v1293
        %v1295 = vrot.slane %v1282, 2
        %v1296 = vsel %vm824, %v1293, %v1295
        %v1301 = vadd.f32 %v1270, %v1290
        %v1302 = vadd.f32 %v1271, %v1292
        %v1303 = vadd.f32 %v1272, %v1294
        %v1304 = vadd.f32 %v1273, %v1296
        %v1305 = vlaneseq
        %v1306 = vshrl.u32 %v1305, 7
        %v1307 = vsub.s32 3, %v1306
        %v1308 = vrot.slane %v768, %v1307
        %v1309 = vmul.f32 %v760, %v1308
        %v1310 = vmul.f32 %v761, %v1308
        %v1311 = vmul.f32 %v762, %v1308
        %v1312 = vmul.f32 %v763, %v1308
        %v1313 = vmul.f32 %v764, %v1308
        %v1319 = vrot.slane %v1309, 3
        %v1320 = vrot.slane %v1310, 3
        %v1321 = vsel %vm856, %v1319, %v1320
        %v1322 = vrot.slane %v1311, 3
        %v1323 = vsel %vm856, %v1320, %v1322
        %v1324 = vrot.slane %v1312, 3
        %v1325 = vsel %vm856, %v1322, %v1324
        %v1326 = vrot.slane %v1313, 3
        %v1327 = vsel %vm856, %v1324, %v1326
        %v1332 = vadd.f32 %v1301, %v1321
        %v1333 = vadd.f32 %v1302, %v1323
        %v1334 = vadd.f32 %v1303, %v1325
        %v1335 = vadd.f32 %v1304, %v1327
        %v1336 = vlaneseq
        %v1337 = vshrl.u32 %v1336, 7
        %v1338 = vsub.s32 4, %v1337
        %v1339 = vrot.slane %v768, %v1338
        %v1340 = vmul.f32 %v760, %v1339
        %v1341 = vmul.f32 %v761, %v1339
        %v1342 = vmul.f32 %v762, %v1339
        %v1343 = vmul.f32 %v763, %v1339
        %v1344 = vmul.f32 %v764, %v1339
        %v1350 = vrot.slane %v1340, 4
        %v1351 = vrot.slane %v1341, 4
        %v1352 = vsel %vm888, %v1350, %v1351
        %v1353 = vrot.slane %v1342, 4
        %v1354 = vsel %vm888, %v1351, %v1353
        %v1355 = vrot.slane %v1343, 4
        %v1356 = vsel %vm888, %v1353, %v1355
        %v1357 = vrot.slane %v1344, 4
        %v1358 = vsel %vm888, %v1355, %v1357
        %v1363 = vadd.f32 %v1332, %v1352
        %v1364 = vadd.f32 %v1333, %v1354
        %v1365 = vadd.f32 %v1334, %v1356
        %v1366 = vadd.f32 %v1335, %v1358
        %v1367 = vlaneseq
        %v1368 = vshrl.u32 %v1367, 7
        %v1369 = vsub.s32 5, %v1368
        %v1370 = vrot.slane %v768, %v1369
        %v1371 = vmul.f32 %v760, %v1370
        %v1372 = vmul.f32 %v761, %v1370
        %v1373 = vmul.f32 %v762, %v1370
        %v1374 = vmul.f32 %v763, %v1370
        %v1375 = vmul.f32 %v764, %v1370
        %v1381 = vrot.slane %v1371, 5
        %v1382 = vrot.slane %v1372, 5
        %v1383 = vsel %vm920, %v1381, %v1382
        %v1384 = vrot.slane %v1373, 5
        %v1385 = vsel %vm920, %v1382, %v1384
        %v1386 = vrot.slane %v1374, 5
        %v1387 = vsel %vm920, %v1384, %v1386
        %v1388 = vrot.slane %v1375, 5
        %v1389 = vsel %vm920, %v1386, %v1388
        %v1394 = vadd.f32 %v1363, %v1383
        %v1395 = vadd.f32 %v1364, %v1385
        %v1396 = vadd.f32 %v1365, %v1387
        %v1397 = vadd.f32 %v1366, %v1389
        %v1398 = vlaneseq
        %v1399 = vshrl.u32 %v1398, 7
        %v1400 = vsub.s32 6, %v1399
        %v1401 = vrot.slane %v768, %v1400
        %v1402 = vmul.f32 %v760, %v1401
        %v1403 = vmul.f32 %v761, %v1401
        %v1404 = vmul.f32 %v762, %v1401
        %v1405 = vmul.f32 %v763, %v1401
        %v1406 = vmul.f32 %v764, %v1401
        %v1412 = vrot.slane %v1402, 6
        %v1413 = vrot.slane %v1403, 6
        %v1414 = vsel %vm952, %v1412, %v1413
        %v1415 = vrot.slane %v1404, 6
        %v1416 = vsel %vm952, %v1413, %v1415
        %v1417 = vrot.slane %v1405, 6
        %v1418 = vsel %vm952, %v1415, %v1417
        %v1419 = vrot.slane %v1406, 6
        %v1420 = vsel %vm952, %v1417, %v1419
        %v1425 = vadd.f32 %v1394, %v1414
        %v1426 = vadd.f32 %v1395, %v1416
        %v1427 = vadd.f32 %v1396, %v1418
        %v1428 = vadd.f32 %v1397, %v1420
        %v1429 = vlaneseq
        %v1430 = vshrl.u32 %v1429, 7
        %v1431 = vsub.s32 7, %v1430
        %v1432 = vrot.slane %v768, %v1431
        %v1433 = vmul.f32 %v760, %v1432
        %v1434 = vmul.f32 %v761, %v1432
        %v1435 = vmul.f32 %v762, %v1432
        %v1436 = vmul.f32 %v763, %v1432
        %v1437 = vmul.f32 %v764, %v1432
        %v1443 = vrot.slane %v1433, 7
        %v1444 = vrot.slane %v1434, 7
        %v1445 = vsel %vm984, %v1443, %v1444
        %v1446 = vrot.slane %v1435, 7
        %v1447 = vsel %vm984, %v1444, %v1446
        %v1448 = vrot.slane %v1436, 7
        %v1449 = vsel %vm984, %v1446, %v1448
        %v1450 = vrot.slane %v1437, 7
        %v1451 = vsel %vm984, %v1448, %v1450
        %v1456 = vadd.f32 %v1425, %v1445
        %v1457 = vadd.f32 %v1426, %v1447
        %v1458 = vadd.f32 %v1427, %v1449
        %v1459 = vadd.f32 %v1428, %v1451
        %v1460 = vlaneseq
        %v1461 = vshrl.u32 %v1460, 7
        %v1462 = vsub.s32 0, %v1461
        %v1463 = vrot.slane %v769, %v1462
        %v1464 = vmul.f32 %v761, %v1463
        %v1465 = vmul.f32 %v762, %v1463
        %v1466 = vmul.f32 %v763, %v1463
        %v1467 = vmul.f32 %v764, %v1463
        %v1468 = vadd.f32 %v1456, %v1464
        %v1469 = vadd.f32 %v1457, %v1465
        %v1470 = vadd.f32 %v1458, %v1466
        %v1471 = vadd.f32 %v1459, %v1467
        %v1472 = vlaneseq
        %v1473 = vshrl.u32 %v1472, 7
        %v1474 = vsub.s32 1, %v1473
        %v1475 = vrot.slane %v769, %v1474
        %v1476 = vmul.f32 %v761, %v1475
        %v1477 = vmul.f32 %v762, %v1475
        %v1478 = vmul.f32 %v763, %v1475
        %v1479 = vmul.f32 %v764, %v1475
        %v1480 = vmul.f32 %v765, %v1475
        %v1486 = vrot.slane %v1476, 1
        %v1487 = vrot.slane %v1477, 1
        %v1488 = vsel %vm792, %v1486, %v1487
        %v1489 = vrot.slane %v1478, 1
        %v1490 = vsel %vm792, %v1487, %v1489
        %v1491 = vrot.slane %v1479, 1
        %v1492 = vsel %vm792, %v1489, %v1491
        %v1493 = vrot.slane %v1480, 1
        %v1494 = vsel %vm792, %v1491, %v1493
        %v1499 = vadd.f32 %v1468, %v1488
        %v1500 = vadd.f32 %v1469, %v1490
        %v1501 = vadd.f32 %v1470, %v1492
        %v1502 = vadd.f32 %v1471, %v1494
        %v1503 = vlaneseq
        %v1504 = vshrl.u32 %v1503, 7
        %v1505 = vsub.s32 2, %v1504
        %v1506 = vrot.slane %v769, %v1505
        %v1507 = vmul.f32 %v761, %v1506
        %v1508 = vmul.f32 %v762, %v1506
        %v1509 = vmul.f32 %v763, %v1506
        %v1510 = vmul.f32 %v764, %v1506
        %v1511 = vmul.f32 %v765, %v1506
        %v1517 = vrot.slane %v1507, 2
        %v1518 = vrot.slane %v1508, 2
        %v1519 = vsel %vm824, %v1517, %v1518
        %v1520 = vrot.slane %v1509, 2
        %v1521 = vsel %vm824, %v1518, %v1520
        %v1522 = vrot.slane %v1510, 2
        %v1523 = vsel %vm824, %v1520, %v1522
        %v1524 = vrot.slane %v1511, 2
        %v1525 = vsel %vm824, %v1522, %v1524
        %v1530 = vadd.f32 %v1499, %v1519
        %v1531 = vadd.f32 %v1500, %v1521
        %v1532 = vadd.f32 %v1501, %v1523
        %v1533 = vadd.f32 %v1502, %v1525
        %v1534 = vlaneseq
        %v1535 = vshrl.u32 %v1534, 7
        %v1536 = vsub.s32 3, %v1535
        %v1537 = vrot.slane %v769, %v1536
        %v1538 = vmul.f32 %v761, %v1537
        %v1539 = vmul.f32 %v762, %v1537
        %v1540 = vmul.f32 %v763, %v1537
        %v1541 = vmul.f32 %v764, %v1537
        %v1542 = vmul.f32 %v765, %v1537
        %v1548 = vrot.slane %v1538, 3
        %v1549 = vrot.slane %v1539, 3
        %v1550 = vsel %vm856, %v1548, %v1549
        %v1551 = vrot.slane %v1540, 3
        %v1552 = vsel %vm856, %v1549, %v1551
        %v1553 = vrot.slane %v1541, 3
        %v1554 = vsel %vm856, %v1551, %v1553
        %v1555 = vrot.slane %v1542, 3
        %v1556 = vsel %vm856, %v1553, %v1555
        %v1561 = vadd.f32 %v1530, %v1550
        %v1562 = vadd.f32 %v1531, %v1552
        %v1563 = vadd.f32 %v1532, %v1554
        %v1564 = vadd.f32 %v1533, %v1556
        %v1565 = vlaneseq
        %v1566 = vshrl.u32 %v1565, 7
        %v1567 = vsub.s32 4, %v1566
        %v1568 = vrot.slane %v769, %v1567
        %v1569 = vmul.f32 %v761, %v1568
        %v1570 = vmul.f32 %v762, %v1568
        %v1571 = vmul.f32 %v763, %v1568
        %v1572 = vmul.f32 %v764, %v1568
        %v1573 = vmul.f32 %v765, %v1568
        %v1579 = vrot.slane %v1569, 4
        %v1580 = vrot.slane %v1570, 4
        %v1581 = vsel %vm888, %v1579, %v1580
        %v1582 = vrot.slane %v1571, 4
        %v1583 = vsel %vm888, %v1580, %v1582
        %v1584 = vrot.slane %v1572, 4
        %v1585 = vsel %vm888, %v1582, %v1584
        %v1586 = vrot.slane %v1573, 4
        %v1587 = vsel %vm888, %v1584, %v1586
        %v1592 = vadd.f32 %v1561, %v1581
        %v1593 = vadd.f32 %v1562, %v1583
        %v1594 = vadd.f32 %v1563, %v1585
        %v1595 = vadd.f32 %v1564, %v1587
        %v1596 = vlaneseq
        %v1597 = vshrl.u32 %v1596, 7
        %v1598 = vsub.s32 5, %v1597
        %v1599 = vrot.slane %v769, %v1598
        %v1600 = vmul.f32 %v761, %v1599
        %v1601 = vmul.f32 %v762, %v1599
        %v1602 = vmul.f32 %v763, %v1599
        %v1603 = vmul.f32 %v764, %v1599
        %v1604 = vmul.f32 %v765, %v1599
        %v1610 = vrot.slane %v1600, 5
        %v1611 = vrot.slane %v1601, 5
        %v1612 = vsel %vm920, %v1610, %v1611
        %v1613 = vrot.slane %v1602, 5
        %v1614 = vsel %vm920, %v1611, %v1613
        %v1615 = vrot.slane %v1603, 5
        %v1616 = vsel %vm920, %v1613, %v1615
        %v1617 = vrot.slane %v1604, 5
        %v1618 = vsel %vm920, %v1615, %v1617
        %v1623 = vadd.f32 %v1592, %v1612
        %v1624 = vadd.f32 %v1593, %v1614
        %v1625 = vadd.f32 %v1594, %v1616
        %v1626 = vadd.f32 %v1595, %v1618
        %v1627 = vlaneseq
        %v1628 = vshrl.u32 %v1627, 7
        %v1629 = vsub.s32 6, %v1628
        %v1630 = vrot.slane %v769, %v1629
        %v1631 = vmul.f32 %v761, %v1630
        %v1632 = vmul.f32 %v762, %v1630
        %v1633 = vmul.f32 %v763, %v1630
        %v1634 = vmul.f32 %v764, %v1630
        %v1635 = vmul.f32 %v765, %v1630
        %v1641 = vrot.slane %v1631, 6
        %v1642 = vrot.slane %v1632, 6
        %v1643 = vsel %vm952, %v1641, %v1642
        %v1644 = vrot.slane %v1633, 6
        %v1645 = vsel %vm952, %v1642, %v1644
        %v1646 = vrot.slane %v1634, 6
        %v1647 = vsel %vm952, %v1644, %v1646
        %v1648 = vrot.slane %v1635, 6
        %v1649 = vsel %vm952, %v1646, %v1648
        %v1654 = vadd.f32 %v1623, %v1643
        %v1655 = vadd.f32 %v1624, %v1645
        %v1656 = vadd.f32 %v1625, %v1647
        %v1657 = vadd.f32 %v1626, %v1649
        %v1658 = vlaneseq
        %v1659 = vshrl.u32 %v1658, 7
        %v1660 = vsub.s32 7, %v1659
        %v1661 = vrot.slane %v769, %v1660
        %v1662 = vadd.f32 %v1654, %v1661
        %v1663 = vadd.f32 %v1655, %v1661
        %v1664 = vadd.f32 %v1656, %v1661
        %v1665 = vadd.f32 %v1657, %v1661
        %v1666 = vmax.f32 %v1662, 0.0
        %v1667 = vmax.f32 %v1663, 0.0
        %v1668 = vmax.f32 %v1664, 0.0
        %v1669 = vmax.f32 %v1665, 0.0
        %v1670 = vld [vmem:[#allocation8] sm:$0xff]
        %v1671 = vld [vmem:[#allocation8 + $0x8] sm:$0xff]
        %v1672 = vld [vmem:[#allocation8 + $0x10] sm:$0xff]
        %v1673 = vld [vmem:[#allocation8 + $0x18] sm:$0xff]
        %v1674 = vld [vmem:[#allocation8 + $0x20] sm:$0xff]
        %v1675 = vld [vmem:[#allocation8 + $0x28] sm:$0xff]
        %v1676 = vld [vmem:[#allocation8 + $0x30] sm:$0xff]
        %v1677 = vld [vmem:[#allocation8 + $0x38] sm:$0xff]
        %v1678 = vld [vmem:[#allocation8 + $0x40] sm:$0xff]
        %v1679 = vld [vmem:[#allocation8 + $0x48] sm:$0xff]
        %v1680 = vld [vmem:[#allocation8 + $0x50] sm:$0xff]
        %v1681 = vld [vmem:[#allocation8 + $0x58] sm:$0xff]
        %v1682 = vld [vmem:[#allocation8 + $0x60] sm:$0xff]
        %v1683 = vld [vmem:[#allocation8 + $0x68] sm:$0xff]
        %v1684 = vld [vmem:[#allocation8 + $0x70] sm:$0xff]
        %v1685 = vld [vmem:[#allocation8 + $0x78] sm:$0xff]
        %v1686 = vlaneseq
        %v1687 = vshrl.u32 %v1686, 7
        %v1688 = vsub.s32 0, %v1687
        %v1689 = vrot.slane %v392, %v1688
        %1690 = vmatprep.subr.mxu0 0.0
        %1691 = vmatpush1.msra.mxu0 %v1670
        %1692 = vmatprep.subr.mxu0 0.0
        %1693 = vmatpush1.msra.mxu0 %v1671
        %1694 = vmatprep.subr.mxu0 0.0
        %1695 = vmatpush1.msra.mxu0 %v1672
        %1696 = vmatprep.subr.mxu0 0.0
        %1697 = vmatpush1.msra.mxu0 %v1673
        %1698 = vmatprep.subr.mxu0 0.0
        %1699 = vmatpush1.msra.mxu0 %v1674
        %1700 = vmatprep.subr.mxu0 0.0
        %1701 = vmatpush1.msra.mxu0 %v1675
        %1702 = vmatprep.subr.mxu0 0.0
        %1703 = vmatpush1.msra.mxu0 %v1676
        %1704 = vmatprep.subr.mxu0 0.0
        %1705 = vmatpush1.msra.mxu0 %v1677
        %1706 = vmatprep.subr.mxu0 0.0
        %1707 = vmatpush1.msra.mxu0 %v1678
        %1708 = vmatprep.subr.mxu0 0.0
        %1709 = vmatpush1.msra.mxu0 %v1679
        %1710 = vmatprep.subr.mxu0 0.0
        %1711 = vmatpush1.msra.mxu0 %v1680
        %1712 = vmatprep.subr.mxu0 0.0
        %1713 = vmatpush1.msra.mxu0 %v1681
        %1714 = vmatprep.subr.mxu0 0.0
        %1715 = vmatpush1.msra.mxu0 %v1682
        %1716 = vmatprep.subr.mxu0 0.0
        %1717 = vmatpush1.msra.mxu0 %v1683
        %1718 = vmatprep.subr.mxu0 0.0
        %1719 = vmatpush1.msra.mxu0 %v1684
        %1720 = vmatprep.subr.mxu0 0.0
        %1721 = vmatpush1.msra.mxu0 %v1685
        %1722 = vmatprep.subr.mxu0 0.0
        %1723 = vmatpush1.msra.mxu0 0.0
        %1724 = vmatprep.subr.mxu0 0.0
        %1725 = vmatpush1.msra.mxu0 0.0
        %1726 = vmatprep.subr.mxu0 0.0
        %1727 = vmatpush1.msra.mxu0 0.0
        %1728 = vmatprep.subr.mxu0 0.0
        %1729 = vmatpush1.msra.mxu0 0.0
        %1730 = vmatprep.subr.mxu0 0.0
        %1731 = vmatpush1.msra.mxu0 0.0
        %1732 = vmatprep.subr.mxu0 0.0
        %1733 = vmatpush1.msra.mxu0 0.0
        %1734 = vmatprep.subr.mxu0 0.0
        %1735 = vmatpush1.msra.mxu0 0.0
        %1736 = vmatprep.subr.mxu0 0.0
        %1737 = vmatpush1.msra.mxu0 0.0
        %1738 = vmatprep.subr.mxu0 0.0
        %1739 = vmatpush1.msra.mxu0 0.0
        %1740 = vmatprep.subr.mxu0 0.0
        %1741 = vmatpush1.msra.mxu0 0.0
        %1742 = vmatprep.subr.mxu0 0.0
        %1743 = vmatpush1.msra.mxu0 0.0
        %1744 = vmatprep.subr.mxu0 0.0
        %1745 = vmatpush1.msra.mxu0 0.0
        %1746 = vmatprep.subr.mxu0 0.0
        %1747 = vmatpush1.msra.mxu0 0.0
        %1748 = vmatprep.subr.mxu0 0.0
        %1749 = vmatpush1.msra.mxu0 0.0
        %1750 = vmatprep.subr.mxu0 0.0
        %1751 = vmatpush1.msra.mxu0 0.0
        %1752 = vmatprep.subr.mxu0 0.0
        %1753 = vmatpush1.msra.mxu0 0.0
        %1754 = vmatprep.mubr.f32.mxu0 0.0
        %1755 = vmatmul.mubr.f32.gmra.mrb[0].mxu0 %v1666
        %v1756 = vpop.f32.mrb[0].mxu0
        %v1757 = vadd.f32 %v1689, %v1756
        %v1758 = vpop.f32.mrb[0].mxu0
        %1759 = vmatprep.mubr.f32.mxu0 0.0
        %1760 = vmatmul.mubr.f32.gmra.mrb[0].mxu0 %v1667
        %v1761 = vpop.f32.mrb[0].mxu0
        %v1762 = vadd.f32 %v1689, %v1761
        %v1763 = vpop.f32.mrb[0].mxu0
        %1764 = vmatprep.mubr.f32.mxu0 0.0
        %1765 = vmatmul.mubr.f32.gmra.mrb[0].mxu0 %v1668
        %v1766 = vpop.f32.mrb[0].mxu0
        %v1767 = vadd.f32 %v1689, %v1766
        %v1768 = vpop.f32.mrb[0].mxu0
        %1769 = vmatprep.mubr.f32.mxu0 0.0
        %1770 = vmatmul.mubr.f32.gmra.mrb[0].mxu0 %v1669
        %v1771 = vpop.f32.mrb[0].mxu0
        %v1772 = vadd.f32 %v1689, %v1771
        %v1773 = vpop.f32.mrb[0].mxu0
        %1774 = vdwg.mxu0
        %1775 = vst [vmem:[%s377] sm:$0xff] %v1757
        %1776 = vst [vmem:[%s377 + $0x8] sm:$0xff] %v1762
        %1777 = vst [vmem:[%s377 + $0x10] sm:$0xff] %v1767
        %1778 = vst [vmem:[%s377 + $0x18] sm:$0xff] %v1772
        %s1779 = sand.u32 %s191, 1
        %s1780 = scalar_lea.sflag [#allocation4], %s1779
        %s1781 = sand.u32 %s191, 1
        %s1782 = smul.addr %s1781, 32
        %s1783 = scalar_lea.vmem [#allocation11], %s1782
        // Predicated region
        $region65: #{tpu_custom_call.1} parent=43 // pred_check
          %p1784 = pneg %p201
        $region66: #{tpu_custom_call.1} parent=43 // pred_check_branch
          %1786 = sbr.rel (%p1784) target = $region68
        $region67: #{tpu_custom_call.1} parent=43 // pred_region
          %s1787 = smul.u32 4, %s32
          %s1789 = ssub.s32 512, 512
          %1790 = vsyncadd %s1780, %s1789
          %s1791 = smul.addr %s31, 8
          %s1792 = sadd.s32 %s1787, %s1791
          %s1793 = smul.addr %s1792, 128
          %s1794 = scalar_lea.hbm %s6, %s1793
          %s1795 = sshll.u32 %s1783, 4
          %s1796 = int_to_ptr.vmem [resolvable:$true] %s1795
          %1801 = dma.vmem_to_hbm [thread:$0]  %s1796, 512, %s1794, %s1780, 128, 128, 8
        $region68: #{tpu_custom_call.1} parent=43 // pred_fallthru
          _
      $region44: #{tpu_custom_call.1} parent=5 // pred_fallthru
        _
      %p1802 = scmp.le.s32.totalorder 2, %s22
      // Predicated region
      $region69: #{tpu_custom_call.1} parent=5 // pred_check
        %p1803 = pneg %p1802
      $region70: #{tpu_custom_call.1} parent=5 // pred_check_branch
        %1805 = sbr.rel (%p1803) target = $region72
      $region71: #{tpu_custom_call.1} parent=5 // pred_region
        %s1806 = ssub.s32 %s22, 2
        // Predicated region
        $region73: #{tpu_custom_call.1} parent=71 // pred_check
          %p1807 = pneg %p207
        $region74: #{tpu_custom_call.1} parent=71 // pred_check_branch
          %1809 = sbr.rel (%p1807) target = $region76
        $region75: #{tpu_custom_call.1} parent=71 // pred_region
          %s1810 = sand.u32 %s192, 1
          %s1811 = scalar_lea.sflag [#allocation4], %s1810
          %s1812 = sand.u32 %s192, 1
          %s1813 = smul.addr %s1812, 32
          %s1814 = scalar_lea.vmem [#allocation11], %s1813
          %1815 = dma.done %s1811, 512
        $region76: #{tpu_custom_call.1} parent=71 // pred_fallthru
          _
      $region72: #{tpu_custom_call.1} parent=5 // pred_fallthru
        _
    $region6: #{tpu_custom_call.1} parent=1 // loop_footer
      %s26 = sadd.s32 1, %s22
    $region7: #{tpu_custom_call.1} parent=1 // loop_footer_branch
      %21 = sbr.rel target = $region3
    $region8: #{tpu_custom_call.1} parent=1 // loop_exit
      _
    %1816 = vsyncpa [#allocation3], 1
    %s1817 = scalar_lea.sflag [#allocation3], 1
    %1818 = vsyncpa %s1817, 1
    %1819 = vsyncpa [#allocation6], 1
    %s1820 = scalar_lea.sflag [#allocation6], 1
    %1821 = vsyncpa %s1820, 1
    %1822 = vsyncpa [#allocation9], 1
    %1823 = vsyncpa [#allocation4], 1
    %s1824 = scalar_lea.sflag [#allocation4], 1
    %1825 = vsyncpa %s1824, 1

</llo_original>
